<compile_context>
chip_gen: v6e
topology: v6e:2x2x1
jax: 0.10.0
libtpu: 0.0.40
codegen_flags: <defaults>
</compile_context>

<pallas_src>
import jax
import jax.numpy as jnp
from jax.experimental import pallas as pl
from jax.experimental.pallas import tpu as pltpu

SQRT1_2 = 0.7071067811865476


def _full_spec(shape):
    # whole array resident in VMEM for the single grid step (all shapes are KB-scale)
    return pl.BlockSpec(shape, lambda i: (0,) * len(shape))


# --------------------------- fused forward kernel -----------------------------
def _make_fused_kernel(seq_len, hidden_size, num_layers, num_linear, user_feat_dim):
    T, H, L, d_u = seq_len, hidden_size, num_layers, user_feat_dim

    def kernel(*refs):
        x_ref, user_ref, h0_ref = refs[0], refs[1], refs[2]
        out_ref = refs[-1]
        p = refs[3:-1]

        B = x_ref.shape[0]

        # -------------------- GRU stack (fully unrolled; T, L small) --------------------
        x = x_ref[...]                                   # [B, T, D_in], f32
        xs = [x[:, t, :] for t in range(T)]              # per-timestep [B, D_in]

        pi = 0
        for l in range(L):
            wih = p[pi][...]                             # [D_in, 3H]
            whh = p[pi + 1][...]                         # [H,    3H]
            bih = p[pi + 2][...]                         # [1,    3H]
            bhh = p[pi + 3][...]                         # [1,    3H]
            pi += 4

            # Fold b_hh of the r/z gates into the hoisted input-projection bias
            # (done once per layer, outside the serial time loop).
            b_gi = jnp.concatenate(
                [bih[:, :2 * H] + bhh[:, :2 * H], bih[:, 2 * H:]], axis=-1)
            b_hn = bhh[:, 2 * H:]                        # [1, H], needed inside r*( )

            # Hoisted input projection: one [T*B, D_in] x [D_in, 3H] MXU push per layer.
            x_slab = jnp.concatenate(xs, axis=0)         # [T*B, D_in] (time-major rows)
            gi_slab = jnp.dot(x_slab, wih,
                              preferred_element_type=jnp.float32) + b_gi

            h = h0_ref[l]                                # [B, H]
            new_xs = []
            for t in range(T):                           # serial recurrence (only gh here)
                gi = gi_slab[t * B:(t + 1) * B, :]       # contiguous static slice
                gh = jnp.dot(h, whh, preferred_element_type=jnp.float32)
                # PyTorch GRU gate order: r, z, n
                r = jax.nn.sigmoid(gi[:, 0:H] + gh[:, 0:H])
                z = jax.nn.sigmoid(gi[:, H:2 * H] + gh[:, H:2 * H])
                n = jnp.tanh(gi[:, 2 * H:] + r * (gh[:, 2 * H:] + b_hn))
                h = (1.0 - z) * n + z * h
                new_xs.append(h)
            xs = new_xs                                  # feeds the next layer

        # Lane-dense flattened output of the LAST layer: [B, T*H]
        # (identical to recurr_output.reshape(B, -1) in the reference).
        recurr = jnp.concatenate(xs, axis=1)

        # ------------------------------- MLP head --------------------------------------
        # torch.cat([user, recurr], dim=1) is replaced by splitting the first matmul.
        user = user_ref[...]                             # [B, d_u]
        w = p[pi][...]                                   # [d_u + T*H, d1]
        b = p[pi + 1][...]
        pi += 2
        h = (jnp.dot(user, w[:d_u, :], preferred_element_type=jnp.float32)
             + jnp.dot(recurr, w[d_u:, :], preferred_element_type=jnp.float32)
             + b)
        for _ in range(num_linear - 1):
            gamma = p[pi][...]
            beta = p[pi + 1][...]
            pi += 2
            mean = jnp.mean(h, axis=-1, keepdims=True)
            var = jnp.mean((h - mean) ** 2, axis=-1, keepdims=True)
            h = (h - mean) * jax.lax.rsqrt(var + 1e-5)
            h = h * gamma + beta
            # exact (erf-based) GELU, matching nn.GELU default
            h = 0.5 * h * (1.0 + jax.lax.erf(h * SQRT1_2))
            w = p[pi][...]
            b = p[pi + 1][...]
            pi += 2
            h = jnp.dot(h, w, preferred_element_type=jnp.float32) + b

        out_ref[...] = h.astype(out_ref.dtype)

    return kernel


# ----------------------------- Module wrapper ---------------------------------
class RecurrentSynthesisPallas:
    def __init__(self, seq_len, user_feat_dim, item_embed_dim, hidden_size,
                 num_layers, user_embed_dim, hidden_dims, key):
        self.seq_len = seq_len
        self.d_u = user_feat_dim
        self.d_i = item_embed_dim
        self.hidden_size = hidden_size
        self.num_layers = num_layers
        self.dims = [seq_len * hidden_size + user_feat_dim] + list(hidden_dims) + [user_embed_dim]
        self.num_linear = len(self.dims) - 1

        keys = jax.random.split(key, 4 * num_layers + 2 * self.num_linear)
        ki = iter(keys)
        H = hidden_size
        scale_gru = 1.0 / jnp.sqrt(jnp.float32(H))

        # GRU parameters (stored transposed: [D_in, 3H] / [H, 3H]); biases as [1, 3H]
        self.w_ih, self.w_hh, self.b_ih, self.b_hh = [], [], [], []
        for layer in range(num_layers):
            d_in = item_embed_dim if layer == 0 else H
            self.w_ih.append(jax.random.uniform(next(ki), (d_in, 3 * H),
                                                minval=-scale_gru, maxval=scale_gru,
                                                dtype=jnp.float32))
            self.w_hh.append(jax.random.uniform(next(ki), (H, 3 * H),
                                                minval=-scale_gru, maxval=scale_gru,
                                                dtype=jnp.float32))
            self.b_ih.append(jax.random.uniform(next(ki), (1, 3 * H),
                                                minval=-scale_gru, maxval=scale_gru,
                                                dtype=jnp.float32))
            self.b_hh.append(jax.random.uniform(next(ki), (1, 3 * H),
                                                minval=-scale_gru, maxval=scale_gru,
                                                dtype=jnp.float32))

        # MLP parameters (Linear weights stored as [in, out]); LN affine params [1, out]
        self.mlp_w, self.mlp_b, self.mlp_gamma, self.mlp_beta = [], [], [], []
        for li in range(self.num_linear):
            d_in, d_out = self.dims[li], self.dims[li + 1]
            scale = 1.0 / jnp.sqrt(jnp.float32(d_in))
            self.mlp_w.append(jax.random.uniform(next(ki), (d_in, d_out),
                                                 minval=-scale, maxval=scale,
                                                 dtype=jnp.float32))
            self.mlp_b.append(jax.random.uniform(next(ki), (1, d_out),
                                                 minval=-scale, maxval=scale,
                                                 dtype=jnp.float32))
            if li < self.num_linear - 1:
                self.mlp_gamma.append(jnp.ones((1, d_out), jnp.float32))
                self.mlp_beta.append(jnp.zeros((1, d_out), jnp.float32))

        self._kernel = _make_fused_kernel(seq_len, hidden_size, num_layers,
                                          self.num_linear, user_feat_dim)

    def __call__(self, user_embeddings, neighbor_item_embeddings, state_key):
        B = user_embeddings.shape[0]
        # torch.randn initial hidden state -> deterministic jax.random.normal
        h0_all = jax.random.normal(
            state_key, (self.num_layers, B, self.hidden_size), dtype=jnp.float32)

        args = [neighbor_item_embeddings.astype(jnp.float32),
                user_embeddings.astype(jnp.float32),
                h0_all]
        for layer in range(self.num_layers):
            args += [self.w_ih[layer], self.w_hh[layer],
                     self.b_ih[layer], self.b_hh[layer]]
        for li in range(self.num_linear):
            args += [self.mlp_w[li], self.mlp_b[li]]
            if li < self.num_linear - 1:
                args += [self.mlp_gamma[li], self.mlp_beta[li]]

        specs = [_full_spec(a.shape) for a in args]
        out_dim = self.dims[-1]

        return pl.pallas_call(
            self._kernel,
            out_shape=jax.ShapeDtypeStruct((B, out_dim), jnp.float32),
            grid=(1,),
            in_specs=specs,
            out_specs=_full_spec((B, out_dim)),
            compiler_params=pltpu.CompilerParams(
                dimension_semantics=("arbitrary",)),
        )(*args)


# ---------------------------------- main --------------------------------------
if __name__ == "__main__":
    seq_len = 8
    user_feat_dim = 8
    item_embed_dim = 16
    hidden_size = 32
    num_layers = 2
    user_embed_dim = 16
    hidden_dims = [64, 32]
    batch = 2

    root = jax.random.PRNGKey(0)
    k_params, k_user, k_items, k_state = jax.random.split(root, 4)

    model = RecurrentSynthesisPallas(seq_len, user_feat_dim, item_embed_dim,
                                     hidden_size, num_layers, user_embed_dim,
                                     hidden_dims, k_params)

    user_embeddings = jax.random.normal(k_user, (batch, user_feat_dim), jnp.float32)
    neighbor_item_embeddings = jax.random.normal(
        k_items, (batch, seq_len, item_embed_dim), jnp.float32)

    out = model(user_embeddings, neighbor_item_embeddings, k_state)
    out = jax.block_until_ready(out)
    assert out.shape == (batch, user_embed_dim), out.shape
    assert jnp.all(jnp.isfinite(out))
    print("KERNEL_OK")
</pallas_src>

<mosaic_0001>
module attributes {stable_mosaic.version = 11 : i64} {
  func.func @kernel(%arg0: i32, %arg1: memref<2x8x16xf32, #tpu.memory_space<vmem>>, %arg2: memref<2x8xf32, #tpu.memory_space<vmem>>, %arg3: memref<2x2x32xf32, #tpu.memory_space<vmem>>, %arg4: memref<16x96xf32, #tpu.memory_space<vmem>>, %arg5: memref<32x96xf32, #tpu.memory_space<vmem>>, %arg6: memref<1x96xf32, #tpu.memory_space<vmem>>, %arg7: memref<1x96xf32, #tpu.memory_space<vmem>>, %arg8: memref<32x96xf32, #tpu.memory_space<vmem>>, %arg9: memref<32x96xf32, #tpu.memory_space<vmem>>, %arg10: memref<1x96xf32, #tpu.memory_space<vmem>>, %arg11: memref<1x96xf32, #tpu.memory_space<vmem>>, %arg12: memref<264x64xf32, #tpu.memory_space<vmem>>, %arg13: memref<1x64xf32, #tpu.memory_space<vmem>>, %arg14: memref<1x64xf32, #tpu.memory_space<vmem>>, %arg15: memref<1x64xf32, #tpu.memory_space<vmem>>, %arg16: memref<64x32xf32, #tpu.memory_space<vmem>>, %arg17: memref<1x32xf32, #tpu.memory_space<vmem>>, %arg18: memref<1x32xf32, #tpu.memory_space<vmem>>, %arg19: memref<1x32xf32, #tpu.memory_space<vmem>>, %arg20: memref<32x16xf32, #tpu.memory_space<vmem>>, %arg21: memref<1x16xf32, #tpu.memory_space<vmem>>, %arg22: memref<2x16xf32, #tpu.memory_space<vmem>>) attributes {dimension_semantics = [#tpu.dimension_semantics<arbitrary>], iteration_bounds = array<i64: 1>, scalar_prefetch = 0 : i64, scratch_operands = 0 : i64, tpu.core_type = #tpu.core_type<tc>, window_params = [{pipeline_mode = #tpu.pipeline_mode<synchronous>, transform_indices = @transform_0, window_bounds = array<i64: 2, 8, 16>}, {pipeline_mode = #tpu.pipeline_mode<synchronous>, transform_indices = @transform_1, window_bounds = array<i64: 2, 8>}, {pipeline_mode = #tpu.pipeline_mode<synchronous>, transform_indices = @transform_2, window_bounds = array<i64: 2, 2, 32>}, {pipeline_mode = #tpu.pipeline_mode<synchronous>, transform_indices = @transform_3, window_bounds = array<i64: 16, 96>}, {pipeline_mode = #tpu.pipeline_mode<synchronous>, transform_indices = @transform_4, window_bounds = array<i64: 32, 96>}, {pipeline_mode = #tpu.pipeline_mode<synchronous>, transform_indices = @transform_5, window_bounds = array<i64: 1, 96>}, {pipeline_mode = #tpu.pipeline_mode<synchronous>, transform_indices = @transform_6, window_bounds = array<i64: 1, 96>}, {pipeline_mode = #tpu.pipeline_mode<synchronous>, transform_indices = @transform_7, window_bounds = array<i64: 32, 96>}, {pipeline_mode = #tpu.pipeline_mode<synchronous>, transform_indices = @transform_8, window_bounds = array<i64: 32, 96>}, {pipeline_mode = #tpu.pipeline_mode<synchronous>, transform_indices = @transform_9, window_bounds = array<i64: 1, 96>}, {pipeline_mode = #tpu.pipeline_mode<synchronous>, transform_indices = @transform_10, window_bounds = array<i64: 1, 96>}, {pipeline_mode = #tpu.pipeline_mode<synchronous>, transform_indices = @transform_11, window_bounds = array<i64: 264, 64>}, {pipeline_mode = #tpu.pipeline_mode<synchronous>, transform_indices = @transform_12, window_bounds = array<i64: 1, 64>}, {pipeline_mode = #tpu.pipeline_mode<synchronous>, transform_indices = @transform_13, window_bounds = array<i64: 1, 64>}, {pipeline_mode = #tpu.pipeline_mode<synchronous>, transform_indices = @transform_14, window_bounds = array<i64: 1, 64>}, {pipeline_mode = #tpu.pipeline_mode<synchronous>, transform_indices = @transform_15, window_bounds = array<i64: 64, 32>}, {pipeline_mode = #tpu.pipeline_mode<synchronous>, transform_indices = @transform_16, window_bounds = array<i64: 1, 32>}, {pipeline_mode = #tpu.pipeline_mode<synchronous>, transform_indices = @transform_17, window_bounds = array<i64: 1, 32>}, {pipeline_mode = #tpu.pipeline_mode<synchronous>, transform_indices = @transform_18, window_bounds = array<i64: 1, 32>}, {pipeline_mode = #tpu.pipeline_mode<synchronous>, transform_indices = @transform_19, window_bounds = array<i64: 32, 16>}, {pipeline_mode = #tpu.pipeline_mode<synchronous>, transform_indices = @transform_20, window_bounds = array<i64: 1, 16>}, {pipeline_mode = #tpu.pipeline_mode<synchronous>, transform_indices = @transform_21, window_bounds = array<i64: 2, 16>}]} {
    %c0 = arith.constant 0 : index
    %c0_0 = arith.constant 0 : index
    %c0_1 = arith.constant 0 : index
    %0 = vector.load %arg1[%c0, %c0_0, %c0_1] : memref<2x8x16xf32, #tpu.memory_space<vmem>>, vector<2x8x16xf32>
    %1 = vector.extract_strided_slice %0 {offsets = [0, 0, 0], sizes = [2, 1, 16], strides = [1, 1, 1]} : vector<2x8x16xf32> to vector<2x1x16xf32>
    %2 = vector.shape_cast %1 : vector<2x1x16xf32> to vector<2x16xf32>
    %3 = vector.extract_strided_slice %0 {offsets = [0, 1, 0], sizes = [2, 1, 16], strides = [1, 1, 1]} : vector<2x8x16xf32> to vector<2x1x16xf32>
    %4 = vector.shape_cast %3 : vector<2x1x16xf32> to vector<2x16xf32>
    %5 = vector.extract_strided_slice %0 {offsets = [0, 2, 0], sizes = [2, 1, 16], strides = [1, 1, 1]} : vector<2x8x16xf32> to vector<2x1x16xf32>
    %6 = vector.shape_cast %5 : vector<2x1x16xf32> to vector<2x16xf32>
    %7 = vector.extract_strided_slice %0 {offsets = [0, 3, 0], sizes = [2, 1, 16], strides = [1, 1, 1]} : vector<2x8x16xf32> to vector<2x1x16xf32>
    %8 = vector.shape_cast %7 : vector<2x1x16xf32> to vector<2x16xf32>
    %9 = vector.extract_strided_slice %0 {offsets = [0, 4, 0], sizes = [2, 1, 16], strides = [1, 1, 1]} : vector<2x8x16xf32> to vector<2x1x16xf32>
    %10 = vector.shape_cast %9 : vector<2x1x16xf32> to vector<2x16xf32>
    %11 = vector.extract_strided_slice %0 {offsets = [0, 5, 0], sizes = [2, 1, 16], strides = [1, 1, 1]} : vector<2x8x16xf32> to vector<2x1x16xf32>
    %12 = vector.shape_cast %11 : vector<2x1x16xf32> to vector<2x16xf32>
    %13 = vector.extract_strided_slice %0 {offsets = [0, 6, 0], sizes = [2, 1, 16], strides = [1, 1, 1]} : vector<2x8x16xf32> to vector<2x1x16xf32>
    %14 = vector.shape_cast %13 : vector<2x1x16xf32> to vector<2x16xf32>
    %15 = vector.extract_strided_slice %0 {offsets = [0, 7, 0], sizes = [2, 1, 16], strides = [1, 1, 1]} : vector<2x8x16xf32> to vector<2x1x16xf32>
    %16 = vector.shape_cast %15 : vector<2x1x16xf32> to vector<2x16xf32>
    %c0_2 = arith.constant 0 : index
    %c0_3 = arith.constant 0 : index
    %17 = vector.load %arg4[%c0_2, %c0_3] : memref<16x96xf32, #tpu.memory_space<vmem>>, vector<16x96xf32>
    %c0_4 = arith.constant 0 : index
    %c0_5 = arith.constant 0 : index
    %18 = vector.load %arg5[%c0_4, %c0_5] : memref<32x96xf32, #tpu.memory_space<vmem>>, vector<32x96xf32>
    %c0_6 = arith.constant 0 : index
    %c0_7 = arith.constant 0 : index
    %19 = vector.load %arg6[%c0_6, %c0_7] : memref<1x96xf32, #tpu.memory_space<vmem>>, vector<1x96xf32>
    %c0_8 = arith.constant 0 : index
    %c0_9 = arith.constant 0 : index
    %20 = vector.load %arg7[%c0_8, %c0_9] : memref<1x96xf32, #tpu.memory_space<vmem>>, vector<1x96xf32>
    %21 = vector.extract_strided_slice %19 {offsets = [0, 0], sizes = [1, 64], strides = [1, 1]} : vector<1x96xf32> to vector<1x64xf32>
    %22 = vector.extract_strided_slice %20 {offsets = [0, 0], sizes = [1, 64], strides = [1, 1]} : vector<1x96xf32> to vector<1x64xf32>
    %23 = arith.addf %21, %22 : vector<1x64xf32>
    %24 = vector.extract_strided_slice %19 {offsets = [0, 64], sizes = [1, 32], strides = [1, 1]} : vector<1x96xf32> to vector<1x32xf32>
    %25 = tpu.concatenate %23, %24 in 1 : vector<1x64xf32>, vector<1x32xf32> -> vector<1x96xf32>
    %26 = vector.extract_strided_slice %20 {offsets = [0, 64], sizes = [1, 32], strides = [1, 1]} : vector<1x96xf32> to vector<1x32xf32>
    %27 = tpu.concatenate %2, %4, %6, %8, %10, %12, %14, %16 in 0 : vector<2x16xf32>, vector<2x16xf32>, vector<2x16xf32>, vector<2x16xf32>, vector<2x16xf32>, vector<2x16xf32>, vector<2x16xf32>, vector<2x16xf32> -> vector<16x16xf32>
    %cst = arith.constant dense<0.000000e+00> : vector<16x96xf32>
    %28 = tpu.matmul %27, %17, %cst {dimension_numbers = #tpu.dot_dimension_numbers<[1], [0], [0], [1], [0, 0, 1, 1], [], []>} : vector<16x16xf32>, vector<16x96xf32>, vector<16x96xf32> -> vector<16x96xf32>
    %29 = vector.broadcast %25 : vector<1x96xf32> to vector<16x96xf32>
    %30 = arith.addf %28, %29 : vector<16x96xf32>
    %c0_10 = arith.constant 0 : index
    %c0_11 = arith.constant 0 : index
    %c0_12 = arith.constant 0 : index
    %31 = vector.load %arg3[%c0_10, %c0_11, %c0_12] : memref<2x2x32xf32, #tpu.memory_space<vmem>>, vector<1x2x32xf32>
    %32 = vector.shape_cast %31 : vector<1x2x32xf32> to vector<2x32xf32>
    %33 = vector.extract_strided_slice %30 {offsets = [0, 0], sizes = [2, 96], strides = [1, 1]} : vector<16x96xf32> to vector<2x96xf32>
    %cst_13 = arith.constant dense<0.000000e+00> : vector<2x96xf32>
    %34 = tpu.matmul %32, %18, %cst_13 {dimension_numbers = #tpu.dot_dimension_numbers<[1], [0], [0], [1], [0, 0, 1, 1], [], []>} : vector<2x32xf32>, vector<32x96xf32>, vector<2x96xf32> -> vector<2x96xf32>
    %35 = vector.extract_strided_slice %33 {offsets = [0, 0], sizes = [2, 32], strides = [1, 1]} : vector<2x96xf32> to vector<2x32xf32>
    %36 = vector.extract_strided_slice %34 {offsets = [0, 0], sizes = [2, 32], strides = [1, 1]} : vector<2x96xf32> to vector<2x32xf32>
    %37 = arith.addf %35, %36 : vector<2x32xf32>
    %38 = arith.negf %37 : vector<2x32xf32>
    %39 = math.exp %38 : vector<2x32xf32>
    %cst_14 = arith.constant 1.000000e+00 : f32
    %40 = vector.broadcast %cst_14 : f32 to vector<2x32xf32>
    %41 = arith.addf %40, %39 : vector<2x32xf32>
    %42 = arith.divf %40, %41 : vector<2x32xf32>
    %43 = vector.extract_strided_slice %33 {offsets = [0, 32], sizes = [2, 32], strides = [1, 1]} : vector<2x96xf32> to vector<2x32xf32>
    %44 = vector.extract_strided_slice %34 {offsets = [0, 32], sizes = [2, 32], strides = [1, 1]} : vector<2x96xf32> to vector<2x32xf32>
    %45 = arith.addf %43, %44 : vector<2x32xf32>
    %46 = arith.negf %45 : vector<2x32xf32>
    %47 = math.exp %46 : vector<2x32xf32>
    %cst_15 = arith.constant 1.000000e+00 : f32
    %48 = vector.broadcast %cst_15 : f32 to vector<2x32xf32>
    %49 = arith.addf %48, %47 : vector<2x32xf32>
    %50 = arith.divf %48, %49 : vector<2x32xf32>
    %51 = vector.extract_strided_slice %33 {offsets = [0, 64], sizes = [2, 32], strides = [1, 1]} : vector<2x96xf32> to vector<2x32xf32>
    %52 = vector.extract_strided_slice %34 {offsets = [0, 64], sizes = [2, 32], strides = [1, 1]} : vector<2x96xf32> to vector<2x32xf32>
    %53 = vector.broadcast %26 : vector<1x32xf32> to vector<2x32xf32>
    %54 = arith.addf %52, %53 : vector<2x32xf32>
    %55 = arith.mulf %42, %54 : vector<2x32xf32>
    %56 = arith.addf %51, %55 : vector<2x32xf32>
    %57 = math.tanh %56 : vector<2x32xf32>
    %cst_16 = arith.constant 1.000000e+00 : f32
    %58 = vector.broadcast %cst_16 : f32 to vector<2x32xf32>
    %59 = arith.subf %58, %50 : vector<2x32xf32>
    %60 = arith.mulf %59, %57 : vector<2x32xf32>
    %61 = arith.mulf %50, %32 : vector<2x32xf32>
    %62 = arith.addf %60, %61 : vector<2x32xf32>
    %63 = vector.extract_strided_slice %30 {offsets = [2, 0], sizes = [2, 96], strides = [1, 1]} : vector<16x96xf32> to vector<2x96xf32>
    %cst_17 = arith.constant dense<0.000000e+00> : vector<2x96xf32>
    %64 = tpu.matmul %62, %18, %cst_17 {dimension_numbers = #tpu.dot_dimension_numbers<[1], [0], [0], [1], [0, 0, 1, 1], [], []>} : vector<2x32xf32>, vector<32x96xf32>, vector<2x96xf32> -> vector<2x96xf32>
    %65 = vector.extract_strided_slice %63 {offsets = [0, 0], sizes = [2, 32], strides = [1, 1]} : vector<2x96xf32> to vector<2x32xf32>
    %66 = vector.extract_strided_slice %64 {offsets = [0, 0], sizes = [2, 32], strides = [1, 1]} : vector<2x96xf32> to vector<2x32xf32>
    %67 = arith.addf %65, %66 : vector<2x32xf32>
    %68 = arith.negf %67 : vector<2x32xf32>
    %69 = math.exp %68 : vector<2x32xf32>
    %cst_18 = arith.constant 1.000000e+00 : f32
    %70 = vector.broadcast %cst_18 : f32 to vector<2x32xf32>
    %71 = arith.addf %70, %69 : vector<2x32xf32>
    %72 = arith.divf %70, %71 : vector<2x32xf32>
    %73 = vector.extract_strided_slice %63 {offsets = [0, 32], sizes = [2, 32], strides = [1, 1]} : vector<2x96xf32> to vector<2x32xf32>
    %74 = vector.extract_strided_slice %64 {offsets = [0, 32], sizes = [2, 32], strides = [1, 1]} : vector<2x96xf32> to vector<2x32xf32>
    %75 = arith.addf %73, %74 : vector<2x32xf32>
    %76 = arith.negf %75 : vector<2x32xf32>
    %77 = math.exp %76 : vector<2x32xf32>
    %cst_19 = arith.constant 1.000000e+00 : f32
    %78 = vector.broadcast %cst_19 : f32 to vector<2x32xf32>
    %79 = arith.addf %78, %77 : vector<2x32xf32>
    %80 = arith.divf %78, %79 : vector<2x32xf32>
    %81 = vector.extract_strided_slice %63 {offsets = [0, 64], sizes = [2, 32], strides = [1, 1]} : vector<2x96xf32> to vector<2x32xf32>
    %82 = vector.extract_strided_slice %64 {offsets = [0, 64], sizes = [2, 32], strides = [1, 1]} : vector<2x96xf32> to vector<2x32xf32>
    %83 = vector.broadcast %26 : vector<1x32xf32> to vector<2x32xf32>
    %84 = arith.addf %82, %83 : vector<2x32xf32>
    %85 = arith.mulf %72, %84 : vector<2x32xf32>
    %86 = arith.addf %81, %85 : vector<2x32xf32>
    %87 = math.tanh %86 : vector<2x32xf32>
    %cst_20 = arith.constant 1.000000e+00 : f32
    %88 = vector.broadcast %cst_20 : f32 to vector<2x32xf32>
    %89 = arith.subf %88, %80 : vector<2x32xf32>
    %90 = arith.mulf %89, %87 : vector<2x32xf32>
    %91 = arith.mulf %80, %62 : vector<2x32xf32>
    %92 = arith.addf %90, %91 : vector<2x32xf32>
    %93 = vector.extract_strided_slice %30 {offsets = [4, 0], sizes = [2, 96], strides = [1, 1]} : vector<16x96xf32> to vector<2x96xf32>
    %cst_21 = arith.constant dense<0.000000e+00> : vector<2x96xf32>
    %94 = tpu.matmul %92, %18, %cst_21 {dimension_numbers = #tpu.dot_dimension_numbers<[1], [0], [0], [1], [0, 0, 1, 1], [], []>} : vector<2x32xf32>, vector<32x96xf32>, vector<2x96xf32> -> vector<2x96xf32>
    %95 = vector.extract_strided_slice %93 {offsets = [0, 0], sizes = [2, 32], strides = [1, 1]} : vector<2x96xf32> to vector<2x32xf32>
    %96 = vector.extract_strided_slice %94 {offsets = [0, 0], sizes = [2, 32], strides = [1, 1]} : vector<2x96xf32> to vector<2x32xf32>
    %97 = arith.addf %95, %96 : vector<2x32xf32>
    %98 = arith.negf %97 : vector<2x32xf32>
    %99 = math.exp %98 : vector<2x32xf32>
    %cst_22 = arith.constant 1.000000e+00 : f32
    %100 = vector.broadcast %cst_22 : f32 to vector<2x32xf32>
    %101 = arith.addf %100, %99 : vector<2x32xf32>
    %102 = arith.divf %100, %101 : vector<2x32xf32>
    %103 = vector.extract_strided_slice %93 {offsets = [0, 32], sizes = [2, 32], strides = [1, 1]} : vector<2x96xf32> to vector<2x32xf32>
    %104 = vector.extract_strided_slice %94 {offsets = [0, 32], sizes = [2, 32], strides = [1, 1]} : vector<2x96xf32> to vector<2x32xf32>
    %105 = arith.addf %103, %104 : vector<2x32xf32>
    %106 = arith.negf %105 : vector<2x32xf32>
    %107 = math.exp %106 : vector<2x32xf32>
    %cst_23 = arith.constant 1.000000e+00 : f32
    %108 = vector.broadcast %cst_23 : f32 to vector<2x32xf32>
    %109 = arith.addf %108, %107 : vector<2x32xf32>
    %110 = arith.divf %108, %109 : vector<2x32xf32>
    %111 = vector.extract_strided_slice %93 {offsets = [0, 64], sizes = [2, 32], strides = [1, 1]} : vector<2x96xf32> to vector<2x32xf32>
    %112 = vector.extract_strided_slice %94 {offsets = [0, 64], sizes = [2, 32], strides = [1, 1]} : vector<2x96xf32> to vector<2x32xf32>
    %113 = vector.broadcast %26 : vector<1x32xf32> to vector<2x32xf32>
    %114 = arith.addf %112, %113 : vector<2x32xf32>
    %115 = arith.mulf %102, %114 : vector<2x32xf32>
    %116 = arith.addf %111, %115 : vector<2x32xf32>
    %117 = math.tanh %116 : vector<2x32xf32>
    %cst_24 = arith.constant 1.000000e+00 : f32
    %118 = vector.broadcast %cst_24 : f32 to vector<2x32xf32>
    %119 = arith.subf %118, %110 : vector<2x32xf32>
    %120 = arith.mulf %119, %117 : vector<2x32xf32>
    %121 = arith.mulf %110, %92 : vector<2x32xf32>
    %122 = arith.addf %120, %121 : vector<2x32xf32>
    %123 = vector.extract_strided_slice %30 {offsets = [6, 0], sizes = [2, 96], strides = [1, 1]} : vector<16x96xf32> to vector<2x96xf32>
    %cst_25 = arith.constant dense<0.000000e+00> : vector<2x96xf32>
    %124 = tpu.matmul %122, %18, %cst_25 {dimension_numbers = #tpu.dot_dimension_numbers<[1], [0], [0], [1], [0, 0, 1, 1], [], []>} : vector<2x32xf32>, vector<32x96xf32>, vector<2x96xf32> -> vector<2x96xf32>
    %125 = vector.extract_strided_slice %123 {offsets = [0, 0], sizes = [2, 32], strides = [1, 1]} : vector<2x96xf32> to vector<2x32xf32>
    %126 = vector.extract_strided_slice %124 {offsets = [0, 0], sizes = [2, 32], strides = [1, 1]} : vector<2x96xf32> to vector<2x32xf32>
    %127 = arith.addf %125, %126 : vector<2x32xf32>
    %128 = arith.negf %127 : vector<2x32xf32>
    %129 = math.exp %128 : vector<2x32xf32>
    %cst_26 = arith.constant 1.000000e+00 : f32
    %130 = vector.broadcast %cst_26 : f32 to vector<2x32xf32>
    %131 = arith.addf %130, %129 : vector<2x32xf32>
    %132 = arith.divf %130, %131 : vector<2x32xf32>
    %133 = vector.extract_strided_slice %123 {offsets = [0, 32], sizes = [2, 32], strides = [1, 1]} : vector<2x96xf32> to vector<2x32xf32>
    %134 = vector.extract_strided_slice %124 {offsets = [0, 32], sizes = [2, 32], strides = [1, 1]} : vector<2x96xf32> to vector<2x32xf32>
    %135 = arith.addf %133, %134 : vector<2x32xf32>
    %136 = arith.negf %135 : vector<2x32xf32>
    %137 = math.exp %136 : vector<2x32xf32>
    %cst_27 = arith.constant 1.000000e+00 : f32
    %138 = vector.broadcast %cst_27 : f32 to vector<2x32xf32>
    %139 = arith.addf %138, %137 : vector<2x32xf32>
    %140 = arith.divf %138, %139 : vector<2x32xf32>
    %141 = vector.extract_strided_slice %123 {offsets = [0, 64], sizes = [2, 32], strides = [1, 1]} : vector<2x96xf32> to vector<2x32xf32>
    %142 = vector.extract_strided_slice %124 {offsets = [0, 64], sizes = [2, 32], strides = [1, 1]} : vector<2x96xf32> to vector<2x32xf32>
    %143 = vector.broadcast %26 : vector<1x32xf32> to vector<2x32xf32>
    %144 = arith.addf %142, %143 : vector<2x32xf32>
    %145 = arith.mulf %132, %144 : vector<2x32xf32>
    %146 = arith.addf %141, %145 : vector<2x32xf32>
    %147 = math.tanh %146 : vector<2x32xf32>
    %cst_28 = arith.constant 1.000000e+00 : f32
    %148 = vector.broadcast %cst_28 : f32 to vector<2x32xf32>
    %149 = arith.subf %148, %140 : vector<2x32xf32>
    %150 = arith.mulf %149, %147 : vector<2x32xf32>
    %151 = arith.mulf %140, %122 : vector<2x32xf32>
    %152 = arith.addf %150, %151 : vector<2x32xf32>
    %153 = vector.extract_strided_slice %30 {offsets = [8, 0], sizes = [2, 96], strides = [1, 1]} : vector<16x96xf32> to vector<2x96xf32>
    %cst_29 = arith.constant dense<0.000000e+00> : vector<2x96xf32>
    %154 = tpu.matmul %152, %18, %cst_29 {dimension_numbers = #tpu.dot_dimension_numbers<[1], [0], [0], [1], [0, 0, 1, 1], [], []>} : vector<2x32xf32>, vector<32x96xf32>, vector<2x96xf32> -> vector<2x96xf32>
    %155 = vector.extract_strided_slice %153 {offsets = [0, 0], sizes = [2, 32], strides = [1, 1]} : vector<2x96xf32> to vector<2x32xf32>
    %156 = vector.extract_strided_slice %154 {offsets = [0, 0], sizes = [2, 32], strides = [1, 1]} : vector<2x96xf32> to vector<2x32xf32>
    %157 = arith.addf %155, %156 : vector<2x32xf32>
    %158 = arith.negf %157 : vector<2x32xf32>
    %159 = math.exp %158 : vector<2x32xf32>
    %cst_30 = arith.constant 1.000000e+00 : f32
    %160 = vector.broadcast %cst_30 : f32 to vector<2x32xf32>
    %161 = arith.addf %160, %159 : vector<2x32xf32>
    %162 = arith.divf %160, %161 : vector<2x32xf32>
    %163 = vector.extract_strided_slice %153 {offsets = [0, 32], sizes = [2, 32], strides = [1, 1]} : vector<2x96xf32> to vector<2x32xf32>
    %164 = vector.extract_strided_slice %154 {offsets = [0, 32], sizes = [2, 32], strides = [1, 1]} : vector<2x96xf32> to vector<2x32xf32>
    %165 = arith.addf %163, %164 : vector<2x32xf32>
    %166 = arith.negf %165 : vector<2x32xf32>
    %167 = math.exp %166 : vector<2x32xf32>
    %cst_31 = arith.constant 1.000000e+00 : f32
    %168 = vector.broadcast %cst_31 : f32 to vector<2x32xf32>
    %169 = arith.addf %168, %167 : vector<2x32xf32>
    %170 = arith.divf %168, %169 : vector<2x32xf32>
    %171 = vector.extract_strided_slice %153 {offsets = [0, 64], sizes = [2, 32], strides = [1, 1]} : vector<2x96xf32> to vector<2x32xf32>
    %172 = vector.extract_strided_slice %154 {offsets = [0, 64], sizes = [2, 32], strides = [1, 1]} : vector<2x96xf32> to vector<2x32xf32>
    %173 = vector.broadcast %26 : vector<1x32xf32> to vector<2x32xf32>
    %174 = arith.addf %172, %173 : vector<2x32xf32>
    %175 = arith.mulf %162, %174 : vector<2x32xf32>
    %176 = arith.addf %171, %175 : vector<2x32xf32>
    %177 = math.tanh %176 : vector<2x32xf32>
    %cst_32 = arith.constant 1.000000e+00 : f32
    %178 = vector.broadcast %cst_32 : f32 to vector<2x32xf32>
    %179 = arith.subf %178, %170 : vector<2x32xf32>
    %180 = arith.mulf %179, %177 : vector<2x32xf32>
    %181 = arith.mulf %170, %152 : vector<2x32xf32>
    %182 = arith.addf %180, %181 : vector<2x32xf32>
    %183 = vector.extract_strided_slice %30 {offsets = [10, 0], sizes = [2, 96], strides = [1, 1]} : vector<16x96xf32> to vector<2x96xf32>
    %cst_33 = arith.constant dense<0.000000e+00> : vector<2x96xf32>
    %184 = tpu.matmul %182, %18, %cst_33 {dimension_numbers = #tpu.dot_dimension_numbers<[1], [0], [0], [1], [0, 0, 1, 1], [], []>} : vector<2x32xf32>, vector<32x96xf32>, vector<2x96xf32> -> vector<2x96xf32>
    %185 = vector.extract_strided_slice %183 {offsets = [0, 0], sizes = [2, 32], strides = [1, 1]} : vector<2x96xf32> to vector<2x32xf32>
    %186 = vector.extract_strided_slice %184 {offsets = [0, 0], sizes = [2, 32], strides = [1, 1]} : vector<2x96xf32> to vector<2x32xf32>
    %187 = arith.addf %185, %186 : vector<2x32xf32>
    %188 = arith.negf %187 : vector<2x32xf32>
    %189 = math.exp %188 : vector<2x32xf32>
    %cst_34 = arith.constant 1.000000e+00 : f32
    %190 = vector.broadcast %cst_34 : f32 to vector<2x32xf32>
    %191 = arith.addf %190, %189 : vector<2x32xf32>
    %192 = arith.divf %190, %191 : vector<2x32xf32>
    %193 = vector.extract_strided_slice %183 {offsets = [0, 32], sizes = [2, 32], strides = [1, 1]} : vector<2x96xf32> to vector<2x32xf32>
    %194 = vector.extract_strided_slice %184 {offsets = [0, 32], sizes = [2, 32], strides = [1, 1]} : vector<2x96xf32> to vector<2x32xf32>
    %195 = arith.addf %193, %194 : vector<2x32xf32>
    %196 = arith.negf %195 : vector<2x32xf32>
    %197 = math.exp %196 : vector<2x32xf32>
    %cst_35 = arith.constant 1.000000e+00 : f32
    %198 = vector.broadcast %cst_35 : f32 to vector<2x32xf32>
    %199 = arith.addf %198, %197 : vector<2x32xf32>
    %200 = arith.divf %198, %199 : vector<2x32xf32>
    %201 = vector.extract_strided_slice %183 {offsets = [0, 64], sizes = [2, 32], strides = [1, 1]} : vector<2x96xf32> to vector<2x32xf32>
    %202 = vector.extract_strided_slice %184 {offsets = [0, 64], sizes = [2, 32], strides = [1, 1]} : vector<2x96xf32> to vector<2x32xf32>
    %203 = vector.broadcast %26 : vector<1x32xf32> to vector<2x32xf32>
    %204 = arith.addf %202, %203 : vector<2x32xf32>
    %205 = arith.mulf %192, %204 : vector<2x32xf32>
    %206 = arith.addf %201, %205 : vector<2x32xf32>
    %207 = math.tanh %206 : vector<2x32xf32>
    %cst_36 = arith.constant 1.000000e+00 : f32
    %208 = vector.broadcast %cst_36 : f32 to vector<2x32xf32>
    %209 = arith.subf %208, %200 : vector<2x32xf32>
    %210 = arith.mulf %209, %207 : vector<2x32xf32>
    %211 = arith.mulf %200, %182 : vector<2x32xf32>
    %212 = arith.addf %210, %211 : vector<2x32xf32>
    %213 = vector.extract_strided_slice %30 {offsets = [12, 0], sizes = [2, 96], strides = [1, 1]} : vector<16x96xf32> to vector<2x96xf32>
    %cst_37 = arith.constant dense<0.000000e+00> : vector<2x96xf32>
    %214 = tpu.matmul %212, %18, %cst_37 {dimension_numbers = #tpu.dot_dimension_numbers<[1], [0], [0], [1], [0, 0, 1, 1], [], []>} : vector<2x32xf32>, vector<32x96xf32>, vector<2x96xf32> -> vector<2x96xf32>
    %215 = vector.extract_strided_slice %213 {offsets = [0, 0], sizes = [2, 32], strides = [1, 1]} : vector<2x96xf32> to vector<2x32xf32>
    %216 = vector.extract_strided_slice %214 {offsets = [0, 0], sizes = [2, 32], strides = [1, 1]} : vector<2x96xf32> to vector<2x32xf32>
    %217 = arith.addf %215, %216 : vector<2x32xf32>
    %218 = arith.negf %217 : vector<2x32xf32>
    %219 = math.exp %218 : vector<2x32xf32>
    %cst_38 = arith.constant 1.000000e+00 : f32
    %220 = vector.broadcast %cst_38 : f32 to vector<2x32xf32>
    %221 = arith.addf %220, %219 : vector<2x32xf32>
    %222 = arith.divf %220, %221 : vector<2x32xf32>
    %223 = vector.extract_strided_slice %213 {offsets = [0, 32], sizes = [2, 32], strides = [1, 1]} : vector<2x96xf32> to vector<2x32xf32>
    %224 = vector.extract_strided_slice %214 {offsets = [0, 32], sizes = [2, 32], strides = [1, 1]} : vector<2x96xf32> to vector<2x32xf32>
    %225 = arith.addf %223, %224 : vector<2x32xf32>
    %226 = arith.negf %225 : vector<2x32xf32>
    %227 = math.exp %226 : vector<2x32xf32>
    %cst_39 = arith.constant 1.000000e+00 : f32
    %228 = vector.broadcast %cst_39 : f32 to vector<2x32xf32>
    %229 = arith.addf %228, %227 : vector<2x32xf32>
    %230 = arith.divf %228, %229 : vector<2x32xf32>
    %231 = vector.extract_strided_slice %213 {offsets = [0, 64], sizes = [2, 32], strides = [1, 1]} : vector<2x96xf32> to vector<2x32xf32>
    %232 = vector.extract_strided_slice %214 {offsets = [0, 64], sizes = [2, 32], strides = [1, 1]} : vector<2x96xf32> to vector<2x32xf32>
    %233 = vector.broadcast %26 : vector<1x32xf32> to vector<2x32xf32>
    %234 = arith.addf %232, %233 : vector<2x32xf32>
    %235 = arith.mulf %222, %234 : vector<2x32xf32>
    %236 = arith.addf %231, %235 : vector<2x32xf32>
    %237 = math.tanh %236 : vector<2x32xf32>
    %cst_40 = arith.constant 1.000000e+00 : f32
    %238 = vector.broadcast %cst_40 : f32 to vector<2x32xf32>
    %239 = arith.subf %238, %230 : vector<2x32xf32>
    %240 = arith.mulf %239, %237 : vector<2x32xf32>
    %241 = arith.mulf %230, %212 : vector<2x32xf32>
    %242 = arith.addf %240, %241 : vector<2x32xf32>
    %243 = vector.extract_strided_slice %30 {offsets = [14, 0], sizes = [2, 96], strides = [1, 1]} : vector<16x96xf32> to vector<2x96xf32>
    %cst_41 = arith.constant dense<0.000000e+00> : vector<2x96xf32>
    %244 = tpu.matmul %242, %18, %cst_41 {dimension_numbers = #tpu.dot_dimension_numbers<[1], [0], [0], [1], [0, 0, 1, 1], [], []>} : vector<2x32xf32>, vector<32x96xf32>, vector<2x96xf32> -> vector<2x96xf32>
    %245 = vector.extract_strided_slice %243 {offsets = [0, 0], sizes = [2, 32], strides = [1, 1]} : vector<2x96xf32> to vector<2x32xf32>
    %246 = vector.extract_strided_slice %244 {offsets = [0, 0], sizes = [2, 32], strides = [1, 1]} : vector<2x96xf32> to vector<2x32xf32>
    %247 = arith.addf %245, %246 : vector<2x32xf32>
    %248 = arith.negf %247 : vector<2x32xf32>
    %249 = math.exp %248 : vector<2x32xf32>
    %cst_42 = arith.constant 1.000000e+00 : f32
    %250 = vector.broadcast %cst_42 : f32 to vector<2x32xf32>
    %251 = arith.addf %250, %249 : vector<2x32xf32>
    %252 = arith.divf %250, %251 : vector<2x32xf32>
    %253 = vector.extract_strided_slice %243 {offsets = [0, 32], sizes = [2, 32], strides = [1, 1]} : vector<2x96xf32> to vector<2x32xf32>
    %254 = vector.extract_strided_slice %244 {offsets = [0, 32], sizes = [2, 32], strides = [1, 1]} : vector<2x96xf32> to vector<2x32xf32>
    %255 = arith.addf %253, %254 : vector<2x32xf32>
    %256 = arith.negf %255 : vector<2x32xf32>
    %257 = math.exp %256 : vector<2x32xf32>
    %cst_43 = arith.constant 1.000000e+00 : f32
    %258 = vector.broadcast %cst_43 : f32 to vector<2x32xf32>
    %259 = arith.addf %258, %257 : vector<2x32xf32>
    %260 = arith.divf %258, %259 : vector<2x32xf32>
    %261 = vector.extract_strided_slice %243 {offsets = [0, 64], sizes = [2, 32], strides = [1, 1]} : vector<2x96xf32> to vector<2x32xf32>
    %262 = vector.extract_strided_slice %244 {offsets = [0, 64], sizes = [2, 32], strides = [1, 1]} : vector<2x96xf32> to vector<2x32xf32>
    %263 = vector.broadcast %26 : vector<1x32xf32> to vector<2x32xf32>
    %264 = arith.addf %262, %263 : vector<2x32xf32>
    %265 = arith.mulf %252, %264 : vector<2x32xf32>
    %266 = arith.addf %261, %265 : vector<2x32xf32>
    %267 = math.tanh %266 : vector<2x32xf32>
    %cst_44 = arith.constant 1.000000e+00 : f32
    %268 = vector.broadcast %cst_44 : f32 to vector<2x32xf32>
    %269 = arith.subf %268, %260 : vector<2x32xf32>
    %270 = arith.mulf %269, %267 : vector<2x32xf32>
    %271 = arith.mulf %260, %242 : vector<2x32xf32>
    %272 = arith.addf %270, %271 : vector<2x32xf32>
    %c0_45 = arith.constant 0 : index
    %c0_46 = arith.constant 0 : index
    %273 = vector.load %arg8[%c0_45, %c0_46] : memref<32x96xf32, #tpu.memory_space<vmem>>, vector<32x96xf32>
    %c0_47 = arith.constant 0 : index
    %c0_48 = arith.constant 0 : index
    %274 = vector.load %arg9[%c0_47, %c0_48] : memref<32x96xf32, #tpu.memory_space<vmem>>, vector<32x96xf32>
    %c0_49 = arith.constant 0 : index
    %c0_50 = arith.constant 0 : index
    %275 = vector.load %arg10[%c0_49, %c0_50] : memref<1x96xf32, #tpu.memory_space<vmem>>, vector<1x96xf32>
    %c0_51 = arith.constant 0 : index
    %c0_52 = arith.constant 0 : index
    %276 = vector.load %arg11[%c0_51, %c0_52] : memref<1x96xf32, #tpu.memory_space<vmem>>, vector<1x96xf32>
    %277 = vector.extract_strided_slice %275 {offsets = [0, 0], sizes = [1, 64], strides = [1, 1]} : vector<1x96xf32> to vector<1x64xf32>
    %278 = vector.extract_strided_slice %276 {offsets = [0, 0], sizes = [1, 64], strides = [1, 1]} : vector<1x96xf32> to vector<1x64xf32>
    %279 = arith.addf %277, %278 : vector<1x64xf32>
    %280 = vector.extract_strided_slice %275 {offsets = [0, 64], sizes = [1, 32], strides = [1, 1]} : vector<1x96xf32> to vector<1x32xf32>
    %281 = tpu.concatenate %279, %280 in 1 : vector<1x64xf32>, vector<1x32xf32> -> vector<1x96xf32>
    %282 = vector.extract_strided_slice %276 {offsets = [0, 64], sizes = [1, 32], strides = [1, 1]} : vector<1x96xf32> to vector<1x32xf32>
    %283 = tpu.concatenate %62, %92, %122, %152, %182, %212, %242, %272 in 0 : vector<2x32xf32>, vector<2x32xf32>, vector<2x32xf32>, vector<2x32xf32>, vector<2x32xf32>, vector<2x32xf32>, vector<2x32xf32>, vector<2x32xf32> -> vector<16x32xf32>
    %cst_53 = arith.constant dense<0.000000e+00> : vector<16x96xf32>
    %284 = tpu.matmul %283, %273, %cst_53 {dimension_numbers = #tpu.dot_dimension_numbers<[1], [0], [0], [1], [0, 0, 1, 1], [], []>} : vector<16x32xf32>, vector<32x96xf32>, vector<16x96xf32> -> vector<16x96xf32>
    %285 = vector.broadcast %281 : vector<1x96xf32> to vector<16x96xf32>
    %286 = arith.addf %284, %285 : vector<16x96xf32>
    %c1 = arith.constant 1 : index
    %c0_54 = arith.constant 0 : index
    %c0_55 = arith.constant 0 : index
    %287 = vector.load %arg3[%c1, %c0_54, %c0_55] : memref<2x2x32xf32, #tpu.memory_space<vmem>>, vector<1x2x32xf32>
    %288 = vector.shape_cast %287 : vector<1x2x32xf32> to vector<2x32xf32>
    %289 = vector.extract_strided_slice %286 {offsets = [0, 0], sizes = [2, 96], strides = [1, 1]} : vector<16x96xf32> to vector<2x96xf32>
    %cst_56 = arith.constant dense<0.000000e+00> : vector<2x96xf32>
    %290 = tpu.matmul %288, %274, %cst_56 {dimension_numbers = #tpu.dot_dimension_numbers<[1], [0], [0], [1], [0, 0, 1, 1], [], []>} : vector<2x32xf32>, vector<32x96xf32>, vector<2x96xf32> -> vector<2x96xf32>
    %291 = vector.extract_strided_slice %289 {offsets = [0, 0], sizes = [2, 32], strides = [1, 1]} : vector<2x96xf32> to vector<2x32xf32>
    %292 = vector.extract_strided_slice %290 {offsets = [0, 0], sizes = [2, 32], strides = [1, 1]} : vector<2x96xf32> to vector<2x32xf32>
    %293 = arith.addf %291, %292 : vector<2x32xf32>
    %294 = arith.negf %293 : vector<2x32xf32>
    %295 = math.exp %294 : vector<2x32xf32>
    %cst_57 = arith.constant 1.000000e+00 : f32
    %296 = vector.broadcast %cst_57 : f32 to vector<2x32xf32>
    %297 = arith.addf %296, %295 : vector<2x32xf32>
    %298 = arith.divf %296, %297 : vector<2x32xf32>
    %299 = vector.extract_strided_slice %289 {offsets = [0, 32], sizes = [2, 32], strides = [1, 1]} : vector<2x96xf32> to vector<2x32xf32>
    %300 = vector.extract_strided_slice %290 {offsets = [0, 32], sizes = [2, 32], strides = [1, 1]} : vector<2x96xf32> to vector<2x32xf32>
    %301 = arith.addf %299, %300 : vector<2x32xf32>
    %302 = arith.negf %301 : vector<2x32xf32>
    %303 = math.exp %302 : vector<2x32xf32>
    %cst_58 = arith.constant 1.000000e+00 : f32
    %304 = vector.broadcast %cst_58 : f32 to vector<2x32xf32>
    %305 = arith.addf %304, %303 : vector<2x32xf32>
    %306 = arith.divf %304, %305 : vector<2x32xf32>
    %307 = vector.extract_strided_slice %289 {offsets = [0, 64], sizes = [2, 32], strides = [1, 1]} : vector<2x96xf32> to vector<2x32xf32>
    %308 = vector.extract_strided_slice %290 {offsets = [0, 64], sizes = [2, 32], strides = [1, 1]} : vector<2x96xf32> to vector<2x32xf32>
    %309 = vector.broadcast %282 : vector<1x32xf32> to vector<2x32xf32>
    %310 = arith.addf %308, %309 : vector<2x32xf32>
    %311 = arith.mulf %298, %310 : vector<2x32xf32>
    %312 = arith.addf %307, %311 : vector<2x32xf32>
    %313 = math.tanh %312 : vector<2x32xf32>
    %cst_59 = arith.constant 1.000000e+00 : f32
    %314 = vector.broadcast %cst_59 : f32 to vector<2x32xf32>
    %315 = arith.subf %314, %306 : vector<2x32xf32>
    %316 = arith.mulf %315, %313 : vector<2x32xf32>
    %317 = arith.mulf %306, %288 : vector<2x32xf32>
    %318 = arith.addf %316, %317 : vector<2x32xf32>
    %319 = vector.extract_strided_slice %286 {offsets = [2, 0], sizes = [2, 96], strides = [1, 1]} : vector<16x96xf32> to vector<2x96xf32>
    %cst_60 = arith.constant dense<0.000000e+00> : vector<2x96xf32>
    %320 = tpu.matmul %318, %274, %cst_60 {dimension_numbers = #tpu.dot_dimension_numbers<[1], [0], [0], [1], [0, 0, 1, 1], [], []>} : vector<2x32xf32>, vector<32x96xf32>, vector<2x96xf32> -> vector<2x96xf32>
    %321 = vector.extract_strided_slice %319 {offsets = [0, 0], sizes = [2, 32], strides = [1, 1]} : vector<2x96xf32> to vector<2x32xf32>
    %322 = vector.extract_strided_slice %320 {offsets = [0, 0], sizes = [2, 32], strides = [1, 1]} : vector<2x96xf32> to vector<2x32xf32>
    %323 = arith.addf %321, %322 : vector<2x32xf32>
    %324 = arith.negf %323 : vector<2x32xf32>
    %325 = math.exp %324 : vector<2x32xf32>
    %cst_61 = arith.constant 1.000000e+00 : f32
    %326 = vector.broadcast %cst_61 : f32 to vector<2x32xf32>
    %327 = arith.addf %326, %325 : vector<2x32xf32>
    %328 = arith.divf %326, %327 : vector<2x32xf32>
    %329 = vector.extract_strided_slice %319 {offsets = [0, 32], sizes = [2, 32], strides = [1, 1]} : vector<2x96xf32> to vector<2x32xf32>
    %330 = vector.extract_strided_slice %320 {offsets = [0, 32], sizes = [2, 32], strides = [1, 1]} : vector<2x96xf32> to vector<2x32xf32>
    %331 = arith.addf %329, %330 : vector<2x32xf32>
    %332 = arith.negf %331 : vector<2x32xf32>
    %333 = math.exp %332 : vector<2x32xf32>
    %cst_62 = arith.constant 1.000000e+00 : f32
    %334 = vector.broadcast %cst_62 : f32 to vector<2x32xf32>
    %335 = arith.addf %334, %333 : vector<2x32xf32>
    %336 = arith.divf %334, %335 : vector<2x32xf32>
    %337 = vector.extract_strided_slice %319 {offsets = [0, 64], sizes = [2, 32], strides = [1, 1]} : vector<2x96xf32> to vector<2x32xf32>
    %338 = vector.extract_strided_slice %320 {offsets = [0, 64], sizes = [2, 32], strides = [1, 1]} : vector<2x96xf32> to vector<2x32xf32>
    %339 = vector.broadcast %282 : vector<1x32xf32> to vector<2x32xf32>
    %340 = arith.addf %338, %339 : vector<2x32xf32>
    %341 = arith.mulf %328, %340 : vector<2x32xf32>
    %342 = arith.addf %337, %341 : vector<2x32xf32>
    %343 = math.tanh %342 : vector<2x32xf32>
    %cst_63 = arith.constant 1.000000e+00 : f32
    %344 = vector.broadcast %cst_63 : f32 to vector<2x32xf32>
    %345 = arith.subf %344, %336 : vector<2x32xf32>
    %346 = arith.mulf %345, %343 : vector<2x32xf32>
    %347 = arith.mulf %336, %318 : vector<2x32xf32>
    %348 = arith.addf %346, %347 : vector<2x32xf32>
    %349 = vector.extract_strided_slice %286 {offsets = [4, 0], sizes = [2, 96], strides = [1, 1]} : vector<16x96xf32> to vector<2x96xf32>
    %cst_64 = arith.constant dense<0.000000e+00> : vector<2x96xf32>
    %350 = tpu.matmul %348, %274, %cst_64 {dimension_numbers = #tpu.dot_dimension_numbers<[1], [0], [0], [1], [0, 0, 1, 1], [], []>} : vector<2x32xf32>, vector<32x96xf32>, vector<2x96xf32> -> vector<2x96xf32>
    %351 = vector.extract_strided_slice %349 {offsets = [0, 0], sizes = [2, 32], strides = [1, 1]} : vector<2x96xf32> to vector<2x32xf32>
    %352 = vector.extract_strided_slice %350 {offsets = [0, 0], sizes = [2, 32], strides = [1, 1]} : vector<2x96xf32> to vector<2x32xf32>
    %353 = arith.addf %351, %352 : vector<2x32xf32>
    %354 = arith.negf %353 : vector<2x32xf32>
    %355 = math.exp %354 : vector<2x32xf32>
    %cst_65 = arith.constant 1.000000e+00 : f32
    %356 = vector.broadcast %cst_65 : f32 to vector<2x32xf32>
    %357 = arith.addf %356, %355 : vector<2x32xf32>
    %358 = arith.divf %356, %357 : vector<2x32xf32>
    %359 = vector.extract_strided_slice %349 {offsets = [0, 32], sizes = [2, 32], strides = [1, 1]} : vector<2x96xf32> to vector<2x32xf32>
    %360 = vector.extract_strided_slice %350 {offsets = [0, 32], sizes = [2, 32], strides = [1, 1]} : vector<2x96xf32> to vector<2x32xf32>
    %361 = arith.addf %359, %360 : vector<2x32xf32>
    %362 = arith.negf %361 : vector<2x32xf32>
    %363 = math.exp %362 : vector<2x32xf32>
    %cst_66 = arith.constant 1.000000e+00 : f32
    %364 = vector.broadcast %cst_66 : f32 to vector<2x32xf32>
    %365 = arith.addf %364, %363 : vector<2x32xf32>
    %366 = arith.divf %364, %365 : vector<2x32xf32>
    %367 = vector.extract_strided_slice %349 {offsets = [0, 64], sizes = [2, 32], strides = [1, 1]} : vector<2x96xf32> to vector<2x32xf32>
    %368 = vector.extract_strided_slice %350 {offsets = [0, 64], sizes = [2, 32], strides = [1, 1]} : vector<2x96xf32> to vector<2x32xf32>
    %369 = vector.broadcast %282 : vector<1x32xf32> to vector<2x32xf32>
    %370 = arith.addf %368, %369 : vector<2x32xf32>
    %371 = arith.mulf %358, %370 : vector<2x32xf32>
    %372 = arith.addf %367, %371 : vector<2x32xf32>
    %373 = math.tanh %372 : vector<2x32xf32>
    %cst_67 = arith.constant 1.000000e+00 : f32
    %374 = vector.broadcast %cst_67 : f32 to vector<2x32xf32>
    %375 = arith.subf %374, %366 : vector<2x32xf32>
    %376 = arith.mulf %375, %373 : vector<2x32xf32>
    %377 = arith.mulf %366, %348 : vector<2x32xf32>
    %378 = arith.addf %376, %377 : vector<2x32xf32>
    %379 = vector.extract_strided_slice %286 {offsets = [6, 0], sizes = [2, 96], strides = [1, 1]} : vector<16x96xf32> to vector<2x96xf32>
    %cst_68 = arith.constant dense<0.000000e+00> : vector<2x96xf32>
    %380 = tpu.matmul %378, %274, %cst_68 {dimension_numbers = #tpu.dot_dimension_numbers<[1], [0], [0], [1], [0, 0, 1, 1], [], []>} : vector<2x32xf32>, vector<32x96xf32>, vector<2x96xf32> -> vector<2x96xf32>
    %381 = vector.extract_strided_slice %379 {offsets = [0, 0], sizes = [2, 32], strides = [1, 1]} : vector<2x96xf32> to vector<2x32xf32>
    %382 = vector.extract_strided_slice %380 {offsets = [0, 0], sizes = [2, 32], strides = [1, 1]} : vector<2x96xf32> to vector<2x32xf32>
    %383 = arith.addf %381, %382 : vector<2x32xf32>
    %384 = arith.negf %383 : vector<2x32xf32>
    %385 = math.exp %384 : vector<2x32xf32>
    %cst_69 = arith.constant 1.000000e+00 : f32
    %386 = vector.broadcast %cst_69 : f32 to vector<2x32xf32>
    %387 = arith.addf %386, %385 : vector<2x32xf32>
    %388 = arith.divf %386, %387 : vector<2x32xf32>
    %389 = vector.extract_strided_slice %379 {offsets = [0, 32], sizes = [2, 32], strides = [1, 1]} : vector<2x96xf32> to vector<2x32xf32>
    %390 = vector.extract_strided_slice %380 {offsets = [0, 32], sizes = [2, 32], strides = [1, 1]} : vector<2x96xf32> to vector<2x32xf32>
    %391 = arith.addf %389, %390 : vector<2x32xf32>
    %392 = arith.negf %391 : vector<2x32xf32>
    %393 = math.exp %392 : vector<2x32xf32>
    %cst_70 = arith.constant 1.000000e+00 : f32
    %394 = vector.broadcast %cst_70 : f32 to vector<2x32xf32>
    %395 = arith.addf %394, %393 : vector<2x32xf32>
    %396 = arith.divf %394, %395 : vector<2x32xf32>
    %397 = vector.extract_strided_slice %379 {offsets = [0, 64], sizes = [2, 32], strides = [1, 1]} : vector<2x96xf32> to vector<2x32xf32>
    %398 = vector.extract_strided_slice %380 {offsets = [0, 64], sizes = [2, 32], strides = [1, 1]} : vector<2x96xf32> to vector<2x32xf32>
    %399 = vector.broadcast %282 : vector<1x32xf32> to vector<2x32xf32>
    %400 = arith.addf %398, %399 : vector<2x32xf32>
    %401 = arith.mulf %388, %400 : vector<2x32xf32>
    %402 = arith.addf %397, %401 : vector<2x32xf32>
    %403 = math.tanh %402 : vector<2x32xf32>
    %cst_71 = arith.constant 1.000000e+00 : f32
    %404 = vector.broadcast %cst_71 : f32 to vector<2x32xf32>
    %405 = arith.subf %404, %396 : vector<2x32xf32>
    %406 = arith.mulf %405, %403 : vector<2x32xf32>
    %407 = arith.mulf %396, %378 : vector<2x32xf32>
    %408 = arith.addf %406, %407 : vector<2x32xf32>
    %409 = vector.extract_strided_slice %286 {offsets = [8, 0], sizes = [2, 96], strides = [1, 1]} : vector<16x96xf32> to vector<2x96xf32>
    %cst_72 = arith.constant dense<0.000000e+00> : vector<2x96xf32>
    %410 = tpu.matmul %408, %274, %cst_72 {dimension_numbers = #tpu.dot_dimension_numbers<[1], [0], [0], [1], [0, 0, 1, 1], [], []>} : vector<2x32xf32>, vector<32x96xf32>, vector<2x96xf32> -> vector<2x96xf32>
    %411 = vector.extract_strided_slice %409 {offsets = [0, 0], sizes = [2, 32], strides = [1, 1]} : vector<2x96xf32> to vector<2x32xf32>
    %412 = vector.extract_strided_slice %410 {offsets = [0, 0], sizes = [2, 32], strides = [1, 1]} : vector<2x96xf32> to vector<2x32xf32>
    %413 = arith.addf %411, %412 : vector<2x32xf32>
    %414 = arith.negf %413 : vector<2x32xf32>
    %415 = math.exp %414 : vector<2x32xf32>
    %cst_73 = arith.constant 1.000000e+00 : f32
    %416 = vector.broadcast %cst_73 : f32 to vector<2x32xf32>
    %417 = arith.addf %416, %415 : vector<2x32xf32>
    %418 = arith.divf %416, %417 : vector<2x32xf32>
    %419 = vector.extract_strided_slice %409 {offsets = [0, 32], sizes = [2, 32], strides = [1, 1]} : vector<2x96xf32> to vector<2x32xf32>
    %420 = vector.extract_strided_slice %410 {offsets = [0, 32], sizes = [2, 32], strides = [1, 1]} : vector<2x96xf32> to vector<2x32xf32>
    %421 = arith.addf %419, %420 : vector<2x32xf32>
    %422 = arith.negf %421 : vector<2x32xf32>
    %423 = math.exp %422 : vector<2x32xf32>
    %cst_74 = arith.constant 1.000000e+00 : f32
    %424 = vector.broadcast %cst_74 : f32 to vector<2x32xf32>
    %425 = arith.addf %424, %423 : vector<2x32xf32>
    %426 = arith.divf %424, %425 : vector<2x32xf32>
    %427 = vector.extract_strided_slice %409 {offsets = [0, 64], sizes = [2, 32], strides = [1, 1]} : vector<2x96xf32> to vector<2x32xf32>
    %428 = vector.extract_strided_slice %410 {offsets = [0, 64], sizes = [2, 32], strides = [1, 1]} : vector<2x96xf32> to vector<2x32xf32>
    %429 = vector.broadcast %282 : vector<1x32xf32> to vector<2x32xf32>
    %430 = arith.addf %428, %429 : vector<2x32xf32>
    %431 = arith.mulf %418, %430 : vector<2x32xf32>
    %432 = arith.addf %427, %431 : vector<2x32xf32>
    %433 = math.tanh %432 : vector<2x32xf32>
    %cst_75 = arith.constant 1.000000e+00 : f32
    %434 = vector.broadcast %cst_75 : f32 to vector<2x32xf32>
    %435 = arith.subf %434, %426 : vector<2x32xf32>
    %436 = arith.mulf %435, %433 : vector<2x32xf32>
    %437 = arith.mulf %426, %408 : vector<2x32xf32>
    %438 = arith.addf %436, %437 : vector<2x32xf32>
    %439 = vector.extract_strided_slice %286 {offsets = [10, 0], sizes = [2, 96], strides = [1, 1]} : vector<16x96xf32> to vector<2x96xf32>
    %cst_76 = arith.constant dense<0.000000e+00> : vector<2x96xf32>
    %440 = tpu.matmul %438, %274, %cst_76 {dimension_numbers = #tpu.dot_dimension_numbers<[1], [0], [0], [1], [0, 0, 1, 1], [], []>} : vector<2x32xf32>, vector<32x96xf32>, vector<2x96xf32> -> vector<2x96xf32>
    %441 = vector.extract_strided_slice %439 {offsets = [0, 0], sizes = [2, 32], strides = [1, 1]} : vector<2x96xf32> to vector<2x32xf32>
    %442 = vector.extract_strided_slice %440 {offsets = [0, 0], sizes = [2, 32], strides = [1, 1]} : vector<2x96xf32> to vector<2x32xf32>
    %443 = arith.addf %441, %442 : vector<2x32xf32>
    %444 = arith.negf %443 : vector<2x32xf32>
    %445 = math.exp %444 : vector<2x32xf32>
    %cst_77 = arith.constant 1.000000e+00 : f32
    %446 = vector.broadcast %cst_77 : f32 to vector<2x32xf32>
    %447 = arith.addf %446, %445 : vector<2x32xf32>
    %448 = arith.divf %446, %447 : vector<2x32xf32>
    %449 = vector.extract_strided_slice %439 {offsets = [0, 32], sizes = [2, 32], strides = [1, 1]} : vector<2x96xf32> to vector<2x32xf32>
    %450 = vector.extract_strided_slice %440 {offsets = [0, 32], sizes = [2, 32], strides = [1, 1]} : vector<2x96xf32> to vector<2x32xf32>
    %451 = arith.addf %449, %450 : vector<2x32xf32>
    %452 = arith.negf %451 : vector<2x32xf32>
    %453 = math.exp %452 : vector<2x32xf32>
    %cst_78 = arith.constant 1.000000e+00 : f32
    %454 = vector.broadcast %cst_78 : f32 to vector<2x32xf32>
    %455 = arith.addf %454, %453 : vector<2x32xf32>
    %456 = arith.divf %454, %455 : vector<2x32xf32>
    %457 = vector.extract_strided_slice %439 {offsets = [0, 64], sizes = [2, 32], strides = [1, 1]} : vector<2x96xf32> to vector<2x32xf32>
    %458 = vector.extract_strided_slice %440 {offsets = [0, 64], sizes = [2, 32], strides = [1, 1]} : vector<2x96xf32> to vector<2x32xf32>
    %459 = vector.broadcast %282 : vector<1x32xf32> to vector<2x32xf32>
    %460 = arith.addf %458, %459 : vector<2x32xf32>
    %461 = arith.mulf %448, %460 : vector<2x32xf32>
    %462 = arith.addf %457, %461 : vector<2x32xf32>
    %463 = math.tanh %462 : vector<2x32xf32>
    %cst_79 = arith.constant 1.000000e+00 : f32
    %464 = vector.broadcast %cst_79 : f32 to vector<2x32xf32>
    %465 = arith.subf %464, %456 : vector<2x32xf32>
    %466 = arith.mulf %465, %463 : vector<2x32xf32>
    %467 = arith.mulf %456, %438 : vector<2x32xf32>
    %468 = arith.addf %466, %467 : vector<2x32xf32>
    %469 = vector.extract_strided_slice %286 {offsets = [12, 0], sizes = [2, 96], strides = [1, 1]} : vector<16x96xf32> to vector<2x96xf32>
    %cst_80 = arith.constant dense<0.000000e+00> : vector<2x96xf32>
    %470 = tpu.matmul %468, %274, %cst_80 {dimension_numbers = #tpu.dot_dimension_numbers<[1], [0], [0], [1], [0, 0, 1, 1], [], []>} : vector<2x32xf32>, vector<32x96xf32>, vector<2x96xf32> -> vector<2x96xf32>
    %471 = vector.extract_strided_slice %469 {offsets = [0, 0], sizes = [2, 32], strides = [1, 1]} : vector<2x96xf32> to vector<2x32xf32>
    %472 = vector.extract_strided_slice %470 {offsets = [0, 0], sizes = [2, 32], strides = [1, 1]} : vector<2x96xf32> to vector<2x32xf32>
    %473 = arith.addf %471, %472 : vector<2x32xf32>
    %474 = arith.negf %473 : vector<2x32xf32>
    %475 = math.exp %474 : vector<2x32xf32>
    %cst_81 = arith.constant 1.000000e+00 : f32
    %476 = vector.broadcast %cst_81 : f32 to vector<2x32xf32>
    %477 = arith.addf %476, %475 : vector<2x32xf32>
    %478 = arith.divf %476, %477 : vector<2x32xf32>
    %479 = vector.extract_strided_slice %469 {offsets = [0, 32], sizes = [2, 32], strides = [1, 1]} : vector<2x96xf32> to vector<2x32xf32>
    %480 = vector.extract_strided_slice %470 {offsets = [0, 32], sizes = [2, 32], strides = [1, 1]} : vector<2x96xf32> to vector<2x32xf32>
    %481 = arith.addf %479, %480 : vector<2x32xf32>
    %482 = arith.negf %481 : vector<2x32xf32>
    %483 = math.exp %482 : vector<2x32xf32>
    %cst_82 = arith.constant 1.000000e+00 : f32
    %484 = vector.broadcast %cst_82 : f32 to vector<2x32xf32>
    %485 = arith.addf %484, %483 : vector<2x32xf32>
    %486 = arith.divf %484, %485 : vector<2x32xf32>
    %487 = vector.extract_strided_slice %469 {offsets = [0, 64], sizes = [2, 32], strides = [1, 1]} : vector<2x96xf32> to vector<2x32xf32>
    %488 = vector.extract_strided_slice %470 {offsets = [0, 64], sizes = [2, 32], strides = [1, 1]} : vector<2x96xf32> to vector<2x32xf32>
    %489 = vector.broadcast %282 : vector<1x32xf32> to vector<2x32xf32>
    %490 = arith.addf %488, %489 : vector<2x32xf32>
    %491 = arith.mulf %478, %490 : vector<2x32xf32>
    %492 = arith.addf %487, %491 : vector<2x32xf32>
    %493 = math.tanh %492 : vector<2x32xf32>
    %cst_83 = arith.constant 1.000000e+00 : f32
    %494 = vector.broadcast %cst_83 : f32 to vector<2x32xf32>
    %495 = arith.subf %494, %486 : vector<2x32xf32>
    %496 = arith.mulf %495, %493 : vector<2x32xf32>
    %497 = arith.mulf %486, %468 : vector<2x32xf32>
    %498 = arith.addf %496, %497 : vector<2x32xf32>
    %499 = vector.extract_strided_slice %286 {offsets = [14, 0], sizes = [2, 96], strides = [1, 1]} : vector<16x96xf32> to vector<2x96xf32>
    %cst_84 = arith.constant dense<0.000000e+00> : vector<2x96xf32>
    %500 = tpu.matmul %498, %274, %cst_84 {dimension_numbers = #tpu.dot_dimension_numbers<[1], [0], [0], [1], [0, 0, 1, 1], [], []>} : vector<2x32xf32>, vector<32x96xf32>, vector<2x96xf32> -> vector<2x96xf32>
    %501 = vector.extract_strided_slice %499 {offsets = [0, 0], sizes = [2, 32], strides = [1, 1]} : vector<2x96xf32> to vector<2x32xf32>
    %502 = vector.extract_strided_slice %500 {offsets = [0, 0], sizes = [2, 32], strides = [1, 1]} : vector<2x96xf32> to vector<2x32xf32>
    %503 = arith.addf %501, %502 : vector<2x32xf32>
    %504 = arith.negf %503 : vector<2x32xf32>
    %505 = math.exp %504 : vector<2x32xf32>
    %cst_85 = arith.constant 1.000000e+00 : f32
    %506 = vector.broadcast %cst_85 : f32 to vector<2x32xf32>
    %507 = arith.addf %506, %505 : vector<2x32xf32>
    %508 = arith.divf %506, %507 : vector<2x32xf32>
    %509 = vector.extract_strided_slice %499 {offsets = [0, 32], sizes = [2, 32], strides = [1, 1]} : vector<2x96xf32> to vector<2x32xf32>
    %510 = vector.extract_strided_slice %500 {offsets = [0, 32], sizes = [2, 32], strides = [1, 1]} : vector<2x96xf32> to vector<2x32xf32>
    %511 = arith.addf %509, %510 : vector<2x32xf32>
    %512 = arith.negf %511 : vector<2x32xf32>
    %513 = math.exp %512 : vector<2x32xf32>
    %cst_86 = arith.constant 1.000000e+00 : f32
    %514 = vector.broadcast %cst_86 : f32 to vector<2x32xf32>
    %515 = arith.addf %514, %513 : vector<2x32xf32>
    %516 = arith.divf %514, %515 : vector<2x32xf32>
    %517 = vector.extract_strided_slice %499 {offsets = [0, 64], sizes = [2, 32], strides = [1, 1]} : vector<2x96xf32> to vector<2x32xf32>
    %518 = vector.extract_strided_slice %500 {offsets = [0, 64], sizes = [2, 32], strides = [1, 1]} : vector<2x96xf32> to vector<2x32xf32>
    %519 = vector.broadcast %282 : vector<1x32xf32> to vector<2x32xf32>
    %520 = arith.addf %518, %519 : vector<2x32xf32>
    %521 = arith.mulf %508, %520 : vector<2x32xf32>
    %522 = arith.addf %517, %521 : vector<2x32xf32>
    %523 = math.tanh %522 : vector<2x32xf32>
    %cst_87 = arith.constant 1.000000e+00 : f32
    %524 = vector.broadcast %cst_87 : f32 to vector<2x32xf32>
    %525 = arith.subf %524, %516 : vector<2x32xf32>
    %526 = arith.mulf %525, %523 : vector<2x32xf32>
    %527 = arith.mulf %516, %498 : vector<2x32xf32>
    %528 = arith.addf %526, %527 : vector<2x32xf32>
    %529 = tpu.concatenate %318, %348, %378, %408, %438, %468, %498, %528 in 1 : vector<2x32xf32>, vector<2x32xf32>, vector<2x32xf32>, vector<2x32xf32>, vector<2x32xf32>, vector<2x32xf32>, vector<2x32xf32>, vector<2x32xf32> -> vector<2x256xf32>
    %c0_88 = arith.constant 0 : index
    %c0_89 = arith.constant 0 : index
    %530 = vector.load %arg2[%c0_88, %c0_89] : memref<2x8xf32, #tpu.memory_space<vmem>>, vector<2x8xf32>
    %c0_90 = arith.constant 0 : index
    %c0_91 = arith.constant 0 : index
    %531 = vector.load %arg12[%c0_90, %c0_91] : memref<264x64xf32, #tpu.memory_space<vmem>>, vector<264x64xf32>
    %c0_92 = arith.constant 0 : index
    %c0_93 = arith.constant 0 : index
    %532 = vector.load %arg13[%c0_92, %c0_93] : memref<1x64xf32, #tpu.memory_space<vmem>>, vector<1x64xf32>
    %533 = vector.extract_strided_slice %531 {offsets = [0, 0], sizes = [8, 64], strides = [1, 1]} : vector<264x64xf32> to vector<8x64xf32>
    %cst_94 = arith.constant dense<0.000000e+00> : vector<2x64xf32>
    %534 = tpu.matmul %530, %533, %cst_94 {dimension_numbers = #tpu.dot_dimension_numbers<[1], [0], [0], [1], [0, 0, 1, 1], [], []>} : vector<2x8xf32>, vector<8x64xf32>, vector<2x64xf32> -> vector<2x64xf32>
    %535 = vector.extract_strided_slice %531 {offsets = [8, 0], sizes = [256, 64], strides = [1, 1]} : vector<264x64xf32> to vector<256x64xf32>
    %cst_95 = arith.constant dense<0.000000e+00> : vector<2x64xf32>
    %536 = tpu.matmul %529, %535, %cst_95 {dimension_numbers = #tpu.dot_dimension_numbers<[1], [0], [0], [1], [0, 0, 1, 1], [], []>} : vector<2x256xf32>, vector<256x64xf32>, vector<2x64xf32> -> vector<2x64xf32>
    %537 = arith.addf %534, %536 : vector<2x64xf32>
    %538 = vector.broadcast %532 : vector<1x64xf32> to vector<2x64xf32>
    %539 = arith.addf %537, %538 : vector<2x64xf32>
    %c0_96 = arith.constant 0 : index
    %c0_97 = arith.constant 0 : index
    %540 = vector.load %arg14[%c0_96, %c0_97] : memref<1x64xf32, #tpu.memory_space<vmem>>, vector<1x64xf32>
    %c0_98 = arith.constant 0 : index
    %c0_99 = arith.constant 0 : index
    %541 = vector.load %arg15[%c0_98, %c0_99] : memref<1x64xf32, #tpu.memory_space<vmem>>, vector<1x64xf32>
    %cst_100 = arith.constant dense<0.000000e+00> : vector<2xf32>
    %542 = vector.multi_reduction <add>, %539, %cst_100 [1] : vector<2x64xf32> to vector<2xf32>
    %543 = vector.shape_cast %542 : vector<2xf32> to vector<2x1xf32>
    %cst_101 = arith.constant 6.400000e+01 : f32
    %544 = vector.broadcast %cst_101 : f32 to vector<2x1xf32>
    %545 = arith.divf %543, %544 : vector<2x1xf32>
    %546 = vector.broadcast %545 : vector<2x1xf32> to vector<2x64xf32>
    %547 = arith.subf %539, %546 : vector<2x64xf32>
    %548 = arith.mulf %547, %547 : vector<2x64xf32>
    %cst_102 = arith.constant dense<0.000000e+00> : vector<2xf32>
    %549 = vector.multi_reduction <add>, %548, %cst_102 [1] : vector<2x64xf32> to vector<2xf32>
    %550 = vector.shape_cast %549 : vector<2xf32> to vector<2x1xf32>
    %cst_103 = arith.constant 6.400000e+01 : f32
    %551 = vector.broadcast %cst_103 : f32 to vector<2x1xf32>
    %552 = arith.divf %550, %551 : vector<2x1xf32>
    %553 = vector.broadcast %545 : vector<2x1xf32> to vector<2x64xf32>
    %554 = arith.subf %539, %553 : vector<2x64xf32>
    %cst_104 = arith.constant 9.99999974E-6 : f32
    %555 = vector.broadcast %cst_104 : f32 to vector<2x1xf32>
    %556 = arith.addf %552, %555 : vector<2x1xf32>
    %557 = math.rsqrt %556 : vector<2x1xf32>
    %558 = vector.broadcast %557 : vector<2x1xf32> to vector<2x64xf32>
    %559 = arith.mulf %554, %558 : vector<2x64xf32>
    %560 = vector.broadcast %540 : vector<1x64xf32> to vector<2x64xf32>
    %561 = arith.mulf %559, %560 : vector<2x64xf32>
    %562 = vector.broadcast %541 : vector<1x64xf32> to vector<2x64xf32>
    %563 = arith.addf %561, %562 : vector<2x64xf32>
    %cst_105 = arith.constant 5.000000e-01 : f32
    %564 = vector.broadcast %cst_105 : f32 to vector<2x64xf32>
    %565 = arith.mulf %564, %563 : vector<2x64xf32>
    %cst_106 = arith.constant 0.707106769 : f32
    %566 = vector.broadcast %cst_106 : f32 to vector<2x64xf32>
    %567 = arith.mulf %563, %566 : vector<2x64xf32>
    %568 = math.erf %567 : vector<2x64xf32>
    %cst_107 = arith.constant 1.000000e+00 : f32
    %569 = vector.broadcast %cst_107 : f32 to vector<2x64xf32>
    %570 = arith.addf %569, %568 : vector<2x64xf32>
    %571 = arith.mulf %565, %570 : vector<2x64xf32>
    %c0_108 = arith.constant 0 : index
    %c0_109 = arith.constant 0 : index
    %572 = vector.load %arg16[%c0_108, %c0_109] : memref<64x32xf32, #tpu.memory_space<vmem>>, vector<64x32xf32>
    %c0_110 = arith.constant 0 : index
    %c0_111 = arith.constant 0 : index
    %573 = vector.load %arg17[%c0_110, %c0_111] : memref<1x32xf32, #tpu.memory_space<vmem>>, vector<1x32xf32>
    %cst_112 = arith.constant dense<0.000000e+00> : vector<2x32xf32>
    %574 = tpu.matmul %571, %572, %cst_112 {dimension_numbers = #tpu.dot_dimension_numbers<[1], [0], [0], [1], [0, 0, 1, 1], [], []>} : vector<2x64xf32>, vector<64x32xf32>, vector<2x32xf32> -> vector<2x32xf32>
    %575 = vector.broadcast %573 : vector<1x32xf32> to vector<2x32xf32>
    %576 = arith.addf %574, %575 : vector<2x32xf32>
    %c0_113 = arith.constant 0 : index
    %c0_114 = arith.constant 0 : index
    %577 = vector.load %arg18[%c0_113, %c0_114] : memref<1x32xf32, #tpu.memory_space<vmem>>, vector<1x32xf32>
    %c0_115 = arith.constant 0 : index
    %c0_116 = arith.constant 0 : index
    %578 = vector.load %arg19[%c0_115, %c0_116] : memref<1x32xf32, #tpu.memory_space<vmem>>, vector<1x32xf32>
    %cst_117 = arith.constant dense<0.000000e+00> : vector<2xf32>
    %579 = vector.multi_reduction <add>, %576, %cst_117 [1] : vector<2x32xf32> to vector<2xf32>
    %580 = vector.shape_cast %579 : vector<2xf32> to vector<2x1xf32>
    %cst_118 = arith.constant 3.200000e+01 : f32
    %581 = vector.broadcast %cst_118 : f32 to vector<2x1xf32>
    %582 = arith.divf %580, %581 : vector<2x1xf32>
    %583 = vector.broadcast %582 : vector<2x1xf32> to vector<2x32xf32>
    %584 = arith.subf %576, %583 : vector<2x32xf32>
    %585 = arith.mulf %584, %584 : vector<2x32xf32>
    %cst_119 = arith.constant dense<0.000000e+00> : vector<2xf32>
    %586 = vector.multi_reduction <add>, %585, %cst_119 [1] : vector<2x32xf32> to vector<2xf32>
    %587 = vector.shape_cast %586 : vector<2xf32> to vector<2x1xf32>
    %cst_120 = arith.constant 3.200000e+01 : f32
    %588 = vector.broadcast %cst_120 : f32 to vector<2x1xf32>
    %589 = arith.divf %587, %588 : vector<2x1xf32>
    %590 = vector.broadcast %582 : vector<2x1xf32> to vector<2x32xf32>
    %591 = arith.subf %576, %590 : vector<2x32xf32>
    %cst_121 = arith.constant 9.99999974E-6 : f32
    %592 = vector.broadcast %cst_121 : f32 to vector<2x1xf32>
    %593 = arith.addf %589, %592 : vector<2x1xf32>
    %594 = math.rsqrt %593 : vector<2x1xf32>
    %595 = vector.broadcast %594 : vector<2x1xf32> to vector<2x32xf32>
    %596 = arith.mulf %591, %595 : vector<2x32xf32>
    %597 = vector.broadcast %577 : vector<1x32xf32> to vector<2x32xf32>
    %598 = arith.mulf %596, %597 : vector<2x32xf32>
    %599 = vector.broadcast %578 : vector<1x32xf32> to vector<2x32xf32>
    %600 = arith.addf %598, %599 : vector<2x32xf32>
    %cst_122 = arith.constant 5.000000e-01 : f32
    %601 = vector.broadcast %cst_122 : f32 to vector<2x32xf32>
    %602 = arith.mulf %601, %600 : vector<2x32xf32>
    %cst_123 = arith.constant 0.707106769 : f32
    %603 = vector.broadcast %cst_123 : f32 to vector<2x32xf32>
    %604 = arith.mulf %600, %603 : vector<2x32xf32>
    %605 = math.erf %604 : vector<2x32xf32>
    %cst_124 = arith.constant 1.000000e+00 : f32
    %606 = vector.broadcast %cst_124 : f32 to vector<2x32xf32>
    %607 = arith.addf %606, %605 : vector<2x32xf32>
    %608 = arith.mulf %602, %607 : vector<2x32xf32>
    %c0_125 = arith.constant 0 : index
    %c0_126 = arith.constant 0 : index
    %609 = vector.load %arg20[%c0_125, %c0_126] : memref<32x16xf32, #tpu.memory_space<vmem>>, vector<32x16xf32>
    %c0_127 = arith.constant 0 : index
    %c0_128 = arith.constant 0 : index
    %610 = vector.load %arg21[%c0_127, %c0_128] : memref<1x16xf32, #tpu.memory_space<vmem>>, vector<1x16xf32>
    %cst_129 = arith.constant dense<0.000000e+00> : vector<2x16xf32>
    %611 = tpu.matmul %608, %609, %cst_129 {dimension_numbers = #tpu.dot_dimension_numbers<[1], [0], [0], [1], [0, 0, 1, 1], [], []>} : vector<2x32xf32>, vector<32x16xf32>, vector<2x16xf32> -> vector<2x16xf32>
    %612 = vector.broadcast %610 : vector<1x16xf32> to vector<2x16xf32>
    %613 = arith.addf %611, %612 : vector<2x16xf32>
    %c0_130 = arith.constant 0 : index
    %c0_131 = arith.constant 0 : index
    %614 = vector.load %arg22[%c0_130, %c0_131] : memref<2x16xf32, #tpu.memory_space<vmem>>, vector<2x16xf32>
    tpu.vector_store %arg22[%c0_130, %c0_131], %613 {strides = array<i32>} : memref<2x16xf32, #tpu.memory_space<vmem>>, vector<2x16xf32>,
    return
  }
  func.func @transform_0(%arg0: i32) -> (i32, i32, i32) {
    %c0_i32 = arith.constant 0 : i32
    %c0_i32_0 = arith.constant 0 : i32
    %c0_i32_1 = arith.constant 0 : i32
    %c0_i32_2 = arith.constant 0 : i32
    return %c0_i32, %c0_i32_0, %c0_i32_1 : i32, i32, i32
  }
  func.func @transform_1(%arg0: i32) -> (i32, i32) {
    %c0_i32 = arith.constant 0 : i32
    %c0_i32_0 = arith.constant 0 : i32
    %c0_i32_1 = arith.constant 0 : i32
    return %c0_i32, %c0_i32_0 : i32, i32
  }
  func.func @transform_2(%arg0: i32) -> (i32, i32, i32) {
    %c0_i32 = arith.constant 0 : i32
    %c0_i32_0 = arith.constant 0 : i32
    %c0_i32_1 = arith.constant 0 : i32
    %c0_i32_2 = arith.constant 0 : i32
    return %c0_i32, %c0_i32_0, %c0_i32_1 : i32, i32, i32
  }
  func.func @transform_3(%arg0: i32) -> (i32, i32) {
    %c0_i32 = arith.constant 0 : i32
    %c0_i32_0 = arith.constant 0 : i32
    %c0_i32_1 = arith.constant 0 : i32
    return %c0_i32, %c0_i32_0 : i32, i32
  }
  func.func @transform_4(%arg0: i32) -> (i32, i32) {
    %c0_i32 = arith.constant 0 : i32
    %c0_i32_0 = arith.constant 0 : i32
    %c0_i32_1 = arith.constant 0 : i32
    return %c0_i32, %c0_i32_0 : i32, i32
  }
  func.func @transform_5(%arg0: i32) -> (i32, i32) {
    %c0_i32 = arith.constant 0 : i32
    %c0_i32_0 = arith.constant 0 : i32
    %c0_i32_1 = arith.constant 0 : i32
    return %c0_i32, %c0_i32_0 : i32, i32
  }
  func.func @transform_6(%arg0: i32) -> (i32, i32) {
    %c0_i32 = arith.constant 0 : i32
    %c0_i32_0 = arith.constant 0 : i32
    %c0_i32_1 = arith.constant 0 : i32
    return %c0_i32, %c0_i32_0 : i32, i32
  }
  func.func @transform_7(%arg0: i32) -> (i32, i32) {
    %c0_i32 = arith.constant 0 : i32
    %c0_i32_0 = arith.constant 0 : i32
    %c0_i32_1 = arith.constant 0 : i32
    return %c0_i32, %c0_i32_0 : i32, i32
  }
  func.func @transform_8(%arg0: i32) -> (i32, i32) {
    %c0_i32 = arith.constant 0 : i32
    %c0_i32_0 = arith.constant 0 : i32
    %c0_i32_1 = arith.constant 0 : i32
    return %c0_i32, %c0_i32_0 : i32, i32
  }
  func.func @transform_9(%arg0: i32) -> (i32, i32) {
    %c0_i32 = arith.constant 0 : i32
    %c0_i32_0 = arith.constant 0 : i32
    %c0_i32_1 = arith.constant 0 : i32
    return %c0_i32, %c0_i32_0 : i32, i32
  }
  func.func @transform_10(%arg0: i32) -> (i32, i32) {
    %c0_i32 = arith.constant 0 : i32
    %c0_i32_0 = arith.constant 0 : i32
    %c0_i32_1 = arith.constant 0 : i32
    return %c0_i32, %c0_i32_0 : i32, i32
  }
  func.func @transform_11(%arg0: i32) -> (i32, i32) {
    %c0_i32 = arith.constant 0 : i32
    %c0_i32_0 = arith.constant 0 : i32
    %c0_i32_1 = arith.constant 0 : i32
    return %c0_i32, %c0_i32_0 : i32, i32
  }
  func.func @transform_12(%arg0: i32) -> (i32, i32) {
    %c0_i32 = arith.constant 0 : i32
    %c0_i32_0 = arith.constant 0 : i32
    %c0_i32_1 = arith.constant 0 : i32
    return %c0_i32, %c0_i32_0 : i32, i32
  }
  func.func @transform_13(%arg0: i32) -> (i32, i32) {
    %c0_i32 = arith.constant 0 : i32
    %c0_i32_0 = arith.constant 0 : i32
    %c0_i32_1 = arith.constant 0 : i32
    return %c0_i32, %c0_i32_0 : i32, i32
  }
  func.func @transform_14(%arg0: i32) -> (i32, i32) {
    %c0_i32 = arith.constant 0 : i32
    %c0_i32_0 = arith.constant 0 : i32
    %c0_i32_1 = arith.constant 0 : i32
    return %c0_i32, %c0_i32_0 : i32, i32
  }
  func.func @transform_15(%arg0: i32) -> (i32, i32) {
    %c0_i32 = arith.constant 0 : i32
    %c0_i32_0 = arith.constant 0 : i32
    %c0_i32_1 = arith.constant 0 : i32
    return %c0_i32, %c0_i32_0 : i32, i32
  }
  func.func @transform_16(%arg0: i32) -> (i32, i32) {
    %c0_i32 = arith.constant 0 : i32
    %c0_i32_0 = arith.constant 0 : i32
    %c0_i32_1 = arith.constant 0 : i32
    return %c0_i32, %c0_i32_0 : i32, i32
  }
  func.func @transform_17(%arg0: i32) -> (i32, i32) {
    %c0_i32 = arith.constant 0 : i32
    %c0_i32_0 = arith.constant 0 : i32
    %c0_i32_1 = arith.constant 0 : i32
    return %c0_i32, %c0_i32_0 : i32, i32
  }
  func.func @transform_18(%arg0: i32) -> (i32, i32) {
    %c0_i32 = arith.constant 0 : i32
    %c0_i32_0 = arith.constant 0 : i32
    %c0_i32_1 = arith.constant 0 : i32
    return %c0_i32, %c0_i32_0 : i32, i32
  }
  func.func @transform_19(%arg0: i32) -> (i32, i32) {
    %c0_i32 = arith.constant 0 : i32
    %c0_i32_0 = arith.constant 0 : i32
    %c0_i32_1 = arith.constant 0 : i32
    return %c0_i32, %c0_i32_0 : i32, i32
  }
  func.func @transform_20(%arg0: i32) -> (i32, i32) {
    %c0_i32 = arith.constant 0 : i32
    %c0_i32_0 = arith.constant 0 : i32
    %c0_i32_1 = arith.constant 0 : i32
    return %c0_i32, %c0_i32_0 : i32, i32
  }
  func.func @transform_21(%arg0: i32) -> (i32, i32) {
    %c0_i32 = arith.constant 0 : i32
    %c0_i32_0 = arith.constant 0 : i32
    %c0_i32_1 = arith.constant 0 : i32
    return %c0_i32, %c0_i32_0 : i32, i32
  }
}

</mosaic_0001>

<llo_original>
// kernel: tpu_custom_call.1
$region0: #{tpu_custom_call.1}
  #allocation0 [shape = 'u32[]', space=smem, size = 0x4, offset = 0x4, fixed_abs, tag = 'smem constant byte address 0x4 - core index']
  #allocation1 [shape = 'u32[144,128]{1,0:T(1,128)}', space=vmem, size = 0x12000, scoped, tag = 'internal scratch']
  %s0 = inlined_call_operand.vmem [shape: f32[2,8,16], index: 0, kind: input, shape index: {}]
  %s1 = inlined_call_operand.vmem [shape: f32[2,8], index: 1, kind: input, shape index: {}]
  %s2 = inlined_call_operand.vmem [shape: f32[2,2,32], index: 2, kind: input, shape index: {}]
  %s3 = inlined_call_operand.vmem [shape: f32[16,96], index: 3, kind: input, shape index: {}]
  %s4 = inlined_call_operand.vmem [shape: f32[32,96], index: 4, kind: input, shape index: {}]
  %s5 = inlined_call_operand.vmem [shape: f32[1,96], index: 5, kind: input, shape index: {}]
  %s6 = inlined_call_operand.vmem [shape: f32[1,96], index: 6, kind: input, shape index: {}]
  %s7 = inlined_call_operand.vmem [shape: f32[32,96], index: 7, kind: input, shape index: {}]
  %s8 = inlined_call_operand.vmem [shape: f32[32,96], index: 8, kind: input, shape index: {}]
  %s9 = inlined_call_operand.vmem [shape: f32[1,96], index: 9, kind: input, shape index: {}]
  %s10 = inlined_call_operand.vmem [shape: f32[1,96], index: 10, kind: input, shape index: {}]
  %s11 = inlined_call_operand.vmem [shape: f32[264,64], index: 11, kind: input, shape index: {}]
  %s12 = inlined_call_operand.vmem [shape: f32[1,64], index: 12, kind: input, shape index: {}]
  %s13 = inlined_call_operand.vmem [shape: f32[1,64], index: 13, kind: input, shape index: {}]
  %s14 = inlined_call_operand.vmem [shape: f32[1,64], index: 14, kind: input, shape index: {}]
  %s15 = inlined_call_operand.vmem [shape: f32[64,32], index: 15, kind: input, shape index: {}]
  %s16 = inlined_call_operand.vmem [shape: f32[1,32], index: 16, kind: input, shape index: {}]
  %s17 = inlined_call_operand.vmem [shape: f32[1,32], index: 17, kind: input, shape index: {}]
  %s18 = inlined_call_operand.vmem [shape: f32[1,32], index: 18, kind: input, shape index: {}]
  %s19 = inlined_call_operand.vmem [shape: f32[32,16], index: 19, kind: input, shape index: {}]
  %s20 = inlined_call_operand.vmem [shape: f32[1,16], index: 20, kind: input, shape index: {}]
  %s21 = inlined_call_operand.hbm [shape: f32[2,16], index: 21, kind: output, shape index: {}]
  %s22 = sld [smem:[#allocation0]]
  $region94: #{tpu_custom_call.1} parent=0
    _
  %s24 = ssub.s32 1, %s22
  %s25 = scalar_select 0, %s24, %s22
  $region1: #{tpu_custom_call.1} parent=0
    #allocation2 [shape = 'u8[1024]{0}', space=vmem, size = 0x400, scoped, tag = 'output window, operand 0, single buffered']
    #allocation3 [shape = 's32[1]{0}', space=sflag, size = 0x4, scoped, tag = 'scoped memory for tpu_custom_call.1']
    %26 = vsyncpa [#allocation3], 0
    // Predicated region
    $region2: #{tpu_custom_call.1} parent=1 // pred_check
      _
    $region3: #{tpu_custom_call.1} parent=1 // pred_check_branch
      %28 = sbr.rel (0) target = $region5
    $region4: #{tpu_custom_call.1} parent=1 // pred_region
      _
    $region5: #{tpu_custom_call.1} parent=1 // pred_fallthru
      _
    // Predicated region
    $region6: #{tpu_custom_call.1} parent=1 // pred_check
      _
    $region7: #{tpu_custom_call.1} parent=1 // pred_check_branch
      %30 = sbr.rel (0) target = $region9
    $region8: #{tpu_custom_call.1} parent=1 // pred_region
      _
    $region9: #{tpu_custom_call.1} parent=1 // pred_fallthru
      _
    // Predicated region
    $region10: #{tpu_custom_call.1} parent=1 // pred_check
      _
    $region11: #{tpu_custom_call.1} parent=1 // pred_check_branch
      %32 = sbr.rel (0) target = $region13
    $region12: #{tpu_custom_call.1} parent=1 // pred_region
      _
    $region13: #{tpu_custom_call.1} parent=1 // pred_fallthru
      _
    // Predicated region
    $region14: #{tpu_custom_call.1} parent=1 // pred_check
      _
    $region15: #{tpu_custom_call.1} parent=1 // pred_check_branch
      %34 = sbr.rel (0) target = $region17
    $region16: #{tpu_custom_call.1} parent=1 // pred_region
      _
    $region17: #{tpu_custom_call.1} parent=1 // pred_fallthru
      _
    // Predicated region
    $region18: #{tpu_custom_call.1} parent=1 // pred_check
      _
    $region19: #{tpu_custom_call.1} parent=1 // pred_check_branch
      %36 = sbr.rel (0) target = $region21
    $region20: #{tpu_custom_call.1} parent=1 // pred_region
      _
    $region21: #{tpu_custom_call.1} parent=1 // pred_fallthru
      _
    // Predicated region
    $region22: #{tpu_custom_call.1} parent=1 // pred_check
      _
    $region23: #{tpu_custom_call.1} parent=1 // pred_check_branch
      %38 = sbr.rel (0) target = $region25
    $region24: #{tpu_custom_call.1} parent=1 // pred_region
      _
    $region25: #{tpu_custom_call.1} parent=1 // pred_fallthru
      _
    // Predicated region
    $region26: #{tpu_custom_call.1} parent=1 // pred_check
      _
    $region27: #{tpu_custom_call.1} parent=1 // pred_check_branch
      %40 = sbr.rel (0) target = $region29
    $region28: #{tpu_custom_call.1} parent=1 // pred_region
      _
    $region29: #{tpu_custom_call.1} parent=1 // pred_fallthru
      _
    // Predicated region
    $region30: #{tpu_custom_call.1} parent=1 // pred_check
      _
    $region31: #{tpu_custom_call.1} parent=1 // pred_check_branch
      %42 = sbr.rel (0) target = $region33
    $region32: #{tpu_custom_call.1} parent=1 // pred_region
      _
    $region33: #{tpu_custom_call.1} parent=1 // pred_fallthru
      _
    // Predicated region
    $region34: #{tpu_custom_call.1} parent=1 // pred_check
      _
    $region35: #{tpu_custom_call.1} parent=1 // pred_check_branch
      %44 = sbr.rel (0) target = $region37
    $region36: #{tpu_custom_call.1} parent=1 // pred_region
      _
    $region37: #{tpu_custom_call.1} parent=1 // pred_fallthru
      _
    // Predicated region
    $region38: #{tpu_custom_call.1} parent=1 // pred_check
      _
    $region39: #{tpu_custom_call.1} parent=1 // pred_check_branch
      %46 = sbr.rel (0) target = $region41
    $region40: #{tpu_custom_call.1} parent=1 // pred_region
      _
    $region41: #{tpu_custom_call.1} parent=1 // pred_fallthru
      _
    // Predicated region
    $region42: #{tpu_custom_call.1} parent=1 // pred_check
      _
    $region43: #{tpu_custom_call.1} parent=1 // pred_check_branch
      %48 = sbr.rel (0) target = $region45
    $region44: #{tpu_custom_call.1} parent=1 // pred_region
      _
    $region45: #{tpu_custom_call.1} parent=1 // pred_fallthru
      _
    // Predicated region
    $region46: #{tpu_custom_call.1} parent=1 // pred_check
      _
    $region47: #{tpu_custom_call.1} parent=1 // pred_check_branch
      %50 = sbr.rel (0) target = $region49
    $region48: #{tpu_custom_call.1} parent=1 // pred_region
      _
    $region49: #{tpu_custom_call.1} parent=1 // pred_fallthru
      _
    // Predicated region
    $region50: #{tpu_custom_call.1} parent=1 // pred_check
      _
    $region51: #{tpu_custom_call.1} parent=1 // pred_check_branch
      %52 = sbr.rel (0) target = $region53
    $region52: #{tpu_custom_call.1} parent=1 // pred_region
      _
    $region53: #{tpu_custom_call.1} parent=1 // pred_fallthru
      _
    // Predicated region
    $region54: #{tpu_custom_call.1} parent=1 // pred_check
      _
    $region55: #{tpu_custom_call.1} parent=1 // pred_check_branch
      %54 = sbr.rel (0) target = $region57
    $region56: #{tpu_custom_call.1} parent=1 // pred_region
      _
    $region57: #{tpu_custom_call.1} parent=1 // pred_fallthru
      _
    // Predicated region
    $region58: #{tpu_custom_call.1} parent=1 // pred_check
      _
    $region59: #{tpu_custom_call.1} parent=1 // pred_check_branch
      %56 = sbr.rel (0) target = $region61
    $region60: #{tpu_custom_call.1} parent=1 // pred_region
      _
    $region61: #{tpu_custom_call.1} parent=1 // pred_fallthru
      _
    // Predicated region
    $region62: #{tpu_custom_call.1} parent=1 // pred_check
      _
    $region63: #{tpu_custom_call.1} parent=1 // pred_check_branch
      %58 = sbr.rel (0) target = $region65
    $region64: #{tpu_custom_call.1} parent=1 // pred_region
      _
    $region65: #{tpu_custom_call.1} parent=1 // pred_fallthru
      _
    // Predicated region
    $region66: #{tpu_custom_call.1} parent=1 // pred_check
      _
    $region67: #{tpu_custom_call.1} parent=1 // pred_check_branch
      %60 = sbr.rel (0) target = $region69
    $region68: #{tpu_custom_call.1} parent=1 // pred_region
      _
    $region69: #{tpu_custom_call.1} parent=1 // pred_fallthru
      _
    // Predicated region
    $region70: #{tpu_custom_call.1} parent=1 // pred_check
      _
    $region71: #{tpu_custom_call.1} parent=1 // pred_check_branch
      %62 = sbr.rel (0) target = $region73
    $region72: #{tpu_custom_call.1} parent=1 // pred_region
      _
    $region73: #{tpu_custom_call.1} parent=1 // pred_fallthru
      _
    // Predicated region
    $region74: #{tpu_custom_call.1} parent=1 // pred_check
      _
    $region75: #{tpu_custom_call.1} parent=1 // pred_check_branch
      %64 = sbr.rel (0) target = $region77
    $region76: #{tpu_custom_call.1} parent=1 // pred_region
      _
    $region77: #{tpu_custom_call.1} parent=1 // pred_fallthru
      _
    // Predicated region
    $region78: #{tpu_custom_call.1} parent=1 // pred_check
      _
    $region79: #{tpu_custom_call.1} parent=1 // pred_check_branch
      %66 = sbr.rel (0) target = $region81
    $region80: #{tpu_custom_call.1} parent=1 // pred_region
      _
    $region81: #{tpu_custom_call.1} parent=1 // pred_fallthru
      _
    // Predicated region
    $region82: #{tpu_custom_call.1} parent=1 // pred_check
      _
    $region83: #{tpu_custom_call.1} parent=1 // pred_check_branch
      %68 = sbr.rel (0) target = $region85
    $region84: #{tpu_custom_call.1} parent=1 // pred_region
      _
    $region85: #{tpu_custom_call.1} parent=1 // pred_fallthru
      _
    %v69 = vld [vmem:[%s0] sm:$0xff]
    %v70 = vld [vmem:[%s0 + $0x8] sm:$0xff]
    %v71 = vld [vmem:[%s3] sm:$0xff]
    %v72 = vld [vmem:[%s3 + $0x8] sm:$0xff]
    %v73 = vld [vmem:[%s4] sm:$0xff]
    %v74 = vld [vmem:[%s4 + $0x8] sm:$0xff]
    %v75 = vld [vmem:[%s4 + $0x10] sm:$0xff]
    %v76 = vld [vmem:[%s4 + $0x18] sm:$0xff]
    %v77 = vld [vmem:[%s5] sm:$0x1]
    %v78 = vld [vmem:[%s6] sm:$0x1]
    %v79 = vadd.f32 %v77, %v78
    %vm80 = vcmask 523264
    %v81 = vsel %vm80, %v79, %v77
    %v84 = vrot.slane %v70, 7
    %vm85 = vcmask 1041409
    %v86 = vsel %vm85, %v84, %v69
    %v88 = vrot.slane %v69, 7
    %v89 = vrot.slane %v70, 6
    %vm90 = vcmask 1043459
    %v91 = vsel %vm90, %v89, %v88
    %v93 = vrot.slane %v69, 6
    %v94 = vrot.slane %v70, 5
    %vm95 = vcmask 1045509
    %v96 = vsel %vm95, %v94, %v93
    %v98 = vrot.slane %v69, 5
    %v99 = vrot.slane %v70, 4
    %vm100 = vcmask 1047559
    %v101 = vsel %vm100, %v99, %v98
    %v103 = vrot.slane %v69, 4
    %v104 = vrot.slane %v70, 3
    %v105 = vsel %vm85, %v104, %v103
    %v107 = vrot.slane %v69, 3
    %v108 = vrot.slane %v70, 2
    %v109 = vsel %vm90, %v108, %v107
    %v111 = vrot.slane %v69, 2
    %v112 = vrot.slane %v70, 1
    %v113 = vsel %vm95, %v112, %v111
    %v115 = vrot.slane %v69, 1
    %v116 = vsel %vm100, %v70, %v115
    %vm118 = vcmask 1041408
    %v119 = vsel %vm118, %v86, %v91
    %vm120 = vcmask 1043456
    %v121 = vsel %vm120, %v119, %v96
    %vm122 = vcmask 1045504
    %v123 = vsel %vm122, %v121, %v101
    %v124 = vsel %vm118, %v105, %v109
    %v125 = vsel %vm120, %v124, %v113
    %v126 = vsel %vm122, %v125, %v116
    %v127 = vlaneseq
    %v128 = vshrl.u32 %v127, 7
    %v129 = vsub.s32 0, %v128
    %v130 = vrot.slane %v81, %v129
    %vm131 = vcmask 130048
    %v133 = vsel %vm131, %v123, 0
    %v136 = vsel %vm131, %v126, 0
    %138 = vmatprep.subr.mxu0 0.0
    %139 = vmatpush1.msra.mxu0 0.0
    %140 = vmatprep.subr.mxu0 0.0
    %141 = vmatpush1.msra.mxu0 0.0
    %142 = vmatprep.subr.mxu0 0.0
    %143 = vmatpush1.msra.mxu0 0.0
    %144 = vmatprep.subr.mxu0 0.0
    %145 = vmatpush1.msra.mxu0 0.0
    %146 = vmatprep.subr.mxu0 0.0
    %147 = vmatpush1.msra.mxu0 0.0
    %148 = vmatprep.subr.mxu0 0.0
    %149 = vmatpush1.msra.mxu0 0.0
    %150 = vmatprep.subr.mxu0 0.0
    %151 = vmatpush1.msra.mxu0 0.0
    %152 = vmatprep.subr.mxu0 0.0
    %153 = vmatpush1.msra.mxu0 0.0
    %154 = vmatprep.subr.mxu0 0.0
    %155 = vmatpush1.msra.mxu0 0.0
    %156 = vmatprep.subr.mxu0 0.0
    %157 = vmatpush1.msra.mxu0 0.0
    %158 = vmatprep.subr.mxu0 0.0
    %159 = vmatpush1.msra.mxu0 0.0
    %160 = vmatprep.subr.mxu0 0.0
    %161 = vmatpush1.msra.mxu0 0.0
    %162 = vmatprep.subr.mxu0 0.0
    %163 = vmatpush1.msra.mxu0 0.0
    %164 = vmatprep.subr.mxu0 0.0
    %165 = vmatpush1.msra.mxu0 0.0
    %166 = vmatprep.subr.mxu0 0.0
    %167 = vmatpush1.msra.mxu0 %v72
    %168 = vmatprep.subr.mxu0 0.0
    %169 = vmatpush1.msra.mxu0 %v71
    %170 = vmatprep.subr.mxu0 0.0
    %171 = vmatpush2.msra.mxu0 0.0
    %172 = vmatprep.subr.mxu0 0.0
    %173 = vmatpush2.msra.mxu0 0.0
    %174 = vmatprep.subr.mxu0 0.0
    %175 = vmatpush2.msra.mxu0 0.0
    %176 = vmatprep.subr.mxu0 0.0
    %177 = vmatpush2.msra.mxu0 0.0
    %178 = vmatprep.subr.mxu0 0.0
    %179 = vmatpush2.msra.mxu0 0.0
    %180 = vmatprep.subr.mxu0 0.0
    %181 = vmatpush2.msra.mxu0 0.0
    %182 = vmatprep.subr.mxu0 0.0
    %183 = vmatpush2.msra.mxu0 0.0
    %184 = vmatprep.subr.mxu0 0.0
    %185 = vmatpush2.msra.mxu0 0.0
    %186 = vmatprep.subr.mxu0 0.0
    %187 = vmatpush2.msra.mxu0 0.0
    %188 = vmatprep.subr.mxu0 0.0
    %189 = vmatpush2.msra.mxu0 0.0
    %190 = vmatprep.subr.mxu0 0.0
    %191 = vmatpush2.msra.mxu0 0.0
    %192 = vmatprep.subr.mxu0 0.0
    %193 = vmatpush2.msra.mxu0 0.0
    %194 = vmatprep.subr.mxu0 0.0
    %195 = vmatpush2.msra.mxu0 0.0
    %196 = vmatprep.subr.mxu0 0.0
    %197 = vmatpush2.msra.mxu0 0.0
    %198 = vmatprep.subr.mxu0 0.0
    %199 = vmatpush2.msra.mxu0 0.0
    %200 = vmatprep.subr.mxu0 0.0
    %201 = vmatpush2.msra.mxu0 0.0
    %202 = vmatprep.mubr.f32.mxu0 0.0
    %203 = vmatmul.mubr.f32.gmra.mxu0 %v133
    %v204 = vpop.f32.mrf.mxu0
    %v205 = vadd.f32 %v130, %v204
    %v206 = vpop.f32.mrf.mxu0
    %207 = vmatprep.mubr.f32.mxu0 0.0
    %208 = vmatmul.mubr.f32.gmra.mxu0 %v136
    %v209 = vpop.f32.mrf.mxu0
    %v210 = vadd.f32 %v130, %v209
    %v211 = vpop.f32.mrf.mxu0
    %212 = vdwg.mxu0
    %v213 = vld [vmem:[%s2] sm:$0x3]
    %vm214 = vcmask 261120
    %v216 = vsel %vm214, %v213, 0
    %218 = vmatprep.subr.mxu0 0.0
    %219 = vmatpush1.msra.mxu0 0.0
    %220 = vmatprep.subr.mxu0 0.0
    %221 = vmatpush1.msra.mxu0 0.0
    %222 = vmatprep.subr.mxu0 0.0
    %223 = vmatpush1.msra.mxu0 0.0
    %224 = vmatprep.subr.mxu0 0.0
    %225 = vmatpush1.msra.mxu0 0.0
    %226 = vmatprep.subr.mxu0 0.0
    %227 = vmatpush1.msra.mxu0 0.0
    %228 = vmatprep.subr.mxu0 0.0
    %229 = vmatpush1.msra.mxu0 0.0
    %230 = vmatprep.subr.mxu0 0.0
    %231 = vmatpush1.msra.mxu0 0.0
    %232 = vmatprep.subr.mxu0 0.0
    %233 = vmatpush1.msra.mxu0 0.0
    %234 = vmatprep.subr.mxu0 0.0
    %235 = vmatpush1.msra.mxu0 0.0
    %236 = vmatprep.subr.mxu0 0.0
    %237 = vmatpush1.msra.mxu0 0.0
    %238 = vmatprep.subr.mxu0 0.0
    %239 = vmatpush1.msra.mxu0 0.0
    %240 = vmatprep.subr.mxu0 0.0
    %241 = vmatpush1.msra.mxu0 0.0
    %242 = vmatprep.subr.mxu0 0.0
    %243 = vmatpush1.msra.mxu0 %v76
    %244 = vmatprep.subr.mxu0 0.0
    %245 = vmatpush1.msra.mxu0 %v75
    %246 = vmatprep.subr.mxu0 0.0
    %247 = vmatpush1.msra.mxu0 %v74
    %248 = vmatprep.subr.mxu0 0.0
    %249 = vmatpush1.msra.mxu0 %v73
    %250 = vmatprep.subr.mxu0 0.0
    %251 = vmatpush2.msra.mxu0 0.0
    %252 = vmatprep.subr.mxu0 0.0
    %253 = vmatpush2.msra.mxu0 0.0
    %254 = vmatprep.subr.mxu0 0.0
    %255 = vmatpush2.msra.mxu0 0.0
    %256 = vmatprep.subr.mxu0 0.0
    %257 = vmatpush2.msra.mxu0 0.0
    %258 = vmatprep.subr.mxu0 0.0
    %259 = vmatpush2.msra.mxu0 0.0
    %260 = vmatprep.subr.mxu0 0.0
    %261 = vmatpush2.msra.mxu0 0.0
    %262 = vmatprep.subr.mxu0 0.0
    %263 = vmatpush2.msra.mxu0 0.0
    %264 = vmatprep.subr.mxu0 0.0
    %265 = vmatpush2.msra.mxu0 0.0
    %266 = vmatprep.subr.mxu0 0.0
    %267 = vmatpush2.msra.mxu0 0.0
    %268 = vmatprep.subr.mxu0 0.0
    %269 = vmatpush2.msra.mxu0 0.0
    %270 = vmatprep.subr.mxu0 0.0
    %271 = vmatpush2.msra.mxu0 0.0
    %272 = vmatprep.subr.mxu0 0.0
    %273 = vmatpush2.msra.mxu0 0.0
    %274 = vmatprep.subr.mxu0 0.0
    %275 = vmatpush2.msra.mxu0 0.0
    %276 = vmatprep.subr.mxu0 0.0
    %277 = vmatpush2.msra.mxu0 0.0
    %278 = vmatprep.subr.mxu0 0.0
    %279 = vmatpush2.msra.mxu0 0.0
    %280 = vmatprep.subr.mxu0 0.0
    %281 = vmatpush2.msra.mxu0 0.0
    %282 = vmatprep.mubr.f32.mxu0 0.0
    %283 = vmatmul.mubr.f32.gmra.mxu0 %v216
    %v284 = vpop.f32.mrf.mxu0
    %v285 = vadd.f32 0.0, %v284
    %v286 = vpop.f32.mrf.mxu0
    %287 = vdwg.mxu0
    %v288 = vadd.f32 %v205, %v285
    %v289 = vxor.u32 %v288, 2147483648
    %v290 = vmul.f32 %v289, 1.442695
    %v291 = vpow.pop %v290
    %v292 = vadd.f32 %v291, 1.0
    %v293 = vrcp.pop %v292
    %v294 = vmul.f32 1.0, %v293
    %v296 = vlaneseq
    %v297 = vshrl.u32 %v296, 7
    %v298 = vsub.s32 0, %v297
    %v299 = vrot.slane %v78, %v298
    %v301 = vadd.f32 %v285, %v299
    %303 = vrot.lane.b32.xlu0 %v301, 64
    %v304 = vpop.permute.xlu0 %303
    %v306 = vmul.f32 %v294, %v304
    %308 = vrot.lane.b32.xlu0 %v306, 64
    %v309 = vpop.permute.xlu0 %308
    %v311 = vadd.f32 %v205, %v309
    %v312 = vtanh.pop %v311
    %v313 = vsub.f32 1.0, %v294
    %315 = vrot.lane.b32.xlu0 %v312, 96
    %v316 = vpop.permute.xlu0 %315
    %v318 = vmul.f32 %v313, %v316
    %319 = vrot.lane.b32.xlu0 %v213, 32
    %v320 = vpop.permute.xlu0 %319
    %v322 = vmul.f32 %v294, %v320
    %v323 = vadd.f32 %v318, %v322
    %325 = vrot.lane.b32.xlu0 %v323, 96
    %v326 = vpop.permute.xlu0 %325
    %v327 = vsel %vm214, %v326, 0
    %329 = vmatprep.subr.mxu0 0.0
    %330 = vmatpush1.msra.mxu0 0.0
    %331 = vmatprep.subr.mxu0 0.0
    %332 = vmatpush1.msra.mxu0 0.0
    %333 = vmatprep.subr.mxu0 0.0
    %334 = vmatpush1.msra.mxu0 0.0
    %335 = vmatprep.subr.mxu0 0.0
    %336 = vmatpush1.msra.mxu0 0.0
    %337 = vmatprep.subr.mxu0 0.0
    %338 = vmatpush1.msra.mxu0 0.0
    %339 = vmatprep.subr.mxu0 0.0
    %340 = vmatpush1.msra.mxu0 0.0
    %341 = vmatprep.subr.mxu0 0.0
    %342 = vmatpush1.msra.mxu0 0.0
    %343 = vmatprep.subr.mxu0 0.0
    %344 = vmatpush1.msra.mxu0 0.0
    %345 = vmatprep.subr.mxu0 0.0
    %346 = vmatpush1.msra.mxu0 0.0
    %347 = vmatprep.subr.mxu0 0.0
    %348 = vmatpush1.msra.mxu0 0.0
    %349 = vmatprep.subr.mxu0 0.0
    %350 = vmatpush1.msra.mxu0 0.0
    %351 = vmatprep.subr.mxu0 0.0
    %352 = vmatpush1.msra.mxu0 0.0
    %353 = vmatprep.subr.mxu0 0.0
    %354 = vmatpush1.msra.mxu0 %v76
    %355 = vmatprep.subr.mxu0 0.0
    %356 = vmatpush1.msra.mxu0 %v75
    %357 = vmatprep.subr.mxu0 0.0
    %358 = vmatpush1.msra.mxu0 %v74
    %359 = vmatprep.subr.mxu0 0.0
    %360 = vmatpush1.msra.mxu0 %v73
    %361 = vmatprep.subr.mxu0 0.0
    %362 = vmatpush2.msra.mxu0 0.0
    %363 = vmatprep.subr.mxu0 0.0
    %364 = vmatpush2.msra.mxu0 0.0
    %365 = vmatprep.subr.mxu0 0.0
    %366 = vmatpush2.msra.mxu0 0.0
    %367 = vmatprep.subr.mxu0 0.0
    %368 = vmatpush2.msra.mxu0 0.0
    %369 = vmatprep.subr.mxu0 0.0
    %370 = vmatpush2.msra.mxu0 0.0
    %371 = vmatprep.subr.mxu0 0.0
    %372 = vmatpush2.msra.mxu0 0.0
    %373 = vmatprep.subr.mxu0 0.0
    %374 = vmatpush2.msra.mxu0 0.0
    %375 = vmatprep.subr.mxu0 0.0
    %376 = vmatpush2.msra.mxu0 0.0
    %377 = vmatprep.subr.mxu0 0.0
    %378 = vmatpush2.msra.mxu0 0.0
    %379 = vmatprep.subr.mxu0 0.0
    %380 = vmatpush2.msra.mxu0 0.0
    %381 = vmatprep.subr.mxu0 0.0
    %382 = vmatpush2.msra.mxu0 0.0
    %383 = vmatprep.subr.mxu0 0.0
    %384 = vmatpush2.msra.mxu0 0.0
    %385 = vmatprep.subr.mxu0 0.0
    %386 = vmatpush2.msra.mxu0 0.0
    %387 = vmatprep.subr.mxu0 0.0
    %388 = vmatpush2.msra.mxu0 0.0
    %389 = vmatprep.subr.mxu0 0.0
    %390 = vmatpush2.msra.mxu0 0.0
    %391 = vmatprep.subr.mxu0 0.0
    %392 = vmatpush2.msra.mxu0 0.0
    %393 = vmatprep.mubr.f32.mxu0 0.0
    %394 = vmatmul.mubr.f32.gmra.mxu0 %v327
    %v395 = vpop.f32.mrf.mxu0
    %v396 = vadd.f32 0.0, %v395
    %v397 = vpop.f32.mrf.mxu0
    %398 = vdwg.mxu0
    %v400 = vrot.slane %v396, 6
    %v402 = vadd.f32 %v205, %v400
    %v403 = vxor.u32 %v402, 2147483648
    %v404 = vmul.f32 %v403, 1.442695
    %v405 = vpow.pop %v404
    %v406 = vadd.f32 %v405, 1.0
    %v407 = vrcp.pop %v406
    %v408 = vmul.f32 1.0, %v407
    %v409 = vadd.f32 %v396, %v299
    %v411 = vrot.slane %v409, 6
    %412 = vrot.lane.b32.xlu0 %v411, 64
    %v413 = vpop.permute.xlu0 %412
    %v415 = vmul.f32 %v408, %v413
    %417 = vrot.lane.b32.xlu0 %v415, 64
    %v418 = vpop.permute.xlu0 %417
    %v420 = vadd.f32 %v205, %v418
    %v421 = vtanh.pop %v420
    %v422 = vsub.f32 1.0, %v408
    %424 = vrot.lane.b32.xlu0 %v421, 96
    %v425 = vpop.permute.xlu0 %424
    %v427 = vmul.f32 %v422, %v425
    %v428 = vrot.slane %v323, 6
    %v430 = vmul.f32 %v408, %v428
    %v431 = vadd.f32 %v427, %v430
    %v433 = vrot.slane %v431, 2
    %434 = vrot.lane.b32.xlu0 %v433, 96
    %v435 = vpop.permute.xlu0 %434
    %v436 = vsel %vm214, %v435, 0
    %438 = vmatprep.subr.mxu0 0.0
    %439 = vmatpush1.msra.mxu0 0.0
    %440 = vmatprep.subr.mxu0 0.0
    %441 = vmatpush1.msra.mxu0 0.0
    %442 = vmatprep.subr.mxu0 0.0
    %443 = vmatpush1.msra.mxu0 0.0
    %444 = vmatprep.subr.mxu0 0.0
    %445 = vmatpush1.msra.mxu0 0.0
    %446 = vmatprep.subr.mxu0 0.0
    %447 = vmatpush1.msra.mxu0 0.0
    %448 = vmatprep.subr.mxu0 0.0
    %449 = vmatpush1.msra.mxu0 0.0
    %450 = vmatprep.subr.mxu0 0.0
    %451 = vmatpush1.msra.mxu0 0.0
    %452 = vmatprep.subr.mxu0 0.0
    %453 = vmatpush1.msra.mxu0 0.0
    %454 = vmatprep.subr.mxu0 0.0
    %455 = vmatpush1.msra.mxu0 0.0
    %456 = vmatprep.subr.mxu0 0.0
    %457 = vmatpush1.msra.mxu0 0.0
    %458 = vmatprep.subr.mxu0 0.0
    %459 = vmatpush1.msra.mxu0 0.0
    %460 = vmatprep.subr.mxu0 0.0
    %461 = vmatpush1.msra.mxu0 0.0
    %462 = vmatprep.subr.mxu0 0.0
    %463 = vmatpush1.msra.mxu0 %v76
    %464 = vmatprep.subr.mxu0 0.0
    %465 = vmatpush1.msra.mxu0 %v75
    %466 = vmatprep.subr.mxu0 0.0
    %467 = vmatpush1.msra.mxu0 %v74
    %468 = vmatprep.subr.mxu0 0.0
    %469 = vmatpush1.msra.mxu0 %v73
    %470 = vmatprep.subr.mxu0 0.0
    %471 = vmatpush2.msra.mxu0 0.0
    %472 = vmatprep.subr.mxu0 0.0
    %473 = vmatpush2.msra.mxu0 0.0
    %474 = vmatprep.subr.mxu0 0.0
    %475 = vmatpush2.msra.mxu0 0.0
    %476 = vmatprep.subr.mxu0 0.0
    %477 = vmatpush2.msra.mxu0 0.0
    %478 = vmatprep.subr.mxu0 0.0
    %479 = vmatpush2.msra.mxu0 0.0
    %480 = vmatprep.subr.mxu0 0.0
    %481 = vmatpush2.msra.mxu0 0.0
    %482 = vmatprep.subr.mxu0 0.0
    %483 = vmatpush2.msra.mxu0 0.0
    %484 = vmatprep.subr.mxu0 0.0
    %485 = vmatpush2.msra.mxu0 0.0
    %486 = vmatprep.subr.mxu0 0.0
    %487 = vmatpush2.msra.mxu0 0.0
    %488 = vmatprep.subr.mxu0 0.0
    %489 = vmatpush2.msra.mxu0 0.0
    %490 = vmatprep.subr.mxu0 0.0
    %491 = vmatpush2.msra.mxu0 0.0
    %492 = vmatprep.subr.mxu0 0.0
    %493 = vmatpush2.msra.mxu0 0.0
    %494 = vmatprep.subr.mxu0 0.0
    %495 = vmatpush2.msra.mxu0 0.0
    %496 = vmatprep.subr.mxu0 0.0
    %497 = vmatpush2.msra.mxu0 0.0
    %498 = vmatprep.subr.mxu0 0.0
    %499 = vmatpush2.msra.mxu0 0.0
    %500 = vmatprep.subr.mxu0 0.0
    %501 = vmatpush2.msra.mxu0 0.0
    %502 = vmatprep.mubr.f32.mxu0 0.0
    %503 = vmatmul.mubr.f32.gmra.mxu0 %v436
    %v504 = vpop.f32.mrf.mxu0
    %v505 = vadd.f32 0.0, %v504
    %v506 = vpop.f32.mrf.mxu0
    %507 = vdwg.mxu0
    %v509 = vrot.slane %v505, 4
    %v511 = vadd.f32 %v205, %v509
    %v512 = vxor.u32 %v511, 2147483648
    %v513 = vmul.f32 %v512, 1.442695
    %v514 = vpow.pop %v513
    %v515 = vadd.f32 %v514, 1.0
    %v516 = vrcp.pop %v515
    %v517 = vmul.f32 1.0, %v516
    %v518 = vadd.f32 %v505, %v299
    %v520 = vrot.slane %v518, 4
    %521 = vrot.lane.b32.xlu0 %v520, 64
    %v522 = vpop.permute.xlu0 %521
    %v524 = vmul.f32 %v517, %v522
    %526 = vrot.lane.b32.xlu0 %v524, 64
    %v527 = vpop.permute.xlu0 %526
    %v529 = vadd.f32 %v205, %v527
    %v530 = vtanh.pop %v529
    %v531 = vsub.f32 1.0, %v517
    %533 = vrot.lane.b32.xlu0 %v530, 96
    %v534 = vpop.permute.xlu0 %533
    %v536 = vmul.f32 %v531, %v534
    %v537 = vrot.slane %v431, 6
    %v539 = vmul.f32 %v517, %v537
    %v540 = vadd.f32 %v536, %v539
    %v542 = vrot.slane %v540, 4
    %543 = vrot.lane.b32.xlu0 %v542, 96
    %v544 = vpop.permute.xlu0 %543
    %v545 = vsel %vm214, %v544, 0
    %547 = vmatprep.subr.mxu0 0.0
    %548 = vmatpush1.msra.mxu0 0.0
    %549 = vmatprep.subr.mxu0 0.0
    %550 = vmatpush1.msra.mxu0 0.0
    %551 = vmatprep.subr.mxu0 0.0
    %552 = vmatpush1.msra.mxu0 0.0
    %553 = vmatprep.subr.mxu0 0.0
    %554 = vmatpush1.msra.mxu0 0.0
    %555 = vmatprep.subr.mxu0 0.0
    %556 = vmatpush1.msra.mxu0 0.0
    %557 = vmatprep.subr.mxu0 0.0
    %558 = vmatpush1.msra.mxu0 0.0
    %559 = vmatprep.subr.mxu0 0.0
    %560 = vmatpush1.msra.mxu0 0.0
    %561 = vmatprep.subr.mxu0 0.0
    %562 = vmatpush1.msra.mxu0 0.0
    %563 = vmatprep.subr.mxu0 0.0
    %564 = vmatpush1.msra.mxu0 0.0
    %565 = vmatprep.subr.mxu0 0.0
    %566 = vmatpush1.msra.mxu0 0.0
    %567 = vmatprep.subr.mxu0 0.0
    %568 = vmatpush1.msra.mxu0 0.0
    %569 = vmatprep.subr.mxu0 0.0
    %570 = vmatpush1.msra.mxu0 0.0
    %571 = vmatprep.subr.mxu0 0.0
    %572 = vmatpush1.msra.mxu0 %v76
    %573 = vmatprep.subr.mxu0 0.0
    %574 = vmatpush1.msra.mxu0 %v75
    %575 = vmatprep.subr.mxu0 0.0
    %576 = vmatpush1.msra.mxu0 %v74
    %577 = vmatprep.subr.mxu0 0.0
    %578 = vmatpush1.msra.mxu0 %v73
    %579 = vmatprep.subr.mxu0 0.0
    %580 = vmatpush2.msra.mxu0 0.0
    %581 = vmatprep.subr.mxu0 0.0
    %582 = vmatpush2.msra.mxu0 0.0
    %583 = vmatprep.subr.mxu0 0.0
    %584 = vmatpush2.msra.mxu0 0.0
    %585 = vmatprep.subr.mxu0 0.0
    %586 = vmatpush2.msra.mxu0 0.0
    %587 = vmatprep.subr.mxu0 0.0
    %588 = vmatpush2.msra.mxu0 0.0
    %589 = vmatprep.subr.mxu0 0.0
    %590 = vmatpush2.msra.mxu0 0.0
    %591 = vmatprep.subr.mxu0 0.0
    %592 = vmatpush2.msra.mxu0 0.0
    %593 = vmatprep.subr.mxu0 0.0
    %594 = vmatpush2.msra.mxu0 0.0
    %595 = vmatprep.subr.mxu0 0.0
    %596 = vmatpush2.msra.mxu0 0.0
    %597 = vmatprep.subr.mxu0 0.0
    %598 = vmatpush2.msra.mxu0 0.0
    %599 = vmatprep.subr.mxu0 0.0
    %600 = vmatpush2.msra.mxu0 0.0
    %601 = vmatprep.subr.mxu0 0.0
    %602 = vmatpush2.msra.mxu0 0.0
    %603 = vmatprep.subr.mxu0 0.0
    %604 = vmatpush2.msra.mxu0 0.0
    %605 = vmatprep.subr.mxu0 0.0
    %606 = vmatpush2.msra.mxu0 0.0
    %607 = vmatprep.subr.mxu0 0.0
    %608 = vmatpush2.msra.mxu0 0.0
    %609 = vmatprep.subr.mxu0 0.0
    %610 = vmatpush2.msra.mxu0 0.0
    %611 = vmatprep.mubr.f32.mxu0 0.0
    %612 = vmatmul.mubr.f32.gmra.mxu0 %v545
    %v613 = vpop.f32.mrf.mxu0
    %v614 = vadd.f32 0.0, %v613
    %v615 = vpop.f32.mrf.mxu0
    %616 = vdwg.mxu0
    %v618 = vrot.slane %v614, 2
    %v620 = vadd.f32 %v205, %v618
    %v621 = vxor.u32 %v620, 2147483648
    %v622 = vmul.f32 %v621, 1.442695
    %v623 = vpow.pop %v622
    %v624 = vadd.f32 %v623, 1.0
    %v625 = vrcp.pop %v624
    %v626 = vmul.f32 1.0, %v625
    %v627 = vadd.f32 %v614, %v299
    %v629 = vrot.slane %v627, 2
    %630 = vrot.lane.b32.xlu0 %v629, 64
    %v631 = vpop.permute.xlu0 %630
    %v633 = vmul.f32 %v626, %v631
    %635 = vrot.lane.b32.xlu0 %v633, 64
    %v636 = vpop.permute.xlu0 %635
    %v638 = vadd.f32 %v205, %v636
    %v639 = vtanh.pop %v638
    %v640 = vsub.f32 1.0, %v626
    %642 = vrot.lane.b32.xlu0 %v639, 96
    %v643 = vpop.permute.xlu0 %642
    %v645 = vmul.f32 %v640, %v643
    %v646 = vrot.slane %v540, 6
    %v648 = vmul.f32 %v626, %v646
    %v649 = vadd.f32 %v645, %v648
    %v651 = vrot.slane %v649, 6
    %652 = vrot.lane.b32.xlu0 %v651, 96
    %v653 = vpop.permute.xlu0 %652
    %v654 = vsel %vm214, %v653, 0
    %656 = vmatprep.subr.mxu0 0.0
    %657 = vmatpush1.msra.mxu0 0.0
    %658 = vmatprep.subr.mxu0 0.0
    %659 = vmatpush1.msra.mxu0 0.0
    %660 = vmatprep.subr.mxu0 0.0
    %661 = vmatpush1.msra.mxu0 0.0
    %662 = vmatprep.subr.mxu0 0.0
    %663 = vmatpush1.msra.mxu0 0.0
    %664 = vmatprep.subr.mxu0 0.0
    %665 = vmatpush1.msra.mxu0 0.0
    %666 = vmatprep.subr.mxu0 0.0
    %667 = vmatpush1.msra.mxu0 0.0
    %668 = vmatprep.subr.mxu0 0.0
    %669 = vmatpush1.msra.mxu0 0.0
    %670 = vmatprep.subr.mxu0 0.0
    %671 = vmatpush1.msra.mxu0 0.0
    %672 = vmatprep.subr.mxu0 0.0
    %673 = vmatpush1.msra.mxu0 0.0
    %674 = vmatprep.subr.mxu0 0.0
    %675 = vmatpush1.msra.mxu0 0.0
    %676 = vmatprep.subr.mxu0 0.0
    %677 = vmatpush1.msra.mxu0 0.0
    %678 = vmatprep.subr.mxu0 0.0
    %679 = vmatpush1.msra.mxu0 0.0
    %680 = vmatprep.subr.mxu0 0.0
    %681 = vmatpush1.msra.mxu0 %v76
    %682 = vmatprep.subr.mxu0 0.0
    %683 = vmatpush1.msra.mxu0 %v75
    %684 = vmatprep.subr.mxu0 0.0
    %685 = vmatpush1.msra.mxu0 %v74
    %686 = vmatprep.subr.mxu0 0.0
    %687 = vmatpush1.msra.mxu0 %v73
    %688 = vmatprep.subr.mxu0 0.0
    %689 = vmatpush2.msra.mxu0 0.0
    %690 = vmatprep.subr.mxu0 0.0
    %691 = vmatpush2.msra.mxu0 0.0
    %692 = vmatprep.subr.mxu0 0.0
    %693 = vmatpush2.msra.mxu0 0.0
    %694 = vmatprep.subr.mxu0 0.0
    %695 = vmatpush2.msra.mxu0 0.0
    %696 = vmatprep.subr.mxu0 0.0
    %697 = vmatpush2.msra.mxu0 0.0
    %698 = vmatprep.subr.mxu0 0.0
    %699 = vmatpush2.msra.mxu0 0.0
    %700 = vmatprep.subr.mxu0 0.0
    %701 = vmatpush2.msra.mxu0 0.0
    %702 = vmatprep.subr.mxu0 0.0
    %703 = vmatpush2.msra.mxu0 0.0
    %704 = vmatprep.subr.mxu0 0.0
    %705 = vmatpush2.msra.mxu0 0.0
    %706 = vmatprep.subr.mxu0 0.0
    %707 = vmatpush2.msra.mxu0 0.0
    %708 = vmatprep.subr.mxu0 0.0
    %709 = vmatpush2.msra.mxu0 0.0
    %710 = vmatprep.subr.mxu0 0.0
    %711 = vmatpush2.msra.mxu0 0.0
    %712 = vmatprep.subr.mxu0 0.0
    %713 = vmatpush2.msra.mxu0 0.0
    %714 = vmatprep.subr.mxu0 0.0
    %715 = vmatpush2.msra.mxu0 0.0
    %716 = vmatprep.subr.mxu0 0.0
    %717 = vmatpush2.msra.mxu0 0.0
    %718 = vmatprep.subr.mxu0 0.0
    %719 = vmatpush2.msra.mxu0 0.0
    %720 = vmatprep.mubr.f32.mxu0 0.0
    %721 = vmatmul.mubr.f32.gmra.mxu0 %v654
    %v722 = vpop.f32.mrf.mxu0
    %v723 = vadd.f32 0.0, %v722
    %v724 = vpop.f32.mrf.mxu0
    %725 = vdwg.mxu0
    %v726 = vadd.f32 %v210, %v723
    %v727 = vxor.u32 %v726, 2147483648
    %v728 = vmul.f32 %v727, 1.442695
    %v729 = vpow.pop %v728
    %v730 = vadd.f32 %v729, 1.0
    %v731 = vrcp.pop %v730
    %v732 = vmul.f32 1.0, %v731
    %v733 = vadd.f32 %v723, %v299
    %735 = vrot.lane.b32.xlu0 %v733, 64
    %v736 = vpop.permute.xlu0 %735
    %v738 = vmul.f32 %v732, %v736
    %740 = vrot.lane.b32.xlu0 %v738, 64
    %v741 = vpop.permute.xlu0 %740
    %v743 = vadd.f32 %v210, %v741
    %v744 = vtanh.pop %v743
    %v745 = vsub.f32 1.0, %v732
    %747 = vrot.lane.b32.xlu0 %v744, 96
    %v748 = vpop.permute.xlu0 %747
    %v750 = vmul.f32 %v745, %v748
    %v752 = vmul.f32 %v732, %v651
    %v753 = vadd.f32 %v750, %v752
    %755 = vrot.lane.b32.xlu0 %v753, 96
    %v756 = vpop.permute.xlu0 %755
    %v757 = vsel %vm214, %v756, 0
    %759 = vmatprep.subr.mxu0 0.0
    %760 = vmatpush1.msra.mxu0 0.0
    %761 = vmatprep.subr.mxu0 0.0
    %762 = vmatpush1.msra.mxu0 0.0
    %763 = vmatprep.subr.mxu0 0.0
    %764 = vmatpush1.msra.mxu0 0.0
    %765 = vmatprep.subr.mxu0 0.0
    %766 = vmatpush1.msra.mxu0 0.0
    %767 = vmatprep.subr.mxu0 0.0
    %768 = vmatpush1.msra.mxu0 0.0
    %769 = vmatprep.subr.mxu0 0.0
    %770 = vmatpush1.msra.mxu0 0.0
    %771 = vmatprep.subr.mxu0 0.0
    %772 = vmatpush1.msra.mxu0 0.0
    %773 = vmatprep.subr.mxu0 0.0
    %774 = vmatpush1.msra.mxu0 0.0
    %775 = vmatprep.subr.mxu0 0.0
    %776 = vmatpush1.msra.mxu0 0.0
    %777 = vmatprep.subr.mxu0 0.0
    %778 = vmatpush1.msra.mxu0 0.0
    %779 = vmatprep.subr.mxu0 0.0
    %780 = vmatpush1.msra.mxu0 0.0
    %781 = vmatprep.subr.mxu0 0.0
    %782 = vmatpush1.msra.mxu0 0.0
    %783 = vmatprep.subr.mxu0 0.0
    %784 = vmatpush1.msra.mxu0 %v76
    %785 = vmatprep.subr.mxu0 0.0
    %786 = vmatpush1.msra.mxu0 %v75
    %787 = vmatprep.subr.mxu0 0.0
    %788 = vmatpush1.msra.mxu0 %v74
    %789 = vmatprep.subr.mxu0 0.0
    %790 = vmatpush1.msra.mxu0 %v73
    %791 = vmatprep.subr.mxu0 0.0
    %792 = vmatpush2.msra.mxu0 0.0
    %793 = vmatprep.subr.mxu0 0.0
    %794 = vmatpush2.msra.mxu0 0.0
    %795 = vmatprep.subr.mxu0 0.0
    %796 = vmatpush2.msra.mxu0 0.0
    %797 = vmatprep.subr.mxu0 0.0
    %798 = vmatpush2.msra.mxu0 0.0
    %799 = vmatprep.subr.mxu0 0.0
    %800 = vmatpush2.msra.mxu0 0.0
    %801 = vmatprep.subr.mxu0 0.0
    %802 = vmatpush2.msra.mxu0 0.0
    %803 = vmatprep.subr.mxu0 0.0
    %804 = vmatpush2.msra.mxu0 0.0
    %805 = vmatprep.subr.mxu0 0.0
    %806 = vmatpush2.msra.mxu0 0.0
    %807 = vmatprep.subr.mxu0 0.0
    %808 = vmatpush2.msra.mxu0 0.0
    %809 = vmatprep.subr.mxu0 0.0
    %810 = vmatpush2.msra.mxu0 0.0
    %811 = vmatprep.subr.mxu0 0.0
    %812 = vmatpush2.msra.mxu0 0.0
    %813 = vmatprep.subr.mxu0 0.0
    %814 = vmatpush2.msra.mxu0 0.0
    %815 = vmatprep.subr.mxu0 0.0
    %816 = vmatpush2.msra.mxu0 0.0
    %817 = vmatprep.subr.mxu0 0.0
    %818 = vmatpush2.msra.mxu0 0.0
    %819 = vmatprep.subr.mxu0 0.0
    %820 = vmatpush2.msra.mxu0 0.0
    %821 = vmatprep.subr.mxu0 0.0
    %822 = vmatpush2.msra.mxu0 0.0
    %823 = vmatprep.mubr.f32.mxu0 0.0
    %824 = vmatmul.mubr.f32.gmra.mxu0 %v757
    %v825 = vpop.f32.mrf.mxu0
    %v826 = vadd.f32 0.0, %v825
    %v827 = vpop.f32.mrf.mxu0
    %828 = vdwg.mxu0
    %v830 = vrot.slane %v826, 6
    %v832 = vadd.f32 %v210, %v830
    %v833 = vxor.u32 %v832, 2147483648
    %v834 = vmul.f32 %v833, 1.442695
    %v835 = vpow.pop %v834
    %v836 = vadd.f32 %v835, 1.0
    %v837 = vrcp.pop %v836
    %v838 = vmul.f32 1.0, %v837
    %v839 = vadd.f32 %v826, %v299
    %v841 = vrot.slane %v839, 6
    %842 = vrot.lane.b32.xlu0 %v841, 64
    %v843 = vpop.permute.xlu0 %842
    %v845 = vmul.f32 %v838, %v843
    %847 = vrot.lane.b32.xlu0 %v845, 64
    %v848 = vpop.permute.xlu0 %847
    %v850 = vadd.f32 %v210, %v848
    %v851 = vtanh.pop %v850
    %v852 = vsub.f32 1.0, %v838
    %854 = vrot.lane.b32.xlu0 %v851, 96
    %v855 = vpop.permute.xlu0 %854
    %v857 = vmul.f32 %v852, %v855
    %v858 = vrot.slane %v753, 6
    %v860 = vmul.f32 %v838, %v858
    %v861 = vadd.f32 %v857, %v860
    %v863 = vrot.slane %v861, 2
    %864 = vrot.lane.b32.xlu0 %v863, 96
    %v865 = vpop.permute.xlu0 %864
    %v866 = vsel %vm214, %v865, 0
    %868 = vmatprep.subr.mxu0 0.0
    %869 = vmatpush1.msra.mxu0 0.0
    %870 = vmatprep.subr.mxu0 0.0
    %871 = vmatpush1.msra.mxu0 0.0
    %872 = vmatprep.subr.mxu0 0.0
    %873 = vmatpush1.msra.mxu0 0.0
    %874 = vmatprep.subr.mxu0 0.0
    %875 = vmatpush1.msra.mxu0 0.0
    %876 = vmatprep.subr.mxu0 0.0
    %877 = vmatpush1.msra.mxu0 0.0
    %878 = vmatprep.subr.mxu0 0.0
    %879 = vmatpush1.msra.mxu0 0.0
    %880 = vmatprep.subr.mxu0 0.0
    %881 = vmatpush1.msra.mxu0 0.0
    %882 = vmatprep.subr.mxu0 0.0
    %883 = vmatpush1.msra.mxu0 0.0
    %884 = vmatprep.subr.mxu0 0.0
    %885 = vmatpush1.msra.mxu0 0.0
    %886 = vmatprep.subr.mxu0 0.0
    %887 = vmatpush1.msra.mxu0 0.0
    %888 = vmatprep.subr.mxu0 0.0
    %889 = vmatpush1.msra.mxu0 0.0
    %890 = vmatprep.subr.mxu0 0.0
    %891 = vmatpush1.msra.mxu0 0.0
    %892 = vmatprep.subr.mxu0 0.0
    %893 = vmatpush1.msra.mxu0 %v76
    %894 = vmatprep.subr.mxu0 0.0
    %895 = vmatpush1.msra.mxu0 %v75
    %896 = vmatprep.subr.mxu0 0.0
    %897 = vmatpush1.msra.mxu0 %v74
    %898 = vmatprep.subr.mxu0 0.0
    %899 = vmatpush1.msra.mxu0 %v73
    %900 = vmatprep.subr.mxu0 0.0
    %901 = vmatpush2.msra.mxu0 0.0
    %902 = vmatprep.subr.mxu0 0.0
    %903 = vmatpush2.msra.mxu0 0.0
    %904 = vmatprep.subr.mxu0 0.0
    %905 = vmatpush2.msra.mxu0 0.0
    %906 = vmatprep.subr.mxu0 0.0
    %907 = vmatpush2.msra.mxu0 0.0
    %908 = vmatprep.subr.mxu0 0.0
    %909 = vmatpush2.msra.mxu0 0.0
    %910 = vmatprep.subr.mxu0 0.0
    %911 = vmatpush2.msra.mxu0 0.0
    %912 = vmatprep.subr.mxu0 0.0
    %913 = vmatpush2.msra.mxu0 0.0
    %914 = vmatprep.subr.mxu0 0.0
    %915 = vmatpush2.msra.mxu0 0.0
    %916 = vmatprep.subr.mxu0 0.0
    %917 = vmatpush2.msra.mxu0 0.0
    %918 = vmatprep.subr.mxu0 0.0
    %919 = vmatpush2.msra.mxu0 0.0
    %920 = vmatprep.subr.mxu0 0.0
    %921 = vmatpush2.msra.mxu0 0.0
    %922 = vmatprep.subr.mxu0 0.0
    %923 = vmatpush2.msra.mxu0 0.0
    %924 = vmatprep.subr.mxu0 0.0
    %925 = vmatpush2.msra.mxu0 0.0
    %926 = vmatprep.subr.mxu0 0.0
    %927 = vmatpush2.msra.mxu0 0.0
    %928 = vmatprep.subr.mxu0 0.0
    %929 = vmatpush2.msra.mxu0 0.0
    %930 = vmatprep.subr.mxu0 0.0
    %931 = vmatpush2.msra.mxu0 0.0
    %932 = vmatprep.mubr.f32.mxu0 0.0
    %933 = vmatmul.mubr.f32.gmra.mxu0 %v866
    %v934 = vpop.f32.mrf.mxu0
    %v935 = vadd.f32 0.0, %v934
    %v936 = vpop.f32.mrf.mxu0
    %937 = vdwg.mxu0
    %v939 = vrot.slane %v935, 4
    %v941 = vadd.f32 %v210, %v939
    %v942 = vxor.u32 %v941, 2147483648
    %v943 = vmul.f32 %v942, 1.442695
    %v944 = vpow.pop %v943
    %v945 = vadd.f32 %v944, 1.0
    %v946 = vrcp.pop %v945
    %v947 = vmul.f32 1.0, %v946
    %v948 = vadd.f32 %v935, %v299
    %v950 = vrot.slane %v948, 4
    %951 = vrot.lane.b32.xlu0 %v950, 64
    %v952 = vpop.permute.xlu0 %951
    %v954 = vmul.f32 %v947, %v952
    %956 = vrot.lane.b32.xlu0 %v954, 64
    %v957 = vpop.permute.xlu0 %956
    %v959 = vadd.f32 %v210, %v957
    %v960 = vtanh.pop %v959
    %v961 = vsub.f32 1.0, %v947
    %963 = vrot.lane.b32.xlu0 %v960, 96
    %v964 = vpop.permute.xlu0 %963
    %v966 = vmul.f32 %v961, %v964
    %v967 = vrot.slane %v861, 6
    %v969 = vmul.f32 %v947, %v967
    %v970 = vadd.f32 %v966, %v969
    %v972 = vrot.slane %v970, 4
    %973 = vrot.lane.b32.xlu0 %v972, 96
    %v974 = vpop.permute.xlu0 %973
    %v975 = vsel %vm214, %v974, 0
    %977 = vmatprep.subr.mxu0 0.0
    %978 = vmatpush1.msra.mxu0 0.0
    %979 = vmatprep.subr.mxu0 0.0
    %980 = vmatpush1.msra.mxu0 0.0
    %981 = vmatprep.subr.mxu0 0.0
    %982 = vmatpush1.msra.mxu0 0.0
    %983 = vmatprep.subr.mxu0 0.0
    %984 = vmatpush1.msra.mxu0 0.0
    %985 = vmatprep.subr.mxu0 0.0
    %986 = vmatpush1.msra.mxu0 0.0
    %987 = vmatprep.subr.mxu0 0.0
    %988 = vmatpush1.msra.mxu0 0.0
    %989 = vmatprep.subr.mxu0 0.0
    %990 = vmatpush1.msra.mxu0 0.0
    %991 = vmatprep.subr.mxu0 0.0
    %992 = vmatpush1.msra.mxu0 0.0
    %993 = vmatprep.subr.mxu0 0.0
    %994 = vmatpush1.msra.mxu0 0.0
    %995 = vmatprep.subr.mxu0 0.0
    %996 = vmatpush1.msra.mxu0 0.0
    %997 = vmatprep.subr.mxu0 0.0
    %998 = vmatpush1.msra.mxu0 0.0
    %999 = vmatprep.subr.mxu0 0.0
    %1000 = vmatpush1.msra.mxu0 0.0
    %1001 = vmatprep.subr.mxu0 0.0
    %1002 = vmatpush1.msra.mxu0 %v76
    %1003 = vmatprep.subr.mxu0 0.0
    %1004 = vmatpush1.msra.mxu0 %v75
    %1005 = vmatprep.subr.mxu0 0.0
    %1006 = vmatpush1.msra.mxu0 %v74
    %1007 = vmatprep.subr.mxu0 0.0
    %1008 = vmatpush1.msra.mxu0 %v73
    %1009 = vmatprep.subr.mxu0 0.0
    %1010 = vmatpush2.msra.mxu0 0.0
    %1011 = vmatprep.subr.mxu0 0.0
    %1012 = vmatpush2.msra.mxu0 0.0
    %1013 = vmatprep.subr.mxu0 0.0
    %1014 = vmatpush2.msra.mxu0 0.0
    %1015 = vmatprep.subr.mxu0 0.0
    %1016 = vmatpush2.msra.mxu0 0.0
    %1017 = vmatprep.subr.mxu0 0.0
    %1018 = vmatpush2.msra.mxu0 0.0
    %1019 = vmatprep.subr.mxu0 0.0
    %1020 = vmatpush2.msra.mxu0 0.0
    %1021 = vmatprep.subr.mxu0 0.0
    %1022 = vmatpush2.msra.mxu0 0.0
    %1023 = vmatprep.subr.mxu0 0.0
    %1024 = vmatpush2.msra.mxu0 0.0
    %1025 = vmatprep.subr.mxu0 0.0
    %1026 = vmatpush2.msra.mxu0 0.0
    %1027 = vmatprep.subr.mxu0 0.0
    %1028 = vmatpush2.msra.mxu0 0.0
    %1029 = vmatprep.subr.mxu0 0.0
    %1030 = vmatpush2.msra.mxu0 0.0
    %1031 = vmatprep.subr.mxu0 0.0
    %1032 = vmatpush2.msra.mxu0 0.0
    %1033 = vmatprep.subr.mxu0 0.0
    %1034 = vmatpush2.msra.mxu0 0.0
    %1035 = vmatprep.subr.mxu0 0.0
    %1036 = vmatpush2.msra.mxu0 0.0
    %1037 = vmatprep.subr.mxu0 0.0
    %1038 = vmatpush2.msra.mxu0 0.0
    %1039 = vmatprep.subr.mxu0 0.0
    %1040 = vmatpush2.msra.mxu0 0.0
    %1041 = vmatprep.mubr.f32.mxu0 0.0
    %1042 = vmatmul.mubr.f32.gmra.mxu0 %v975
    %v1043 = vpop.f32.mrf.mxu0
    %v1044 = vadd.f32 0.0, %v1043
    %v1045 = vpop.f32.mrf.mxu0
    %1046 = vdwg.mxu0
    %v1048 = vrot.slane %v1044, 2
    %v1050 = vadd.f32 %v210, %v1048
    %v1051 = vxor.u32 %v1050, 2147483648
    %v1052 = vmul.f32 %v1051, 1.442695
    %v1053 = vpow.pop %v1052
    %v1054 = vadd.f32 %v1053, 1.0
    %v1055 = vrcp.pop %v1054
    %v1056 = vmul.f32 1.0, %v1055
    %v1057 = vadd.f32 %v1044, %v299
    %v1059 = vrot.slane %v1057, 2
    %1060 = vrot.lane.b32.xlu0 %v1059, 64
    %v1061 = vpop.permute.xlu0 %1060
    %v1063 = vmul.f32 %v1056, %v1061
    %1065 = vrot.lane.b32.xlu0 %v1063, 64
    %v1066 = vpop.permute.xlu0 %1065
    %v1068 = vadd.f32 %v210, %v1066
    %v1069 = vtanh.pop %v1068
    %v1070 = vsub.f32 1.0, %v1056
    %1072 = vrot.lane.b32.xlu0 %v1069, 96
    %v1073 = vpop.permute.xlu0 %1072
    %v1075 = vmul.f32 %v1070, %v1073
    %v1076 = vrot.slane %v970, 6
    %v1078 = vmul.f32 %v1056, %v1076
    %v1079 = vadd.f32 %v1075, %v1078
    %v1080 = vld [vmem:[%s7] sm:$0xff]
    %v1081 = vld [vmem:[%s7 + $0x8] sm:$0xff]
    %v1082 = vld [vmem:[%s7 + $0x10] sm:$0xff]
    %v1083 = vld [vmem:[%s7 + $0x18] sm:$0xff]
    %v1084 = vld [vmem:[%s8] sm:$0xff]
    %v1085 = vld [vmem:[%s8 + $0x8] sm:$0xff]
    %v1086 = vld [vmem:[%s8 + $0x10] sm:$0xff]
    %v1087 = vld [vmem:[%s8 + $0x18] sm:$0xff]
    %v1088 = vld [vmem:[%s9] sm:$0x1]
    %v1089 = vld [vmem:[%s10] sm:$0x1]
    %v1090 = vadd.f32 %v1088, %v1089
    %v1091 = vsel %vm80, %v1090, %v1088
    %v1092 = vsel %vm118, %v323, %v431
    %v1093 = vsel %vm120, %v1092, %v540
    %v1094 = vsel %vm122, %v1093, %v649
    %v1095 = vsel %vm118, %v753, %v861
    %v1096 = vsel %vm120, %v1095, %v970
    %v1097 = vsel %vm122, %v1096, %v1079
    %v1098 = vlaneseq
    %v1099 = vshrl.u32 %v1098, 7
    %v1100 = vsub.s32 0, %v1099
    %v1101 = vrot.slane %v1091, %v1100
    %1104 = vrot.lane.b32.xlu0 %v1094, 96
    %v1105 = vpop.permute.xlu0 %1104
    %1106 = vrot.lane.b32.xlu0 %v1097, 96
    %v1107 = vpop.permute.xlu0 %1106
    %v1108 = vsel %vm214, %v1105, 0
    %v1110 = vsel %vm214, %v1107, 0
    %1112 = vmatprep.subr.mxu0 0.0
    %1113 = vmatpush1.msra.mxu0 0.0
    %1114 = vmatprep.subr.mxu0 0.0
    %1115 = vmatpush1.msra.mxu0 0.0
    %1116 = vmatprep.subr.mxu0 0.0
    %1117 = vmatpush1.msra.mxu0 0.0
    %1118 = vmatprep.subr.mxu0 0.0
    %1119 = vmatpush1.msra.mxu0 0.0
    %1120 = vmatprep.subr.mxu0 0.0
    %1121 = vmatpush1.msra.mxu0 0.0
    %1122 = vmatprep.subr.mxu0 0.0
    %1123 = vmatpush1.msra.mxu0 0.0
    %1124 = vmatprep.subr.mxu0 0.0
    %1125 = vmatpush1.msra.mxu0 0.0
    %1126 = vmatprep.subr.mxu0 0.0
    %1127 = vmatpush1.msra.mxu0 0.0
    %1128 = vmatprep.subr.mxu0 0.0
    %1129 = vmatpush1.msra.mxu0 0.0
    %1130 = vmatprep.subr.mxu0 0.0
    %1131 = vmatpush1.msra.mxu0 0.0
    %1132 = vmatprep.subr.mxu0 0.0
    %1133 = vmatpush1.msra.mxu0 0.0
    %1134 = vmatprep.subr.mxu0 0.0
    %1135 = vmatpush1.msra.mxu0 0.0
    %1136 = vmatprep.subr.mxu0 0.0
    %1137 = vmatpush1.msra.mxu0 %v1083
    %1138 = vmatprep.subr.mxu0 0.0
    %1139 = vmatpush1.msra.mxu0 %v1082
    %1140 = vmatprep.subr.mxu0 0.0
    %1141 = vmatpush1.msra.mxu0 %v1081
    %1142 = vmatprep.subr.mxu0 0.0
    %1143 = vmatpush1.msra.mxu0 %v1080
    %1144 = vmatprep.subr.mxu0 0.0
    %1145 = vmatpush2.msra.mxu0 0.0
    %1146 = vmatprep.subr.mxu0 0.0
    %1147 = vmatpush2.msra.mxu0 0.0
    %1148 = vmatprep.subr.mxu0 0.0
    %1149 = vmatpush2.msra.mxu0 0.0
    %1150 = vmatprep.subr.mxu0 0.0
    %1151 = vmatpush2.msra.mxu0 0.0
    %1152 = vmatprep.subr.mxu0 0.0
    %1153 = vmatpush2.msra.mxu0 0.0
    %1154 = vmatprep.subr.mxu0 0.0
    %1155 = vmatpush2.msra.mxu0 0.0
    %1156 = vmatprep.subr.mxu0 0.0
    %1157 = vmatpush2.msra.mxu0 0.0
    %1158 = vmatprep.subr.mxu0 0.0
    %1159 = vmatpush2.msra.mxu0 0.0
    %1160 = vmatprep.subr.mxu0 0.0
    %1161 = vmatpush2.msra.mxu0 0.0
    %1162 = vmatprep.subr.mxu0 0.0
    %1163 = vmatpush2.msra.mxu0 0.0
    %1164 = vmatprep.subr.mxu0 0.0
    %1165 = vmatpush2.msra.mxu0 0.0
    %1166 = vmatprep.subr.mxu0 0.0
    %1167 = vmatpush2.msra.mxu0 0.0
    %1168 = vmatprep.subr.mxu0 0.0
    %1169 = vmatpush2.msra.mxu0 0.0
    %1170 = vmatprep.subr.mxu0 0.0
    %1171 = vmatpush2.msra.mxu0 0.0
    %1172 = vmatprep.subr.mxu0 0.0
    %1173 = vmatpush2.msra.mxu0 0.0
    %1174 = vmatprep.subr.mxu0 0.0
    %1175 = vmatpush2.msra.mxu0 0.0
    %1176 = vmatprep.mubr.f32.mxu0 0.0
    %1177 = vmatmul.mubr.f32.gmra.mxu0 %v1108
    %v1178 = vpop.f32.mrf.mxu0
    %v1179 = vadd.f32 %v1101, %v1178
    %v1180 = vpop.f32.mrf.mxu0
    %1181 = vmatprep.mubr.f32.mxu0 0.0
    %1182 = vmatmul.mubr.f32.gmra.mxu0 %v1110
    %v1183 = vpop.f32.mrf.mxu0
    %v1184 = vadd.f32 %v1101, %v1183
    %v1185 = vpop.f32.mrf.mxu0
    %1186 = vdwg.mxu0
    %s1187 = scalar_lea.vmem %s2, 2
    %v1188 = vld [vmem:[%s1187] sm:$0x3]
    %v1190 = vsel %vm214, %v1188, 0
    %1192 = vmatprep.subr.mxu0 0.0
    %1193 = vmatpush1.msra.mxu0 0.0
    %1194 = vmatprep.subr.mxu0 0.0
    %1195 = vmatpush1.msra.mxu0 0.0
    %1196 = vmatprep.subr.mxu0 0.0
    %1197 = vmatpush1.msra.mxu0 0.0
    %1198 = vmatprep.subr.mxu0 0.0
    %1199 = vmatpush1.msra.mxu0 0.0
    %1200 = vmatprep.subr.mxu0 0.0
    %1201 = vmatpush1.msra.mxu0 0.0
    %1202 = vmatprep.subr.mxu0 0.0
    %1203 = vmatpush1.msra.mxu0 0.0
    %1204 = vmatprep.subr.mxu0 0.0
    %1205 = vmatpush1.msra.mxu0 0.0
    %1206 = vmatprep.subr.mxu0 0.0
    %1207 = vmatpush1.msra.mxu0 0.0
    %1208 = vmatprep.subr.mxu0 0.0
    %1209 = vmatpush1.msra.mxu0 0.0
    %1210 = vmatprep.subr.mxu0 0.0
    %1211 = vmatpush1.msra.mxu0 0.0
    %1212 = vmatprep.subr.mxu0 0.0
    %1213 = vmatpush1.msra.mxu0 0.0
    %1214 = vmatprep.subr.mxu0 0.0
    %1215 = vmatpush1.msra.mxu0 0.0
    %1216 = vmatprep.subr.mxu0 0.0
    %1217 = vmatpush1.msra.mxu0 %v1087
    %1218 = vmatprep.subr.mxu0 0.0
    %1219 = vmatpush1.msra.mxu0 %v1086
    %1220 = vmatprep.subr.mxu0 0.0
    %1221 = vmatpush1.msra.mxu0 %v1085
    %1222 = vmatprep.subr.mxu0 0.0
    %1223 = vmatpush1.msra.mxu0 %v1084
    %1224 = vmatprep.subr.mxu0 0.0
    %1225 = vmatpush2.msra.mxu0 0.0
    %1226 = vmatprep.subr.mxu0 0.0
    %1227 = vmatpush2.msra.mxu0 0.0
    %1228 = vmatprep.subr.mxu0 0.0
    %1229 = vmatpush2.msra.mxu0 0.0
    %1230 = vmatprep.subr.mxu0 0.0
    %1231 = vmatpush2.msra.mxu0 0.0
    %1232 = vmatprep.subr.mxu0 0.0
    %1233 = vmatpush2.msra.mxu0 0.0
    %1234 = vmatprep.subr.mxu0 0.0
    %1235 = vmatpush2.msra.mxu0 0.0
    %1236 = vmatprep.subr.mxu0 0.0
    %1237 = vmatpush2.msra.mxu0 0.0
    %1238 = vmatprep.subr.mxu0 0.0
    %1239 = vmatpush2.msra.mxu0 0.0
    %1240 = vmatprep.subr.mxu0 0.0
    %1241 = vmatpush2.msra.mxu0 0.0
    %1242 = vmatprep.subr.mxu0 0.0
    %1243 = vmatpush2.msra.mxu0 0.0
    %1244 = vmatprep.subr.mxu0 0.0
    %1245 = vmatpush2.msra.mxu0 0.0
    %1246 = vmatprep.subr.mxu0 0.0
    %1247 = vmatpush2.msra.mxu0 0.0
    %1248 = vmatprep.subr.mxu0 0.0
    %1249 = vmatpush2.msra.mxu0 0.0
    %1250 = vmatprep.subr.mxu0 0.0
    %1251 = vmatpush2.msra.mxu0 0.0
    %1252 = vmatprep.subr.mxu0 0.0
    %1253 = vmatpush2.msra.mxu0 0.0
    %1254 = vmatprep.subr.mxu0 0.0
    %1255 = vmatpush2.msra.mxu0 0.0
    %1256 = vmatprep.mubr.f32.mxu0 0.0
    %1257 = vmatmul.mubr.f32.gmra.mxu0 %v1190
    %v1258 = vpop.f32.mrf.mxu0
    %v1259 = vadd.f32 0.0, %v1258
    %v1260 = vpop.f32.mrf.mxu0
    %1261 = vdwg.mxu0
    %v1262 = vadd.f32 %v1179, %v1259
    %v1263 = vxor.u32 %v1262, 2147483648
    %v1264 = vmul.f32 %v1263, 1.442695
    %v1265 = vpow.pop %v1264
    %v1266 = vadd.f32 %v1265, 1.0
    %v1267 = vrcp.pop %v1266
    %v1268 = vmul.f32 1.0, %v1267
    %v1270 = vlaneseq
    %v1271 = vshrl.u32 %v1270, 7
    %v1272 = vsub.s32 0, %v1271
    %v1273 = vrot.slane %v1089, %v1272
    %v1275 = vadd.f32 %v1259, %v1273
    %1277 = vrot.lane.b32.xlu0 %v1275, 64
    %v1278 = vpop.permute.xlu0 %1277
    %v1280 = vmul.f32 %v1268, %v1278
    %1282 = vrot.lane.b32.xlu0 %v1280, 64
    %v1283 = vpop.permute.xlu0 %1282
    %v1285 = vadd.f32 %v1179, %v1283
    %v1286 = vtanh.pop %v1285
    %v1287 = vsub.f32 1.0, %v1268
    %1289 = vrot.lane.b32.xlu0 %v1286, 96
    %v1290 = vpop.permute.xlu0 %1289
    %v1292 = vmul.f32 %v1287, %v1290
    %1293 = vrot.lane.b32.xlu0 %v1188, 32
    %v1294 = vpop.permute.xlu0 %1293
    %v1296 = vmul.f32 %v1268, %v1294
    %v1297 = vadd.f32 %v1292, %v1296
    %1299 = vrot.lane.b32.xlu0 %v1297, 96
    %v1300 = vpop.permute.xlu0 %1299
    %v1301 = vsel %vm214, %v1300, 0
    %1303 = vmatprep.subr.mxu0 0.0
    %1304 = vmatpush1.msra.mxu0 0.0
    %1305 = vmatprep.subr.mxu0 0.0
    %1306 = vmatpush1.msra.mxu0 0.0
    %1307 = vmatprep.subr.mxu0 0.0
    %1308 = vmatpush1.msra.mxu0 0.0
    %1309 = vmatprep.subr.mxu0 0.0
    %1310 = vmatpush1.msra.mxu0 0.0
    %1311 = vmatprep.subr.mxu0 0.0
    %1312 = vmatpush1.msra.mxu0 0.0
    %1313 = vmatprep.subr.mxu0 0.0
    %1314 = vmatpush1.msra.mxu0 0.0
    %1315 = vmatprep.subr.mxu0 0.0
    %1316 = vmatpush1.msra.mxu0 0.0
    %1317 = vmatprep.subr.mxu0 0.0
    %1318 = vmatpush1.msra.mxu0 0.0
    %1319 = vmatprep.subr.mxu0 0.0
    %1320 = vmatpush1.msra.mxu0 0.0
    %1321 = vmatprep.subr.mxu0 0.0
    %1322 = vmatpush1.msra.mxu0 0.0
    %1323 = vmatprep.subr.mxu0 0.0
    %1324 = vmatpush1.msra.mxu0 0.0
    %1325 = vmatprep.subr.mxu0 0.0
    %1326 = vmatpush1.msra.mxu0 0.0
    %1327 = vmatprep.subr.mxu0 0.0
    %1328 = vmatpush1.msra.mxu0 %v1087
    %1329 = vmatprep.subr.mxu0 0.0
    %1330 = vmatpush1.msra.mxu0 %v1086
    %1331 = vmatprep.subr.mxu0 0.0
    %1332 = vmatpush1.msra.mxu0 %v1085
    %1333 = vmatprep.subr.mxu0 0.0
    %1334 = vmatpush1.msra.mxu0 %v1084
    %1335 = vmatprep.subr.mxu0 0.0
    %1336 = vmatpush2.msra.mxu0 0.0
    %1337 = vmatprep.subr.mxu0 0.0
    %1338 = vmatpush2.msra.mxu0 0.0
    %1339 = vmatprep.subr.mxu0 0.0
    %1340 = vmatpush2.msra.mxu0 0.0
    %1341 = vmatprep.subr.mxu0 0.0
    %1342 = vmatpush2.msra.mxu0 0.0
    %1343 = vmatprep.subr.mxu0 0.0
    %1344 = vmatpush2.msra.mxu0 0.0
    %1345 = vmatprep.subr.mxu0 0.0
    %1346 = vmatpush2.msra.mxu0 0.0
    %1347 = vmatprep.subr.mxu0 0.0
    %1348 = vmatpush2.msra.mxu0 0.0
    %1349 = vmatprep.subr.mxu0 0.0
    %1350 = vmatpush2.msra.mxu0 0.0
    %1351 = vmatprep.subr.mxu0 0.0
    %1352 = vmatpush2.msra.mxu0 0.0
    %1353 = vmatprep.subr.mxu0 0.0
    %1354 = vmatpush2.msra.mxu0 0.0
    %1355 = vmatprep.subr.mxu0 0.0
    %1356 = vmatpush2.msra.mxu0 0.0
    %1357 = vmatprep.subr.mxu0 0.0
    %1358 = vmatpush2.msra.mxu0 0.0
    %1359 = vmatprep.subr.mxu0 0.0
    %1360 = vmatpush2.msra.mxu0 0.0
    %1361 = vmatprep.subr.mxu0 0.0
    %1362 = vmatpush2.msra.mxu0 0.0
    %1363 = vmatprep.subr.mxu0 0.0
    %1364 = vmatpush2.msra.mxu0 0.0
    %1365 = vmatprep.subr.mxu0 0.0
    %1366 = vmatpush2.msra.mxu0 0.0
    %1367 = vmatprep.mubr.f32.mxu0 0.0
    %1368 = vmatmul.mubr.f32.gmra.mxu0 %v1301
    %v1369 = vpop.f32.mrf.mxu0
    %v1370 = vadd.f32 0.0, %v1369
    %v1371 = vpop.f32.mrf.mxu0
    %1372 = vdwg.mxu0
    %v1374 = vrot.slane %v1370, 6
    %v1376 = vadd.f32 %v1179, %v1374
    %v1377 = vxor.u32 %v1376, 2147483648
    %v1378 = vmul.f32 %v1377, 1.442695
    %v1379 = vpow.pop %v1378
    %v1380 = vadd.f32 %v1379, 1.0
    %v1381 = vrcp.pop %v1380
    %v1382 = vmul.f32 1.0, %v1381
    %v1383 = vadd.f32 %v1370, %v1273
    %v1385 = vrot.slane %v1383, 6
    %1386 = vrot.lane.b32.xlu0 %v1385, 64
    %v1387 = vpop.permute.xlu0 %1386
    %v1389 = vmul.f32 %v1382, %v1387
    %1391 = vrot.lane.b32.xlu0 %v1389, 64
    %v1392 = vpop.permute.xlu0 %1391
    %v1394 = vadd.f32 %v1179, %v1392
    %v1395 = vtanh.pop %v1394
    %v1396 = vsub.f32 1.0, %v1382
    %1398 = vrot.lane.b32.xlu0 %v1395, 96
    %v1399 = vpop.permute.xlu0 %1398
    %v1401 = vmul.f32 %v1396, %v1399
    %v1402 = vrot.slane %v1297, 6
    %v1404 = vmul.f32 %v1382, %v1402
    %v1405 = vadd.f32 %v1401, %v1404
    %v1407 = vrot.slane %v1405, 2
    %1408 = vrot.lane.b32.xlu0 %v1407, 96
    %v1409 = vpop.permute.xlu0 %1408
    %v1410 = vsel %vm214, %v1409, 0
    %1412 = vmatprep.subr.mxu0 0.0
    %1413 = vmatpush1.msra.mxu0 0.0
    %1414 = vmatprep.subr.mxu0 0.0
    %1415 = vmatpush1.msra.mxu0 0.0
    %1416 = vmatprep.subr.mxu0 0.0
    %1417 = vmatpush1.msra.mxu0 0.0
    %1418 = vmatprep.subr.mxu0 0.0
    %1419 = vmatpush1.msra.mxu0 0.0
    %1420 = vmatprep.subr.mxu0 0.0
    %1421 = vmatpush1.msra.mxu0 0.0
    %1422 = vmatprep.subr.mxu0 0.0
    %1423 = vmatpush1.msra.mxu0 0.0
    %1424 = vmatprep.subr.mxu0 0.0
    %1425 = vmatpush1.msra.mxu0 0.0
    %1426 = vmatprep.subr.mxu0 0.0
    %1427 = vmatpush1.msra.mxu0 0.0
    %1428 = vmatprep.subr.mxu0 0.0
    %1429 = vmatpush1.msra.mxu0 0.0
    %1430 = vmatprep.subr.mxu0 0.0
    %1431 = vmatpush1.msra.mxu0 0.0
    %1432 = vmatprep.subr.mxu0 0.0
    %1433 = vmatpush1.msra.mxu0 0.0
    %1434 = vmatprep.subr.mxu0 0.0
    %1435 = vmatpush1.msra.mxu0 0.0
    %1436 = vmatprep.subr.mxu0 0.0
    %1437 = vmatpush1.msra.mxu0 %v1087
    %1438 = vmatprep.subr.mxu0 0.0
    %1439 = vmatpush1.msra.mxu0 %v1086
    %1440 = vmatprep.subr.mxu0 0.0
    %1441 = vmatpush1.msra.mxu0 %v1085
    %1442 = vmatprep.subr.mxu0 0.0
    %1443 = vmatpush1.msra.mxu0 %v1084
    %1444 = vmatprep.subr.mxu0 0.0
    %1445 = vmatpush2.msra.mxu0 0.0
    %1446 = vmatprep.subr.mxu0 0.0
    %1447 = vmatpush2.msra.mxu0 0.0
    %1448 = vmatprep.subr.mxu0 0.0
    %1449 = vmatpush2.msra.mxu0 0.0
    %1450 = vmatprep.subr.mxu0 0.0
    %1451 = vmatpush2.msra.mxu0 0.0
    %1452 = vmatprep.subr.mxu0 0.0
    %1453 = vmatpush2.msra.mxu0 0.0
    %1454 = vmatprep.subr.mxu0 0.0
    %1455 = vmatpush2.msra.mxu0 0.0
    %1456 = vmatprep.subr.mxu0 0.0
    %1457 = vmatpush2.msra.mxu0 0.0
    %1458 = vmatprep.subr.mxu0 0.0
    %1459 = vmatpush2.msra.mxu0 0.0
    %1460 = vmatprep.subr.mxu0 0.0
    %1461 = vmatpush2.msra.mxu0 0.0
    %1462 = vmatprep.subr.mxu0 0.0
    %1463 = vmatpush2.msra.mxu0 0.0
    %1464 = vmatprep.subr.mxu0 0.0
    %1465 = vmatpush2.msra.mxu0 0.0
    %1466 = vmatprep.subr.mxu0 0.0
    %1467 = vmatpush2.msra.mxu0 0.0
    %1468 = vmatprep.subr.mxu0 0.0
    %1469 = vmatpush2.msra.mxu0 0.0
    %1470 = vmatprep.subr.mxu0 0.0
    %1471 = vmatpush2.msra.mxu0 0.0
    %1472 = vmatprep.subr.mxu0 0.0
    %1473 = vmatpush2.msra.mxu0 0.0
    %1474 = vmatprep.subr.mxu0 0.0
    %1475 = vmatpush2.msra.mxu0 0.0
    %1476 = vmatprep.mubr.f32.mxu0 0.0
    %1477 = vmatmul.mubr.f32.gmra.mxu0 %v1410
    %v1478 = vpop.f32.mrf.mxu0
    %v1479 = vadd.f32 0.0, %v1478
    %v1480 = vpop.f32.mrf.mxu0
    %1481 = vdwg.mxu0
    %v1483 = vrot.slane %v1479, 4
    %v1485 = vadd.f32 %v1179, %v1483
    %v1486 = vxor.u32 %v1485, 2147483648
    %v1487 = vmul.f32 %v1486, 1.442695
    %v1488 = vpow.pop %v1487
    %v1489 = vadd.f32 %v1488, 1.0
    %v1490 = vrcp.pop %v1489
    %v1491 = vmul.f32 1.0, %v1490
    %v1492 = vadd.f32 %v1479, %v1273
    %v1494 = vrot.slane %v1492, 4
    %1495 = vrot.lane.b32.xlu0 %v1494, 64
    %v1496 = vpop.permute.xlu0 %1495
    %v1498 = vmul.f32 %v1491, %v1496
    %1500 = vrot.lane.b32.xlu0 %v1498, 64
    %v1501 = vpop.permute.xlu0 %1500
    %v1503 = vadd.f32 %v1179, %v1501
    %v1504 = vtanh.pop %v1503
    %v1505 = vsub.f32 1.0, %v1491
    %1507 = vrot.lane.b32.xlu0 %v1504, 96
    %v1508 = vpop.permute.xlu0 %1507
    %v1510 = vmul.f32 %v1505, %v1508
    %v1511 = vrot.slane %v1405, 6
    %v1513 = vmul.f32 %v1491, %v1511
    %v1514 = vadd.f32 %v1510, %v1513
    %v1516 = vrot.slane %v1514, 4
    %1517 = vrot.lane.b32.xlu0 %v1516, 96
    %v1518 = vpop.permute.xlu0 %1517
    %v1519 = vsel %vm214, %v1518, 0
    %1521 = vmatprep.subr.mxu0 0.0
    %1522 = vmatpush1.msra.mxu0 0.0
    %1523 = vmatprep.subr.mxu0 0.0
    %1524 = vmatpush1.msra.mxu0 0.0
    %1525 = vmatprep.subr.mxu0 0.0
    %1526 = vmatpush1.msra.mxu0 0.0
    %1527 = vmatprep.subr.mxu0 0.0
    %1528 = vmatpush1.msra.mxu0 0.0
    %1529 = vmatprep.subr.mxu0 0.0
    %1530 = vmatpush1.msra.mxu0 0.0
    %1531 = vmatprep.subr.mxu0 0.0
    %1532 = vmatpush1.msra.mxu0 0.0
    %1533 = vmatprep.subr.mxu0 0.0
    %1534 = vmatpush1.msra.mxu0 0.0
    %1535 = vmatprep.subr.mxu0 0.0
    %1536 = vmatpush1.msra.mxu0 0.0
    %1537 = vmatprep.subr.mxu0 0.0
    %1538 = vmatpush1.msra.mxu0 0.0
    %1539 = vmatprep.subr.mxu0 0.0
    %1540 = vmatpush1.msra.mxu0 0.0
    %1541 = vmatprep.subr.mxu0 0.0
    %1542 = vmatpush1.msra.mxu0 0.0
    %1543 = vmatprep.subr.mxu0 0.0
    %1544 = vmatpush1.msra.mxu0 0.0
    %1545 = vmatprep.subr.mxu0 0.0
    %1546 = vmatpush1.msra.mxu0 %v1087
    %1547 = vmatprep.subr.mxu0 0.0
    %1548 = vmatpush1.msra.mxu0 %v1086
    %1549 = vmatprep.subr.mxu0 0.0
    %1550 = vmatpush1.msra.mxu0 %v1085
    %1551 = vmatprep.subr.mxu0 0.0
    %1552 = vmatpush1.msra.mxu0 %v1084
    %1553 = vmatprep.subr.mxu0 0.0
    %1554 = vmatpush2.msra.mxu0 0.0
    %1555 = vmatprep.subr.mxu0 0.0
    %1556 = vmatpush2.msra.mxu0 0.0
    %1557 = vmatprep.subr.mxu0 0.0
    %1558 = vmatpush2.msra.mxu0 0.0
    %1559 = vmatprep.subr.mxu0 0.0
    %1560 = vmatpush2.msra.mxu0 0.0
    %1561 = vmatprep.subr.mxu0 0.0
    %1562 = vmatpush2.msra.mxu0 0.0
    %1563 = vmatprep.subr.mxu0 0.0
    %1564 = vmatpush2.msra.mxu0 0.0
    %1565 = vmatprep.subr.mxu0 0.0
    %1566 = vmatpush2.msra.mxu0 0.0
    %1567 = vmatprep.subr.mxu0 0.0
    %1568 = vmatpush2.msra.mxu0 0.0
    %1569 = vmatprep.subr.mxu0 0.0
    %1570 = vmatpush2.msra.mxu0 0.0
    %1571 = vmatprep.subr.mxu0 0.0
    %1572 = vmatpush2.msra.mxu0 0.0
    %1573 = vmatprep.subr.mxu0 0.0
    %1574 = vmatpush2.msra.mxu0 0.0
    %1575 = vmatprep.subr.mxu0 0.0
    %1576 = vmatpush2.msra.mxu0 0.0
    %1577 = vmatprep.subr.mxu0 0.0
    %1578 = vmatpush2.msra.mxu0 0.0
    %1579 = vmatprep.subr.mxu0 0.0
    %1580 = vmatpush2.msra.mxu0 0.0
    %1581 = vmatprep.subr.mxu0 0.0
    %1582 = vmatpush2.msra.mxu0 0.0
    %1583 = vmatprep.subr.mxu0 0.0
    %1584 = vmatpush2.msra.mxu0 0.0
    %1585 = vmatprep.mubr.f32.mxu0 0.0
    %1586 = vmatmul.mubr.f32.gmra.mxu0 %v1519
    %v1587 = vpop.f32.mrf.mxu0
    %v1588 = vadd.f32 0.0, %v1587
    %v1589 = vpop.f32.mrf.mxu0
    %1590 = vdwg.mxu0
    %v1592 = vrot.slane %v1588, 2
    %v1594 = vadd.f32 %v1179, %v1592
    %v1595 = vxor.u32 %v1594, 2147483648
    %v1596 = vmul.f32 %v1595, 1.442695
    %v1597 = vpow.pop %v1596
    %v1598 = vadd.f32 %v1597, 1.0
    %v1599 = vrcp.pop %v1598
    %v1600 = vmul.f32 1.0, %v1599
    %v1601 = vadd.f32 %v1588, %v1273
    %v1603 = vrot.slane %v1601, 2
    %1604 = vrot.lane.b32.xlu0 %v1603, 64
    %v1605 = vpop.permute.xlu0 %1604
    %v1607 = vmul.f32 %v1600, %v1605
    %1609 = vrot.lane.b32.xlu0 %v1607, 64
    %v1610 = vpop.permute.xlu0 %1609
    %v1612 = vadd.f32 %v1179, %v1610
    %v1613 = vtanh.pop %v1612
    %v1614 = vsub.f32 1.0, %v1600
    %1616 = vrot.lane.b32.xlu0 %v1613, 96
    %v1617 = vpop.permute.xlu0 %1616
    %v1619 = vmul.f32 %v1614, %v1617
    %v1620 = vrot.slane %v1514, 6
    %v1622 = vmul.f32 %v1600, %v1620
    %v1623 = vadd.f32 %v1619, %v1622
    %v1625 = vrot.slane %v1623, 6
    %1626 = vrot.lane.b32.xlu0 %v1625, 96
    %v1627 = vpop.permute.xlu0 %1626
    %v1628 = vsel %vm214, %v1627, 0
    %1630 = vmatprep.subr.mxu0 0.0
    %1631 = vmatpush1.msra.mxu0 0.0
    %1632 = vmatprep.subr.mxu0 0.0
    %1633 = vmatpush1.msra.mxu0 0.0
    %1634 = vmatprep.subr.mxu0 0.0
    %1635 = vmatpush1.msra.mxu0 0.0
    %1636 = vmatprep.subr.mxu0 0.0
    %1637 = vmatpush1.msra.mxu0 0.0
    %1638 = vmatprep.subr.mxu0 0.0
    %1639 = vmatpush1.msra.mxu0 0.0
    %1640 = vmatprep.subr.mxu0 0.0
    %1641 = vmatpush1.msra.mxu0 0.0
    %1642 = vmatprep.subr.mxu0 0.0
    %1643 = vmatpush1.msra.mxu0 0.0
    %1644 = vmatprep.subr.mxu0 0.0
    %1645 = vmatpush1.msra.mxu0 0.0
    %1646 = vmatprep.subr.mxu0 0.0
    %1647 = vmatpush1.msra.mxu0 0.0
    %1648 = vmatprep.subr.mxu0 0.0
    %1649 = vmatpush1.msra.mxu0 0.0
    %1650 = vmatprep.subr.mxu0 0.0
    %1651 = vmatpush1.msra.mxu0 0.0
    %1652 = vmatprep.subr.mxu0 0.0
    %1653 = vmatpush1.msra.mxu0 0.0
    %1654 = vmatprep.subr.mxu0 0.0
    %1655 = vmatpush1.msra.mxu0 %v1087
    %1656 = vmatprep.subr.mxu0 0.0
    %1657 = vmatpush1.msra.mxu0 %v1086
    %1658 = vmatprep.subr.mxu0 0.0
    %1659 = vmatpush1.msra.mxu0 %v1085
    %1660 = vmatprep.subr.mxu0 0.0
    %1661 = vmatpush1.msra.mxu0 %v1084
    %1662 = vmatprep.subr.mxu0 0.0
    %1663 = vmatpush2.msra.mxu0 0.0
    %1664 = vmatprep.subr.mxu0 0.0
    %1665 = vmatpush2.msra.mxu0 0.0
    %1666 = vmatprep.subr.mxu0 0.0
    %1667 = vmatpush2.msra.mxu0 0.0
    %1668 = vmatprep.subr.mxu0 0.0
    %1669 = vmatpush2.msra.mxu0 0.0
    %1670 = vmatprep.subr.mxu0 0.0
    %1671 = vmatpush2.msra.mxu0 0.0
    %1672 = vmatprep.subr.mxu0 0.0
    %1673 = vmatpush2.msra.mxu0 0.0
    %1674 = vmatprep.subr.mxu0 0.0
    %1675 = vmatpush2.msra.mxu0 0.0
    %1676 = vmatprep.subr.mxu0 0.0
    %1677 = vmatpush2.msra.mxu0 0.0
    %1678 = vmatprep.subr.mxu0 0.0
    %1679 = vmatpush2.msra.mxu0 0.0
    %1680 = vmatprep.subr.mxu0 0.0
    %1681 = vmatpush2.msra.mxu0 0.0
    %1682 = vmatprep.subr.mxu0 0.0
    %1683 = vmatpush2.msra.mxu0 0.0
    %1684 = vmatprep.subr.mxu0 0.0
    %1685 = vmatpush2.msra.mxu0 0.0
    %1686 = vmatprep.subr.mxu0 0.0
    %1687 = vmatpush2.msra.mxu0 0.0
    %1688 = vmatprep.subr.mxu0 0.0
    %1689 = vmatpush2.msra.mxu0 0.0
    %1690 = vmatprep.subr.mxu0 0.0
    %1691 = vmatpush2.msra.mxu0 0.0
    %1692 = vmatprep.subr.mxu0 0.0
    %1693 = vmatpush2.msra.mxu0 0.0
    %1694 = vmatprep.mubr.f32.mxu0 0.0
    %1695 = vmatmul.mubr.f32.gmra.mxu0 %v1628
    %v1696 = vpop.f32.mrf.mxu0
    %v1697 = vadd.f32 0.0, %v1696
    %v1698 = vpop.f32.mrf.mxu0
    %1699 = vdwg.mxu0
    %v1700 = vadd.f32 %v1184, %v1697
    %v1701 = vxor.u32 %v1700, 2147483648
    %v1702 = vmul.f32 %v1701, 1.442695
    %v1703 = vpow.pop %v1702
    %v1704 = vadd.f32 %v1703, 1.0
    %v1705 = vrcp.pop %v1704
    %v1706 = vmul.f32 1.0, %v1705
    %v1707 = vadd.f32 %v1697, %v1273
    %1709 = vrot.lane.b32.xlu0 %v1707, 64
    %v1710 = vpop.permute.xlu0 %1709
    %v1712 = vmul.f32 %v1706, %v1710
    %1714 = vrot.lane.b32.xlu0 %v1712, 64
    %v1715 = vpop.permute.xlu0 %1714
    %v1717 = vadd.f32 %v1184, %v1715
    %v1718 = vtanh.pop %v1717
    %v1719 = vsub.f32 1.0, %v1706
    %1721 = vrot.lane.b32.xlu0 %v1718, 96
    %v1722 = vpop.permute.xlu0 %1721
    %v1724 = vmul.f32 %v1719, %v1722
    %v1726 = vmul.f32 %v1706, %v1625
    %v1727 = vadd.f32 %v1724, %v1726
    %1729 = vrot.lane.b32.xlu0 %v1727, 96
    %v1730 = vpop.permute.xlu0 %1729
    %v1731 = vsel %vm214, %v1730, 0
    %1733 = vmatprep.subr.mxu0 0.0
    %1734 = vmatpush1.msra.mxu0 0.0
    %1735 = vmatprep.subr.mxu0 0.0
    %1736 = vmatpush1.msra.mxu0 0.0
    %1737 = vmatprep.subr.mxu0 0.0
    %1738 = vmatpush1.msra.mxu0 0.0
    %1739 = vmatprep.subr.mxu0 0.0
    %1740 = vmatpush1.msra.mxu0 0.0
    %1741 = vmatprep.subr.mxu0 0.0
    %1742 = vmatpush1.msra.mxu0 0.0
    %1743 = vmatprep.subr.mxu0 0.0
    %1744 = vmatpush1.msra.mxu0 0.0
    %1745 = vmatprep.subr.mxu0 0.0
    %1746 = vmatpush1.msra.mxu0 0.0
    %1747 = vmatprep.subr.mxu0 0.0
    %1748 = vmatpush1.msra.mxu0 0.0
    %1749 = vmatprep.subr.mxu0 0.0
    %1750 = vmatpush1.msra.mxu0 0.0
    %1751 = vmatprep.subr.mxu0 0.0
    %1752 = vmatpush1.msra.mxu0 0.0
    %1753 = vmatprep.subr.mxu0 0.0
    %1754 = vmatpush1.msra.mxu0 0.0
    %1755 = vmatprep.subr.mxu0 0.0
    %1756 = vmatpush1.msra.mxu0 0.0
    %1757 = vmatprep.subr.mxu0 0.0
    %1758 = vmatpush1.msra.mxu0 %v1087
    %1759 = vmatprep.subr.mxu0 0.0
    %1760 = vmatpush1.msra.mxu0 %v1086
    %1761 = vmatprep.subr.mxu0 0.0
    %1762 = vmatpush1.msra.mxu0 %v1085
    %1763 = vmatprep.subr.mxu0 0.0
    %1764 = vmatpush1.msra.mxu0 %v1084
    %1765 = vmatprep.subr.mxu0 0.0
    %1766 = vmatpush2.msra.mxu0 0.0
    %1767 = vmatprep.subr.mxu0 0.0
    %1768 = vmatpush2.msra.mxu0 0.0
    %1769 = vmatprep.subr.mxu0 0.0
    %1770 = vmatpush2.msra.mxu0 0.0
    %1771 = vmatprep.subr.mxu0 0.0
    %1772 = vmatpush2.msra.mxu0 0.0
    %1773 = vmatprep.subr.mxu0 0.0
    %1774 = vmatpush2.msra.mxu0 0.0
    %1775 = vmatprep.subr.mxu0 0.0
    %1776 = vmatpush2.msra.mxu0 0.0
    %1777 = vmatprep.subr.mxu0 0.0
    %1778 = vmatpush2.msra.mxu0 0.0
    %1779 = vmatprep.subr.mxu0 0.0
    %1780 = vmatpush2.msra.mxu0 0.0
    %1781 = vmatprep.subr.mxu0 0.0
    %1782 = vmatpush2.msra.mxu0 0.0
    %1783 = vmatprep.subr.mxu0 0.0
    %1784 = vmatpush2.msra.mxu0 0.0
    %1785 = vmatprep.subr.mxu0 0.0
    %1786 = vmatpush2.msra.mxu0 0.0
    %1787 = vmatprep.subr.mxu0 0.0
    %1788 = vmatpush2.msra.mxu0 0.0
    %1789 = vmatprep.subr.mxu0 0.0
    %1790 = vmatpush2.msra.mxu0 0.0
    %1791 = vmatprep.subr.mxu0 0.0
    %1792 = vmatpush2.msra.mxu0 0.0
    %1793 = vmatprep.subr.mxu0 0.0
    %1794 = vmatpush2.msra.mxu0 0.0
    %1795 = vmatprep.subr.mxu0 0.0
    %1796 = vmatpush2.msra.mxu0 0.0
    %1797 = vmatprep.mubr.f32.mxu0 0.0
    %1798 = vmatmul.mubr.f32.gmra.mxu0 %v1731
    %v1799 = vpop.f32.mrf.mxu0
    %v1800 = vadd.f32 0.0, %v1799
    %v1801 = vpop.f32.mrf.mxu0
    %1802 = vdwg.mxu0
    %v1804 = vrot.slane %v1800, 6
    %v1806 = vadd.f32 %v1184, %v1804
    %v1807 = vxor.u32 %v1806, 2147483648
    %v1808 = vmul.f32 %v1807, 1.442695
    %v1809 = vpow.pop %v1808
    %v1810 = vadd.f32 %v1809, 1.0
    %v1811 = vrcp.pop %v1810
    %v1812 = vmul.f32 1.0, %v1811
    %v1813 = vadd.f32 %v1800, %v1273
    %v1815 = vrot.slane %v1813, 6
    %1816 = vrot.lane.b32.xlu0 %v1815, 64
    %v1817 = vpop.permute.xlu0 %1816
    %v1819 = vmul.f32 %v1812, %v1817
    %1821 = vrot.lane.b32.xlu0 %v1819, 64
    %v1822 = vpop.permute.xlu0 %1821
    %v1824 = vadd.f32 %v1184, %v1822
    %v1825 = vtanh.pop %v1824
    %v1826 = vsub.f32 1.0, %v1812
    %1828 = vrot.lane.b32.xlu0 %v1825, 96
    %v1829 = vpop.permute.xlu0 %1828
    %v1831 = vmul.f32 %v1826, %v1829
    %v1832 = vrot.slane %v1727, 6
    %v1834 = vmul.f32 %v1812, %v1832
    %v1835 = vadd.f32 %v1831, %v1834
    %v1837 = vrot.slane %v1835, 2
    %1838 = vrot.lane.b32.xlu0 %v1837, 96
    %v1839 = vpop.permute.xlu0 %1838
    %v1840 = vsel %vm214, %v1839, 0
    %1842 = vmatprep.subr.mxu0 0.0
    %1843 = vmatpush1.msra.mxu0 0.0
    %1844 = vmatprep.subr.mxu0 0.0
    %1845 = vmatpush1.msra.mxu0 0.0
    %1846 = vmatprep.subr.mxu0 0.0
    %1847 = vmatpush1.msra.mxu0 0.0
    %1848 = vmatprep.subr.mxu0 0.0
    %1849 = vmatpush1.msra.mxu0 0.0
    %1850 = vmatprep.subr.mxu0 0.0
    %1851 = vmatpush1.msra.mxu0 0.0
    %1852 = vmatprep.subr.mxu0 0.0
    %1853 = vmatpush1.msra.mxu0 0.0
    %1854 = vmatprep.subr.mxu0 0.0
    %1855 = vmatpush1.msra.mxu0 0.0
    %1856 = vmatprep.subr.mxu0 0.0
    %1857 = vmatpush1.msra.mxu0 0.0
    %1858 = vmatprep.subr.mxu0 0.0
    %1859 = vmatpush1.msra.mxu0 0.0
    %1860 = vmatprep.subr.mxu0 0.0
    %1861 = vmatpush1.msra.mxu0 0.0
    %1862 = vmatprep.subr.mxu0 0.0
    %1863 = vmatpush1.msra.mxu0 0.0
    %1864 = vmatprep.subr.mxu0 0.0
    %1865 = vmatpush1.msra.mxu0 0.0
    %1866 = vmatprep.subr.mxu0 0.0
    %1867 = vmatpush1.msra.mxu0 %v1087
    %1868 = vmatprep.subr.mxu0 0.0
    %1869 = vmatpush1.msra.mxu0 %v1086
    %1870 = vmatprep.subr.mxu0 0.0
    %1871 = vmatpush1.msra.mxu0 %v1085
    %1872 = vmatprep.subr.mxu0 0.0
    %1873 = vmatpush1.msra.mxu0 %v1084
    %1874 = vmatprep.subr.mxu0 0.0
    %1875 = vmatpush2.msra.mxu0 0.0
    %1876 = vmatprep.subr.mxu0 0.0
    %1877 = vmatpush2.msra.mxu0 0.0
    %1878 = vmatprep.subr.mxu0 0.0
    %1879 = vmatpush2.msra.mxu0 0.0
    %1880 = vmatprep.subr.mxu0 0.0
    %1881 = vmatpush2.msra.mxu0 0.0
    %1882 = vmatprep.subr.mxu0 0.0
    %1883 = vmatpush2.msra.mxu0 0.0
    %1884 = vmatprep.subr.mxu0 0.0
    %1885 = vmatpush2.msra.mxu0 0.0
    %1886 = vmatprep.subr.mxu0 0.0
    %1887 = vmatpush2.msra.mxu0 0.0
    %1888 = vmatprep.subr.mxu0 0.0
    %1889 = vmatpush2.msra.mxu0 0.0
    %1890 = vmatprep.subr.mxu0 0.0
    %1891 = vmatpush2.msra.mxu0 0.0
    %1892 = vmatprep.subr.mxu0 0.0
    %1893 = vmatpush2.msra.mxu0 0.0
    %1894 = vmatprep.subr.mxu0 0.0
    %1895 = vmatpush2.msra.mxu0 0.0
    %1896 = vmatprep.subr.mxu0 0.0
    %1897 = vmatpush2.msra.mxu0 0.0
    %1898 = vmatprep.subr.mxu0 0.0
    %1899 = vmatpush2.msra.mxu0 0.0
    %1900 = vmatprep.subr.mxu0 0.0
    %1901 = vmatpush2.msra.mxu0 0.0
    %1902 = vmatprep.subr.mxu0 0.0
    %1903 = vmatpush2.msra.mxu0 0.0
    %1904 = vmatprep.subr.mxu0 0.0
    %1905 = vmatpush2.msra.mxu0 0.0
    %1906 = vmatprep.mubr.f32.mxu0 0.0
    %1907 = vmatmul.mubr.f32.gmra.mxu0 %v1840
    %v1908 = vpop.f32.mrf.mxu0
    %v1909 = vadd.f32 0.0, %v1908
    %v1910 = vpop.f32.mrf.mxu0
    %1911 = vdwg.mxu0
    %v1913 = vrot.slane %v1909, 4
    %v1915 = vadd.f32 %v1184, %v1913
    %v1916 = vxor.u32 %v1915, 2147483648
    %v1917 = vmul.f32 %v1916, 1.442695
    %v1918 = vpow.pop %v1917
    %v1919 = vadd.f32 %v1918, 1.0
    %v1920 = vrcp.pop %v1919
    %v1921 = vmul.f32 1.0, %v1920
    %v1922 = vadd.f32 %v1909, %v1273
    %v1924 = vrot.slane %v1922, 4
    %1925 = vrot.lane.b32.xlu0 %v1924, 64
    %v1926 = vpop.permute.xlu0 %1925
    %v1928 = vmul.f32 %v1921, %v1926
    %1930 = vrot.lane.b32.xlu0 %v1928, 64
    %v1931 = vpop.permute.xlu0 %1930
    %v1933 = vadd.f32 %v1184, %v1931
    %v1934 = vtanh.pop %v1933
    %v1935 = vsub.f32 1.0, %v1921
    %1937 = vrot.lane.b32.xlu0 %v1934, 96
    %v1938 = vpop.permute.xlu0 %1937
    %v1940 = vmul.f32 %v1935, %v1938
    %v1941 = vrot.slane %v1835, 6
    %v1943 = vmul.f32 %v1921, %v1941
    %v1944 = vadd.f32 %v1940, %v1943
    %v1946 = vrot.slane %v1944, 4
    %1947 = vrot.lane.b32.xlu0 %v1946, 96
    %v1948 = vpop.permute.xlu0 %1947
    %v1949 = vsel %vm214, %v1948, 0
    %1951 = vmatprep.subr.mxu0 0.0
    %1952 = vmatpush1.msra.mxu0 0.0
    %1953 = vmatprep.subr.mxu0 0.0
    %1954 = vmatpush1.msra.mxu0 0.0
    %1955 = vmatprep.subr.mxu0 0.0
    %1956 = vmatpush1.msra.mxu0 0.0
    %1957 = vmatprep.subr.mxu0 0.0
    %1958 = vmatpush1.msra.mxu0 0.0
    %1959 = vmatprep.subr.mxu0 0.0
    %1960 = vmatpush1.msra.mxu0 0.0
    %1961 = vmatprep.subr.mxu0 0.0
    %1962 = vmatpush1.msra.mxu0 0.0
    %1963 = vmatprep.subr.mxu0 0.0
    %1964 = vmatpush1.msra.mxu0 0.0
    %1965 = vmatprep.subr.mxu0 0.0
    %1966 = vmatpush1.msra.mxu0 0.0
    %1967 = vmatprep.subr.mxu0 0.0
    %1968 = vmatpush1.msra.mxu0 0.0
    %1969 = vmatprep.subr.mxu0 0.0
    %1970 = vmatpush1.msra.mxu0 0.0
    %1971 = vmatprep.subr.mxu0 0.0
    %1972 = vmatpush1.msra.mxu0 0.0
    %1973 = vmatprep.subr.mxu0 0.0
    %1974 = vmatpush1.msra.mxu0 0.0
    %1975 = vmatprep.subr.mxu0 0.0
    %1976 = vmatpush1.msra.mxu0 %v1087
    %1977 = vmatprep.subr.mxu0 0.0
    %1978 = vmatpush1.msra.mxu0 %v1086
    %1979 = vmatprep.subr.mxu0 0.0
    %1980 = vmatpush1.msra.mxu0 %v1085
    %1981 = vmatprep.subr.mxu0 0.0
    %1982 = vmatpush1.msra.mxu0 %v1084
    %1983 = vmatprep.subr.mxu0 0.0
    %1984 = vmatpush2.msra.mxu0 0.0
    %1985 = vmatprep.subr.mxu0 0.0
    %1986 = vmatpush2.msra.mxu0 0.0
    %1987 = vmatprep.subr.mxu0 0.0
    %1988 = vmatpush2.msra.mxu0 0.0
    %1989 = vmatprep.subr.mxu0 0.0
    %1990 = vmatpush2.msra.mxu0 0.0
    %1991 = vmatprep.subr.mxu0 0.0
    %1992 = vmatpush2.msra.mxu0 0.0
    %1993 = vmatprep.subr.mxu0 0.0
    %1994 = vmatpush2.msra.mxu0 0.0
    %1995 = vmatprep.subr.mxu0 0.0
    %1996 = vmatpush2.msra.mxu0 0.0
    %1997 = vmatprep.subr.mxu0 0.0
    %1998 = vmatpush2.msra.mxu0 0.0
    %1999 = vmatprep.subr.mxu0 0.0
    %2000 = vmatpush2.msra.mxu0 0.0
    %2001 = vmatprep.subr.mxu0 0.0
    %2002 = vmatpush2.msra.mxu0 0.0
    %2003 = vmatprep.subr.mxu0 0.0
    %2004 = vmatpush2.msra.mxu0 0.0
    %2005 = vmatprep.subr.mxu0 0.0
    %2006 = vmatpush2.msra.mxu0 0.0
    %2007 = vmatprep.subr.mxu0 0.0
    %2008 = vmatpush2.msra.mxu0 0.0
    %2009 = vmatprep.subr.mxu0 0.0
    %2010 = vmatpush2.msra.mxu0 0.0
    %2011 = vmatprep.subr.mxu0 0.0
    %2012 = vmatpush2.msra.mxu0 0.0
    %2013 = vmatprep.subr.mxu0 0.0
    %2014 = vmatpush2.msra.mxu0 0.0
    %2015 = vmatprep.mubr.f32.mxu0 0.0
    %2016 = vmatmul.mubr.f32.gmra.mxu0 %v1949
    %v2017 = vpop.f32.mrf.mxu0
    %v2018 = vadd.f32 0.0, %v2017
    %v2019 = vpop.f32.mrf.mxu0
    %2020 = vdwg.mxu0
    %v2022 = vrot.slane %v2018, 2
    %v2024 = vadd.f32 %v1184, %v2022
    %v2025 = vxor.u32 %v2024, 2147483648
    %v2026 = vmul.f32 %v2025, 1.442695
    %v2027 = vpow.pop %v2026
    %v2028 = vadd.f32 %v2027, 1.0
    %v2029 = vrcp.pop %v2028
    %v2030 = vmul.f32 1.0, %v2029
    %v2031 = vadd.f32 %v2018, %v1273
    %v2033 = vrot.slane %v2031, 2
    %2034 = vrot.lane.b32.xlu0 %v2033, 64
    %v2035 = vpop.permute.xlu0 %2034
    %v2037 = vmul.f32 %v2030, %v2035
    %2039 = vrot.lane.b32.xlu0 %v2037, 64
    %v2040 = vpop.permute.xlu0 %2039
    %v2042 = vadd.f32 %v1184, %v2040
    %v2043 = vtanh.pop %v2042
    %v2044 = vsub.f32 1.0, %v2030
    %2046 = vrot.lane.b32.xlu0 %v2043, 96
    %v2047 = vpop.permute.xlu0 %2046
    %v2049 = vmul.f32 %v2044, %v2047
    %v2050 = vrot.slane %v1944, 6
    %v2052 = vmul.f32 %v2030, %v2050
    %v2053 = vadd.f32 %v2049, %v2052
    %2056 = vrot.lane.b32.xlu0 %v1516, 32
    %v2057 = vpop.permute.xlu0 %2056
    %2059 = vrot.lane.b32.xlu0 %v1625, 64
    %v2060 = vpop.permute.xlu0 %2059
    %2064 = vrot.lane.b32.xlu0 %v1946, 32
    %v2065 = vpop.permute.xlu0 %2064
    %v2068 = vrot.slane %v2053, 6
    %2069 = vrot.lane.b32.xlu0 %v2068, 64
    %v2070 = vpop.permute.xlu0 %2069
    %v2072 = vsel %vm214, %v1300, %v1407
    %v2073 = vsel %vm80, %v2072, %v2057
    %vm2074 = vcmask 785408
    %v2075 = vsel %vm2074, %v2073, %v2060
    %v2076 = vsel %vm214, %v1730, %v1837
    %v2077 = vsel %vm80, %v2076, %v2065
    %v2078 = vsel %vm2074, %v2077, %v2070
    %v2079 = vld [vmem:[%s1] sm:$0x3]
    %v2080 = vld [vmem:[%s11] sm:$0xff]
    %v2081 = vld [vmem:[%s11 + $0x8] sm:$0xff]
    %v2082 = vld [vmem:[%s11 + $0x10] sm:$0xff]
    %v2083 = vld [vmem:[%s11 + $0x18] sm:$0xff]
    %v2084 = vld [vmem:[%s11 + $0x20] sm:$0xff]
    %v2085 = vld [vmem:[%s11 + $0x28] sm:$0xff]
    %v2086 = vld [vmem:[%s11 + $0x30] sm:$0xff]
    %v2087 = vld [vmem:[%s11 + $0x38] sm:$0xff]
    %v2088 = vld [vmem:[%s11 + $0x40] sm:$0xff]
    %v2089 = vld [vmem:[%s11 + $0x48] sm:$0xff]
    %v2090 = vld [vmem:[%s11 + $0x50] sm:$0xff]
    %v2091 = vld [vmem:[%s11 + $0x58] sm:$0xff]
    %v2092 = vld [vmem:[%s11 + $0x60] sm:$0xff]
    %v2093 = vld [vmem:[%s11 + $0x68] sm:$0xff]
    %v2094 = vld [vmem:[%s11 + $0x70] sm:$0xff]
    %v2095 = vld [vmem:[%s11 + $0x78] sm:$0xff]
    %v2096 = vld [vmem:[%s11 + $0x80] sm:$0xff]
    %v2097 = vld [vmem:[%s11 + $0x88] sm:$0xff]
    %v2098 = vld [vmem:[%s11 + $0x90] sm:$0xff]
    %v2099 = vld [vmem:[%s11 + $0x98] sm:$0xff]
    %v2100 = vld [vmem:[%s11 + $0xa0] sm:$0xff]
    %v2101 = vld [vmem:[%s11 + $0xa8] sm:$0xff]
    %v2102 = vld [vmem:[%s11 + $0xb0] sm:$0xff]
    %v2103 = vld [vmem:[%s11 + $0xb8] sm:$0xff]
    %v2104 = vld [vmem:[%s11 + $0xc0] sm:$0xff]
    %v2105 = vld [vmem:[%s11 + $0xc8] sm:$0xff]
    %v2106 = vld [vmem:[%s11 + $0xd0] sm:$0xff]
    %v2107 = vld [vmem:[%s11 + $0xd8] sm:$0xff]
    %v2108 = vld [vmem:[%s11 + $0xe0] sm:$0xff]
    %v2109 = vld [vmem:[%s11 + $0xe8] sm:$0xff]
    %v2110 = vld [vmem:[%s11 + $0xf0] sm:$0xff]
    %v2111 = vld [vmem:[%s11 + $0xf8] sm:$0xff]
    %v2112 = vld [vmem:[%s11 + $0x100] sm:$0xff]
    %v2113 = vld [vmem:[%s12] sm:$0x1]
    %2114 = vmatprep.subr.mxu0 0.0
    %2115 = vmatpush1.msra.mxu0 %v2096
    %2116 = vmatprep.subr.mxu0 0.0
    %2117 = vmatpush1.msra.mxu0 %v2095
    %2118 = vmatprep.subr.mxu0 0.0
    %2119 = vmatpush1.msra.mxu0 %v2094
    %2120 = vmatprep.subr.mxu0 0.0
    %2121 = vmatpush1.msra.mxu0 %v2093
    %2122 = vmatprep.subr.mxu0 0.0
    %2123 = vmatpush1.msra.mxu0 %v2092
    %2124 = vmatprep.subr.mxu0 0.0
    %2125 = vmatpush1.msra.mxu0 %v2091
    %2126 = vmatprep.subr.mxu0 0.0
    %2127 = vmatpush1.msra.mxu0 %v2090
    %2128 = vmatprep.subr.mxu0 0.0
    %2129 = vmatpush1.msra.mxu0 %v2089
    %2130 = vmatprep.subr.mxu0 0.0
    %2131 = vmatpush1.msra.mxu0 %v2088
    %2132 = vmatprep.subr.mxu0 0.0
    %2133 = vmatpush1.msra.mxu0 %v2087
    %2134 = vmatprep.subr.mxu0 0.0
    %2135 = vmatpush1.msra.mxu0 %v2086
    %2136 = vmatprep.subr.mxu0 0.0
    %2137 = vmatpush1.msra.mxu0 %v2085
    %2138 = vmatprep.subr.mxu0 0.0
    %2139 = vmatpush1.msra.mxu0 %v2084
    %2140 = vmatprep.subr.mxu0 0.0
    %2141 = vmatpush1.msra.mxu0 %v2083
    %2142 = vmatprep.subr.mxu0 0.0
    %2143 = vmatpush1.msra.mxu0 %v2082
    %2144 = vmatprep.subr.mxu0 0.0
    %2145 = vmatpush1.msra.mxu0 %v2081
    %2146 = vmatprep.subr.mxu0 0.0
    %2147 = vmatpush2.msra.mxu0 %v2112
    %2148 = vmatprep.subr.mxu0 0.0
    %2149 = vmatpush2.msra.mxu0 %v2111
    %2150 = vmatprep.subr.mxu0 0.0
    %2151 = vmatpush2.msra.mxu0 %v2110
    %2152 = vmatprep.subr.mxu0 0.0
    %2153 = vmatpush2.msra.mxu0 %v2109
    %2154 = vmatprep.subr.mxu0 0.0
    %2155 = vmatpush2.msra.mxu0 %v2108
    %2156 = vmatprep.subr.mxu0 0.0
    %2157 = vmatpush2.msra.mxu0 %v2107
    %2158 = vmatprep.subr.mxu0 0.0
    %2159 = vmatpush2.msra.mxu0 %v2106
    %2160 = vmatprep.subr.mxu0 0.0
    %2161 = vmatpush2.msra.mxu0 %v2105
    %2162 = vmatprep.subr.mxu0 0.0
    %2163 = vmatpush2.msra.mxu0 %v2104
    %2164 = vmatprep.subr.mxu0 0.0
    %2165 = vmatpush2.msra.mxu0 %v2103
    %2166 = vmatprep.subr.mxu0 0.0
    %2167 = vmatpush2.msra.mxu0 %v2102
    %2168 = vmatprep.subr.mxu0 0.0
    %2169 = vmatpush2.msra.mxu0 %v2101
    %2170 = vmatprep.subr.mxu0 0.0
    %2171 = vmatpush2.msra.mxu0 %v2100
    %2172 = vmatprep.subr.mxu0 0.0
    %2173 = vmatpush2.msra.mxu0 %v2099
    %2174 = vmatprep.subr.mxu0 0.0
    %2175 = vmatpush2.msra.mxu0 %v2098
    %2176 = vmatprep.subr.mxu0 0.0
    %2177 = vmatpush2.msra.mxu0 %v2097
    %2178 = vmatprep.mubr.f32.mxu0 %v2078
    %2179 = vmatmul.mubr.f32.gmra.mxu0 %v2075
    %v2180 = vpop.f32.mrf.mxu0
    %v2181 = vadd.f32 0.0, %v2180
    %v2182 = vpop.f32.mrf.mxu0
    %2183 = vdwg.mxu0
    %vm2184 = vcmask 64512
    %v2186 = vsel %vm2184, %v2079, 0
    %2188 = vmatprep.subr.mxu0 0.0
    %2189 = vmatpush1.msra.mxu0 0.0
    %2190 = vmatprep.subr.mxu0 0.0
    %2191 = vmatpush1.msra.mxu0 0.0
    %2192 = vmatprep.subr.mxu0 0.0
    %2193 = vmatpush1.msra.mxu0 0.0
    %2194 = vmatprep.subr.mxu0 0.0
    %2195 = vmatpush1.msra.mxu0 0.0
    %2196 = vmatprep.subr.mxu0 0.0
    %2197 = vmatpush1.msra.mxu0 0.0
    %2198 = vmatprep.subr.mxu0 0.0
    %2199 = vmatpush1.msra.mxu0 0.0
    %2200 = vmatprep.subr.mxu0 0.0
    %2201 = vmatpush1.msra.mxu0 0.0
    %2202 = vmatprep.subr.mxu0 0.0
    %2203 = vmatpush1.msra.mxu0 0.0
    %2204 = vmatprep.subr.mxu0 0.0
    %2205 = vmatpush1.msra.mxu0 0.0
    %2206 = vmatprep.subr.mxu0 0.0
    %2207 = vmatpush1.msra.mxu0 0.0
    %2208 = vmatprep.subr.mxu0 0.0
    %2209 = vmatpush1.msra.mxu0 0.0
    %2210 = vmatprep.subr.mxu0 0.0
    %2211 = vmatpush1.msra.mxu0 0.0
    %2212 = vmatprep.subr.mxu0 0.0
    %2213 = vmatpush1.msra.mxu0 0.0
    %2214 = vmatprep.subr.mxu0 0.0
    %2215 = vmatpush1.msra.mxu0 0.0
    %2216 = vmatprep.subr.mxu0 0.0
    %2217 = vmatpush1.msra.mxu0 0.0
    %2218 = vmatprep.subr.mxu0 0.0
    %2219 = vmatpush1.msra.mxu0 %v2080
    %2220 = vmatprep.subr.mxu0 0.0
    %2221 = vmatpush2.msra.mxu0 0.0
    %2222 = vmatprep.subr.mxu0 0.0
    %2223 = vmatpush2.msra.mxu0 0.0
    %2224 = vmatprep.subr.mxu0 0.0
    %2225 = vmatpush2.msra.mxu0 0.0
    %2226 = vmatprep.subr.mxu0 0.0
    %2227 = vmatpush2.msra.mxu0 0.0
    %2228 = vmatprep.subr.mxu0 0.0
    %2229 = vmatpush2.msra.mxu0 0.0
    %2230 = vmatprep.subr.mxu0 0.0
    %2231 = vmatpush2.msra.mxu0 0.0
    %2232 = vmatprep.subr.mxu0 0.0
    %2233 = vmatpush2.msra.mxu0 0.0
    %2234 = vmatprep.subr.mxu0 0.0
    %2235 = vmatpush2.msra.mxu0 0.0
    %2236 = vmatprep.subr.mxu0 0.0
    %2237 = vmatpush2.msra.mxu0 0.0
    %2238 = vmatprep.subr.mxu0 0.0
    %2239 = vmatpush2.msra.mxu0 0.0
    %2240 = vmatprep.subr.mxu0 0.0
    %2241 = vmatpush2.msra.mxu0 0.0
    %2242 = vmatprep.subr.mxu0 0.0
    %2243 = vmatpush2.msra.mxu0 0.0
    %2244 = vmatprep.subr.mxu0 0.0
    %2245 = vmatpush2.msra.mxu0 0.0
    %2246 = vmatprep.subr.mxu0 0.0
    %2247 = vmatpush2.msra.mxu0 0.0
    %2248 = vmatprep.subr.mxu0 0.0
    %2249 = vmatpush2.msra.mxu0 0.0
    %2250 = vmatprep.subr.mxu0 0.0
    %2251 = vmatpush2.msra.mxu0 0.0
    %2252 = vmatprep.mubr.f32.mxu0 0.0
    %2253 = vmatmul.mubr.f32.gmra.mxu0 %v2186
    %v2254 = vpop.f32.mrf.mxu0
    %v2255 = vadd.f32 %v2181, %v2254
    %v2256 = vpop.f32.mrf.mxu0
    %2257 = vdwg.mxu0
    %v2259 = vlaneseq
    %v2260 = vshrl.u32 %v2259, 7
    %v2261 = vsub.s32 0, %v2260
    %v2262 = vrot.slane %v2113, %v2261
    %v2264 = vadd.f32 %v2255, %v2262
    %v2265 = vld [vmem:[%s13] sm:$0x1]
    %v2266 = vld [vmem:[%s14] sm:$0x1]
    %vm2267 = vcmask 517120
    %v2268 = vsel %vm2267, %v2264, 0.0
    %2269 = vadd.xlane.f32.xlu0 %v2268
    %v2270 = vpop.xlane.xlu0 %2269
    %v2271 = vrcp.pop 64.0
    %v2272 = vmul.f32 %v2270, %v2271
    %v2273 = vsub.f32 %v2264, %v2272
    %v2274 = vmul.f32 %v2273, %v2273
    %v2275 = vsel %vm2267, %v2274, 0.0
    %2276 = vadd.xlane.f32.xlu0 %v2275
    %v2277 = vpop.xlane.xlu0 %2276
    %v2278 = vmul.f32 %v2277, %v2271
    %v2279 = vadd.f32 %v2278, 1e-05
    %v2280 = vrsqrt.pop %v2279
    %v2281 = vmul.f32 %v2273, %v2280
    %v2283 = vlaneseq
    %v2284 = vshrl.u32 %v2283, 7
    %v2285 = vsub.s32 0, %v2284
    %v2286 = vrot.slane %v2265, %v2285
    %v2288 = vmul.f32 %v2281, %v2286
    %v2290 = vlaneseq
    %v2291 = vshrl.u32 %v2290, 7
    %v2292 = vsub.s32 0, %v2291
    %v2293 = vrot.slane %v2266, %v2292
    %v2295 = vadd.f32 %v2288, %v2293
    %v2296 = vmul.f32 %v2295, 0.5
    %v2297 = vmul.f32 %v2295, 0.70710677
    %v2298 = verf.f32.pop %v2297
    %v2299 = vadd.f32 %v2298, 1.0
    %v2300 = vmul.f32 %v2296, %v2299
    %v2301 = vld [vmem:[%s15] sm:$0xff]
    %v2302 = vld [vmem:[%s15 + $0x8] sm:$0xff]
    %v2303 = vld [vmem:[%s15 + $0x10] sm:$0xff]
    %v2304 = vld [vmem:[%s15 + $0x18] sm:$0xff]
    %v2305 = vld [vmem:[%s15 + $0x20] sm:$0xff]
    %v2306 = vld [vmem:[%s15 + $0x28] sm:$0xff]
    %v2307 = vld [vmem:[%s15 + $0x30] sm:$0xff]
    %v2308 = vld [vmem:[%s15 + $0x38] sm:$0xff]
    %v2309 = vld [vmem:[%s16] sm:$0x1]
    %v2311 = vlaneseq
    %v2312 = vshrl.u32 %v2311, 7
    %v2313 = vsub.s32 0, %v2312
    %v2314 = vrot.slane %v2309, %v2313
    %v2317 = vsel %vm80, %v2300, 0
    %2319 = vmatprep.subr.mxu0 0.0
    %2320 = vmatpush1.msra.mxu0 0.0
    %2321 = vmatprep.subr.mxu0 0.0
    %2322 = vmatpush1.msra.mxu0 0.0
    %2323 = vmatprep.subr.mxu0 0.0
    %2324 = vmatpush1.msra.mxu0 0.0
    %2325 = vmatprep.subr.mxu0 0.0
    %2326 = vmatpush1.msra.mxu0 0.0
    %2327 = vmatprep.subr.mxu0 0.0
    %2328 = vmatpush1.msra.mxu0 0.0
    %2329 = vmatprep.subr.mxu0 0.0
    %2330 = vmatpush1.msra.mxu0 0.0
    %2331 = vmatprep.subr.mxu0 0.0
    %2332 = vmatpush1.msra.mxu0 0.0
    %2333 = vmatprep.subr.mxu0 0.0
    %2334 = vmatpush1.msra.mxu0 0.0
    %2335 = vmatprep.subr.mxu0 0.0
    %2336 = vmatpush1.msra.mxu0 %v2308
    %2337 = vmatprep.subr.mxu0 0.0
    %2338 = vmatpush1.msra.mxu0 %v2307
    %2339 = vmatprep.subr.mxu0 0.0
    %2340 = vmatpush1.msra.mxu0 %v2306
    %2341 = vmatprep.subr.mxu0 0.0
    %2342 = vmatpush1.msra.mxu0 %v2305
    %2343 = vmatprep.subr.mxu0 0.0
    %2344 = vmatpush1.msra.mxu0 %v2304
    %2345 = vmatprep.subr.mxu0 0.0
    %2346 = vmatpush1.msra.mxu0 %v2303
    %2347 = vmatprep.subr.mxu0 0.0
    %2348 = vmatpush1.msra.mxu0 %v2302
    %2349 = vmatprep.subr.mxu0 0.0
    %2350 = vmatpush1.msra.mxu0 %v2301
    %2351 = vmatprep.subr.mxu0 0.0
    %2352 = vmatpush2.msra.mxu0 0.0
    %2353 = vmatprep.subr.mxu0 0.0
    %2354 = vmatpush2.msra.mxu0 0.0
    %2355 = vmatprep.subr.mxu0 0.0
    %2356 = vmatpush2.msra.mxu0 0.0
    %2357 = vmatprep.subr.mxu0 0.0
    %2358 = vmatpush2.msra.mxu0 0.0
    %2359 = vmatprep.subr.mxu0 0.0
    %2360 = vmatpush2.msra.mxu0 0.0
    %2361 = vmatprep.subr.mxu0 0.0
    %2362 = vmatpush2.msra.mxu0 0.0
    %2363 = vmatprep.subr.mxu0 0.0
    %2364 = vmatpush2.msra.mxu0 0.0
    %2365 = vmatprep.subr.mxu0 0.0
    %2366 = vmatpush2.msra.mxu0 0.0
    %2367 = vmatprep.subr.mxu0 0.0
    %2368 = vmatpush2.msra.mxu0 0.0
    %2369 = vmatprep.subr.mxu0 0.0
    %2370 = vmatpush2.msra.mxu0 0.0
    %2371 = vmatprep.subr.mxu0 0.0
    %2372 = vmatpush2.msra.mxu0 0.0
    %2373 = vmatprep.subr.mxu0 0.0
    %2374 = vmatpush2.msra.mxu0 0.0
    %2375 = vmatprep.subr.mxu0 0.0
    %2376 = vmatpush2.msra.mxu0 0.0
    %2377 = vmatprep.subr.mxu0 0.0
    %2378 = vmatpush2.msra.mxu0 0.0
    %2379 = vmatprep.subr.mxu0 0.0
    %2380 = vmatpush2.msra.mxu0 0.0
    %2381 = vmatprep.subr.mxu0 0.0
    %2382 = vmatpush2.msra.mxu0 0.0
    %2383 = vmatprep.mubr.f32.mxu0 0.0
    %2384 = vmatmul.mubr.f32.gmra.mxu0 %v2317
    %v2385 = vpop.f32.mrf.mxu0
    %v2386 = vadd.f32 %v2314, %v2385
    %v2387 = vpop.f32.mrf.mxu0
    %2388 = vdwg.mxu0
    %v2389 = vld [vmem:[%s17] sm:$0x1]
    %v2390 = vld [vmem:[%s18] sm:$0x1]
    %vm2391 = vcmask 254976
    %v2392 = vsel %vm2391, %v2386, 0.0
    %2393 = vadd.xlane.f32.xlu0 %v2392
    %v2394 = vpop.xlane.xlu0 %2393
    %v2395 = vrcp.pop 32.0
    %v2396 = vmul.f32 %v2394, %v2395
    %v2397 = vsub.f32 %v2386, %v2396
    %v2398 = vmul.f32 %v2397, %v2397
    %v2399 = vsel %vm2391, %v2398, 0.0
    %2400 = vadd.xlane.f32.xlu0 %v2399
    %v2401 = vpop.xlane.xlu0 %2400
    %v2402 = vmul.f32 %v2401, %v2395
    %v2403 = vadd.f32 %v2402, 1e-05
    %v2404 = vrsqrt.pop %v2403
    %v2405 = vmul.f32 %v2397, %v2404
    %v2407 = vlaneseq
    %v2408 = vshrl.u32 %v2407, 7
    %v2409 = vsub.s32 0, %v2408
    %v2410 = vrot.slane %v2389, %v2409
    %v2412 = vmul.f32 %v2405, %v2410
    %v2414 = vlaneseq
    %v2415 = vshrl.u32 %v2414, 7
    %v2416 = vsub.s32 0, %v2415
    %v2417 = vrot.slane %v2390, %v2416
    %v2419 = vadd.f32 %v2412, %v2417
    %v2420 = vmul.f32 %v2419, 0.5
    %v2421 = vmul.f32 %v2419, 0.70710677
    %v2422 = verf.f32.pop %v2421
    %v2423 = vadd.f32 %v2422, 1.0
    %v2424 = vmul.f32 %v2420, %v2423
    %v2425 = vld [vmem:[%s19] sm:$0xff]
    %v2426 = vld [vmem:[%s19 + $0x8] sm:$0xff]
    %v2427 = vld [vmem:[%s19 + $0x10] sm:$0xff]
    %v2428 = vld [vmem:[%s19 + $0x18] sm:$0xff]
    %v2429 = vld [vmem:[%s20] sm:$0x1]
    %v2431 = vlaneseq
    %v2432 = vshrl.u32 %v2431, 7
    %v2433 = vsub.s32 0, %v2432
    %v2434 = vrot.slane %v2429, %v2433
    %v2437 = vsel %vm214, %v2424, 0
    %2439 = vmatprep.subr.mxu0 0.0
    %2440 = vmatpush1.msra.mxu0 0.0
    %2441 = vmatprep.subr.mxu0 0.0
    %2442 = vmatpush1.msra.mxu0 0.0
    %2443 = vmatprep.subr.mxu0 0.0
    %2444 = vmatpush1.msra.mxu0 0.0
    %2445 = vmatprep.subr.mxu0 0.0
    %2446 = vmatpush1.msra.mxu0 0.0
    %2447 = vmatprep.subr.mxu0 0.0
    %2448 = vmatpush1.msra.mxu0 0.0
    %2449 = vmatprep.subr.mxu0 0.0
    %2450 = vmatpush1.msra.mxu0 0.0
    %2451 = vmatprep.subr.mxu0 0.0
    %2452 = vmatpush1.msra.mxu0 0.0
    %2453 = vmatprep.subr.mxu0 0.0
    %2454 = vmatpush1.msra.mxu0 0.0
    %2455 = vmatprep.subr.mxu0 0.0
    %2456 = vmatpush1.msra.mxu0 0.0
    %2457 = vmatprep.subr.mxu0 0.0
    %2458 = vmatpush1.msra.mxu0 0.0
    %2459 = vmatprep.subr.mxu0 0.0
    %2460 = vmatpush1.msra.mxu0 0.0
    %2461 = vmatprep.subr.mxu0 0.0
    %2462 = vmatpush1.msra.mxu0 0.0
    %2463 = vmatprep.subr.mxu0 0.0
    %2464 = vmatpush1.msra.mxu0 %v2428
    %2465 = vmatprep.subr.mxu0 0.0
    %2466 = vmatpush1.msra.mxu0 %v2427
    %2467 = vmatprep.subr.mxu0 0.0
    %2468 = vmatpush1.msra.mxu0 %v2426
    %2469 = vmatprep.subr.mxu0 0.0
    %2470 = vmatpush1.msra.mxu0 %v2425
    %2471 = vmatprep.subr.mxu0 0.0
    %2472 = vmatpush2.msra.mxu0 0.0
    %2473 = vmatprep.subr.mxu0 0.0
    %2474 = vmatpush2.msra.mxu0 0.0
    %2475 = vmatprep.subr.mxu0 0.0
    %2476 = vmatpush2.msra.mxu0 0.0
    %2477 = vmatprep.subr.mxu0 0.0
    %2478 = vmatpush2.msra.mxu0 0.0
    %2479 = vmatprep.subr.mxu0 0.0
    %2480 = vmatpush2.msra.mxu0 0.0
    %2481 = vmatprep.subr.mxu0 0.0
    %2482 = vmatpush2.msra.mxu0 0.0
    %2483 = vmatprep.subr.mxu0 0.0
    %2484 = vmatpush2.msra.mxu0 0.0
    %2485 = vmatprep.subr.mxu0 0.0
    %2486 = vmatpush2.msra.mxu0 0.0
    %2487 = vmatprep.subr.mxu0 0.0
    %2488 = vmatpush2.msra.mxu0 0.0
    %2489 = vmatprep.subr.mxu0 0.0
    %2490 = vmatpush2.msra.mxu0 0.0
    %2491 = vmatprep.subr.mxu0 0.0
    %2492 = vmatpush2.msra.mxu0 0.0
    %2493 = vmatprep.subr.mxu0 0.0
    %2494 = vmatpush2.msra.mxu0 0.0
    %2495 = vmatprep.subr.mxu0 0.0
    %2496 = vmatpush2.msra.mxu0 0.0
    %2497 = vmatprep.subr.mxu0 0.0
    %2498 = vmatpush2.msra.mxu0 0.0
    %2499 = vmatprep.subr.mxu0 0.0
    %2500 = vmatpush2.msra.mxu0 0.0
    %2501 = vmatprep.subr.mxu0 0.0
    %2502 = vmatpush2.msra.mxu0 0.0
    %2503 = vmatprep.mubr.f32.mxu0 0.0
    %2504 = vmatmul.mubr.f32.gmra.mxu0 %v2437
    %v2505 = vpop.f32.mrf.mxu0
    %v2506 = vadd.f32 %v2434, %v2505
    %v2507 = vpop.f32.mrf.mxu0
    %2508 = vdwg.mxu0
    %vm2509 = vcmask 123904
    %2510 = vst.msk [vmem:[#allocation2] sm:$0x3] %vm2509, %v2506
    // Predicated region
    $region86: #{tpu_custom_call.1} parent=1 // pred_check
      _
    $region87: #{tpu_custom_call.1} parent=1 // pred_check_branch
      %2512 = sbr.rel (0) target = $region89
    $region88: #{tpu_custom_call.1} parent=1 // pred_region
      %s2514 = ssub.s32 32, 32
      %2515 = vsyncadd [#allocation3], %s2514
      %s2517 = sshll.u32 [#allocation2], 4
      %s2518 = int_to_ptr.vmem [resolvable:$true] %s2517
      %2520 = dma.vmem_to_hbm [thread:$0]  %s2518, 32, %s21, [#allocation3]
    $region89: #{tpu_custom_call.1} parent=1 // pred_fallthru
      _
    // Predicated region
    $region90: #{tpu_custom_call.1} parent=1 // pred_check
      _
    $region91: #{tpu_custom_call.1} parent=1 // pred_check_branch
      %2522 = sbr.rel (0) target = $region93
    $region92: #{tpu_custom_call.1} parent=1 // pred_region
      %2523 = dma.done [#allocation3], 32
    $region93: #{tpu_custom_call.1} parent=1 // pred_fallthru
      _
    %2524 = vsyncpa [#allocation3], 1

</llo_original>
